<compile_context>
chip_gen: v6e
topology: v6e:2x2x1
jax: 0.10.0
libtpu: 0.0.40
codegen_flags: <defaults>
</compile_context>

<pallas_src>
import functools

import jax
import jax.numpy as jnp
from jax.experimental import pallas as pl
from jax.experimental.pallas import tpu as pltpu

# bf16 MXU operands on real TPU; f32 on CPU / interpret (DotThunk has no
# BF16xBF16=F32 path).  {0,1} incidence and weights are exact/near-exact in bf16.
_COMPUTE_DTYPE = jnp.bfloat16 if jax.devices()[0].platform == "tpu" else jnp.float32


def _gnn_kernel(n_hops, n_lits, n_clauses, cdt,
                g_ref, gt_ref, linit_ref,
                cu_w0_ref, cu_b0_ref, cu_w1_ref, cu_b1_ref,
                lu_w0_ref, lu_b0_ref, lu_w1_ref, lu_b1_ref,
                ln_w_ref, ln_b_ref,
                hd_w0_ref, hd_b0_ref, hd_w1_ref, hd_b1_ref,
                out_ref):
    f32 = jnp.float32
    half = n_lits // 2

    # Loop-invariant graph operators and weights (held once in VMEM).
    G = g_ref[...]            # (n_clauses, n_lits)   compute dtype
    GT = gt_ref[...]          # (n_lits,   n_clauses) compute dtype
    cu_w0, cu_b0 = cu_w0_ref[...], cu_b0_ref[...]
    cu_w1, cu_b1 = cu_w1_ref[...], cu_b1_ref[...]
    lu_w0, lu_b0 = lu_w0_ref[...], lu_b0_ref[...]
    lu_w1, lu_b1 = lu_w1_ref[...], lu_b1_ref[...]
    ln_w, ln_b = ln_w_ref[...], ln_b_ref[...]

    # Unbiased variance denominator (torch .std is ddof=1).
    inv_nm1 = f32(1.0 / max(n_clauses - 1, 1))

    def hop(_i, L):
        Lb = L.astype(cdt)
        # L_flip = [L[half:], L[:half]] ; C_pre_msg = [L | L_flip]
        L_flip = jnp.concatenate([Lb[half:, :], Lb[:half, :]], axis=0)
        C_pre = jnp.concatenate([Lb, L_flip], axis=1)            # (n_lits, 2*lit_dim)

        # C_msg = G @ C_pre_msg   (single K=n_lits, N=2*lit_dim MXU matmul)
        C_msg = jnp.dot(G, C_pre, preferred_element_type=f32)    # (n_clauses, 2*lit_dim)

        # C_update: Linear + ReLU (+dropout noop), Linear
        h = jnp.maximum(
            jnp.dot(C_msg.astype(cdt), cu_w0, preferred_element_type=f32) + cu_b0, 0.0)
        C = jnp.dot(h.astype(cdt), cu_w1, preferred_element_type=f32) + cu_b1

        # normalize=True: column-wise mean / unbiased std over clauses
        C_mean = jnp.mean(C, axis=0, keepdims=True)
        Cc = C - C_mean
        C_var = jnp.sum(Cc * Cc, axis=0, keepdims=True) * inv_nm1
        # ~ C / (std + 1e-10); single EUP rsqrt instead of sqrt+add+rcp
        Cn = Cc * jax.lax.rsqrt(C_var + 1e-12)

        # L_msg = G.T @ C  (pre-transposed GT; compute-dtype MXU operand, f32 acc)
        L_msg = jnp.dot(GT, Cn.astype(cdt), preferred_element_type=f32)   # (n_lits, clause_dim)

        # L_update + residual
        h2 = jnp.maximum(
            jnp.dot(L_msg.astype(cdt), lu_w0, preferred_element_type=f32) + lu_b0, 0.0)
        L_new = (jnp.dot(h2.astype(cdt), lu_w1, preferred_element_type=f32)
                 + lu_b1 + 0.1 * L)

        # LayerNorm over feature dim (biased variance, eps=1e-5)
        mu = jnp.mean(L_new, axis=1, keepdims=True)
        d = L_new - mu
        var = jnp.mean(d * d, axis=1, keepdims=True)
        return d * jax.lax.rsqrt(var + 1e-5) * ln_w + ln_b

    # L = L_init.repeat(n_lits, 1)
    L0 = jnp.broadcast_to(linit_ref[...], (n_lits, linit_ref.shape[1])).astype(f32)
    L = jax.lax.fori_loop(0, n_hops, hop, L0)

    # V = cat([L[:half], L[half:]], dim=1)   -> (n_vars, 2*lit_dim)
    V = jnp.concatenate([L[:half, :], L[half:, :]], axis=1).astype(cdt)

    # Fused score/vote heads: one wide hidden matmul + one block-diagonal head
    # matmul whose output is zero-padded to 128 lanes (col 0 = score, col 1 = vote).
    hh = jnp.maximum(
        jnp.dot(V, hd_w0_ref[...], preferred_element_type=f32) + hd_b0_ref[...], 0.0)
    out_ref[...] = (jnp.dot(hh.astype(cdt), hd_w1_ref[...], preferred_element_type=f32)
                    + hd_b1_ref[...])


@functools.partial(jax.jit, static_argnames=("n_hops",))
def rl_gnn1_forward(G, params, *, n_hops):
    """G: dense float32 [n_clauses, n_lits]. Returns (V_score, V_vote), each [n_vars, 1]."""
    n_clauses, n_lits = G.shape
    n_vars = n_lits // 2
    lit_dim = params["L_init"].shape[1]
    cdt = _COMPUTE_DTYPE
    out_pad = 128   # lane-dense padded head output width

    # One-time (outside-kernel) prep: only G and G.T are kept (no G_flip copy).
    G32 = G.astype(jnp.float32)
    G_c = G32.astype(cdt)
    GT_c = G32.T.astype(cdt)

    # Fuse the two heads (score | vote); second layer is block-diagonal and
    # zero-padded to 128 output lanes for unmasked stores.
    head_w0 = jnp.concatenate([params["vs_w0"], params["vv_w0"]], axis=1)   # (2L, 4L)
    head_b0 = jnp.concatenate([params["vs_b0"], params["vv_b0"]], axis=1)   # (1, 4L)
    zero_col = jnp.zeros_like(params["vs_w1"])
    head_w1 = jnp.concatenate(
        [jnp.concatenate([params["vs_w1"], zero_col], axis=1),
         jnp.concatenate([zero_col, params["vv_w1"]], axis=1)], axis=0)     # (4L, 2)
    head_b1 = jnp.concatenate([params["vs_b1"], params["vv_b1"]], axis=1)   # (1, 2)
    head_w1 = jnp.pad(head_w1, ((0, 0), (0, out_pad - 2)))
    head_b1 = jnp.pad(head_b1, ((0, 0), (0, out_pad - 2)))

    inputs = (
        G_c, GT_c, params["L_init"],
        params["cu_w0"].astype(cdt), params["cu_b0"],
        params["cu_w1"].astype(cdt), params["cu_b1"],
        params["lu_w0"].astype(cdt), params["lu_b0"],
        params["lu_w1"].astype(cdt), params["lu_b1"],
        params["ln_w"], params["ln_b"],
        head_w0.astype(cdt), head_b0,
        head_w1.astype(cdt), head_b1,
    )

    kernel = functools.partial(_gnn_kernel, n_hops, n_lits, n_clauses, cdt)
    vmem_spec = pl.BlockSpec(memory_space=pltpu.MemorySpace.VMEM)

    out = pl.pallas_call(
        kernel,
        out_shape=jax.ShapeDtypeStruct((n_vars, out_pad), jnp.float32),
        in_specs=[vmem_spec] * len(inputs),
        out_specs=vmem_spec,
    )(*inputs)

    return out[:, 0:1], out[:, 1:2]


def make_params(key, lit_dim, clause_dim):
    """Deterministic synthetic parameters matching rl_GNN1 shapes
    (n_layers_C_update = n_layers_L_update = n_layers_score = 1, activation='relu')."""
    def dense(k, d_in, d_out):
        kw, kb = jax.random.split(k)
        scale = 1.0 / jnp.sqrt(jnp.float32(d_in))
        w = jax.random.uniform(kw, (d_in, d_out), jnp.float32, -scale, scale)
        b = jax.random.uniform(kb, (1, d_out), jnp.float32, -scale, scale)
        return w, b

    keys = jax.random.split(key, 12)
    p = {}
    # L_init: xavier_normal_ on (1, lit_dim)
    p["L_init"] = jax.random.normal(keys[0], (1, lit_dim), jnp.float32) * jnp.sqrt(
        2.0 / (1 + lit_dim))
    # C_update: 2*lit_dim -> 2*lit_dim -> clause_dim
    p["cu_w0"], p["cu_b0"] = dense(keys[1], 2 * lit_dim, 2 * lit_dim)
    p["cu_w1"], p["cu_b1"] = dense(keys[2], 2 * lit_dim, clause_dim)
    # L_update: clause_dim -> clause_dim -> lit_dim
    p["lu_w0"], p["lu_b0"] = dense(keys[3], clause_dim, clause_dim)
    p["lu_w1"], p["lu_b1"] = dense(keys[4], clause_dim, lit_dim)
    # L_layer_norm
    p["ln_w"] = jnp.ones((1, lit_dim), jnp.float32)
    p["ln_b"] = jnp.zeros((1, lit_dim), jnp.float32)
    # V_score: 2*lit_dim -> 2*lit_dim -> 1
    p["vs_w0"], p["vs_b0"] = dense(keys[5], 2 * lit_dim, 2 * lit_dim)
    p["vs_w1"], p["vs_b1"] = dense(keys[6], 2 * lit_dim, 1)
    # V_vote: 2*lit_dim -> 2*lit_dim -> 1
    p["vv_w0"], p["vv_b0"] = dense(keys[7], 2 * lit_dim, 2 * lit_dim)
    p["vv_w1"], p["vv_b1"] = dense(keys[8], 2 * lit_dim, 1)
    return p


if __name__ == "__main__":
    # Lane-dense small config (feature dims are multiples of 128).
    lit_dim = 128
    clause_dim = 128
    n_hops = 2
    n_clauses = 256
    n_lits = 256          # n_vars = 128

    key = jax.random.PRNGKey(0)
    k_g, k_p = jax.random.split(key)

    # synthetic sparse-ish clause/literal incidence matrix (dense float32)
    G = (jax.random.uniform(k_g, (n_clauses, n_lits)) < 0.1).astype(jnp.float32)
    params = make_params(k_p, lit_dim, clause_dim)

    score, vote = rl_gnn1_forward(G, params, n_hops=n_hops)
    jax.block_until_ready((score, vote))

    assert score.shape == (n_lits // 2, 1) and vote.shape == (n_lits // 2, 1)
    assert bool(jnp.all(jnp.isfinite(score))) and bool(jnp.all(jnp.isfinite(vote)))
    print("KERNEL_OK")
</pallas_src>

<mosaic_0001>
module attributes {stable_mosaic.version = 11 : i64} {
  func.func @_gnn_kernel(%arg0: memref<256x256xf32, #tpu.memory_space<vmem>>, %arg1: memref<256x256xf32, #tpu.memory_space<vmem>>, %arg2: memref<1x128xf32, #tpu.memory_space<vmem>>, %arg3: memref<256x256xf32, #tpu.memory_space<vmem>>, %arg4: memref<1x256xf32, #tpu.memory_space<vmem>>, %arg5: memref<256x128xf32, #tpu.memory_space<vmem>>, %arg6: memref<1x128xf32, #tpu.memory_space<vmem>>, %arg7: memref<128x128xf32, #tpu.memory_space<vmem>>, %arg8: memref<1x128xf32, #tpu.memory_space<vmem>>, %arg9: memref<128x128xf32, #tpu.memory_space<vmem>>, %arg10: memref<1x128xf32, #tpu.memory_space<vmem>>, %arg11: memref<1x128xf32, #tpu.memory_space<vmem>>, %arg12: memref<1x128xf32, #tpu.memory_space<vmem>>, %arg13: memref<256x512xf32, #tpu.memory_space<vmem>>, %arg14: memref<1x512xf32, #tpu.memory_space<vmem>>, %arg15: memref<512x128xf32, #tpu.memory_space<vmem>>, %arg16: memref<1x128xf32, #tpu.memory_space<vmem>>, %arg17: memref<128x128xf32, #tpu.memory_space<vmem>>) attributes {dimension_semantics = [], scalar_prefetch = 0 : i64, scratch_operands = 0 : i64, tpu.core_type = #tpu.core_type<tc>} {
    %c0 = arith.constant 0 : index
    %c0_0 = arith.constant 0 : index
    %0 = vector.load %arg0[%c0, %c0_0] : memref<256x256xf32, #tpu.memory_space<vmem>>, vector<256x256xf32>
    %c0_1 = arith.constant 0 : index
    %c0_2 = arith.constant 0 : index
    %1 = vector.load %arg1[%c0_1, %c0_2] : memref<256x256xf32, #tpu.memory_space<vmem>>, vector<256x256xf32>
    %c0_3 = arith.constant 0 : index
    %c0_4 = arith.constant 0 : index
    %2 = vector.load %arg3[%c0_3, %c0_4] : memref<256x256xf32, #tpu.memory_space<vmem>>, vector<256x256xf32>
    %c0_5 = arith.constant 0 : index
    %c0_6 = arith.constant 0 : index
    %3 = vector.load %arg4[%c0_5, %c0_6] : memref<1x256xf32, #tpu.memory_space<vmem>>, vector<1x256xf32>
    %c0_7 = arith.constant 0 : index
    %c0_8 = arith.constant 0 : index
    %4 = vector.load %arg5[%c0_7, %c0_8] : memref<256x128xf32, #tpu.memory_space<vmem>>, vector<256x128xf32>
    %c0_9 = arith.constant 0 : index
    %c0_10 = arith.constant 0 : index
    %5 = vector.load %arg6[%c0_9, %c0_10] : memref<1x128xf32, #tpu.memory_space<vmem>>, vector<1x128xf32>
    %c0_11 = arith.constant 0 : index
    %c0_12 = arith.constant 0 : index
    %6 = vector.load %arg7[%c0_11, %c0_12] : memref<128x128xf32, #tpu.memory_space<vmem>>, vector<128x128xf32>
    %c0_13 = arith.constant 0 : index
    %c0_14 = arith.constant 0 : index
    %7 = vector.load %arg8[%c0_13, %c0_14] : memref<1x128xf32, #tpu.memory_space<vmem>>, vector<1x128xf32>
    %c0_15 = arith.constant 0 : index
    %c0_16 = arith.constant 0 : index
    %8 = vector.load %arg9[%c0_15, %c0_16] : memref<128x128xf32, #tpu.memory_space<vmem>>, vector<128x128xf32>
    %c0_17 = arith.constant 0 : index
    %c0_18 = arith.constant 0 : index
    %9 = vector.load %arg10[%c0_17, %c0_18] : memref<1x128xf32, #tpu.memory_space<vmem>>, vector<1x128xf32>
    %c0_19 = arith.constant 0 : index
    %c0_20 = arith.constant 0 : index
    %10 = vector.load %arg11[%c0_19, %c0_20] : memref<1x128xf32, #tpu.memory_space<vmem>>, vector<1x128xf32>
    %c0_21 = arith.constant 0 : index
    %c0_22 = arith.constant 0 : index
    %11 = vector.load %arg12[%c0_21, %c0_22] : memref<1x128xf32, #tpu.memory_space<vmem>>, vector<1x128xf32>
    %c0_23 = arith.constant 0 : index
    %c0_24 = arith.constant 0 : index
    %12 = vector.load %arg2[%c0_23, %c0_24] : memref<1x128xf32, #tpu.memory_space<vmem>>, vector<1x128xf32>
    %13 = vector.shape_cast %12 : vector<1x128xf32> to vector<1x128xf32>
    %14 = vector.broadcast %13 : vector<1x128xf32> to vector<256x128xf32>
    %cst = arith.constant 0.00392156886 : f32
    %c0_i32 = arith.constant 0 : i32
    %c2_i32 = arith.constant 2 : i32
    %15 = arith.addi %c0_i32, %c2_i32 : i32
    %c1_i32 = arith.constant 1 : i32
    %16 = scf.for %arg18 = %c0_i32 to %15 step %c1_i32 iter_args(%arg19 = %14) -> (vector<256x128xf32>)  : i32 {
      %33 = vector.extract_strided_slice %arg19 {offsets = [128, 0], sizes = [128, 128], strides = [1, 1]} : vector<256x128xf32> to vector<128x128xf32>
      %34 = vector.extract_strided_slice %arg19 {offsets = [0, 0], sizes = [128, 128], strides = [1, 1]} : vector<256x128xf32> to vector<128x128xf32>
      %35 = tpu.concatenate %33, %34 in 0 : vector<128x128xf32>, vector<128x128xf32> -> vector<256x128xf32>
      %36 = tpu.concatenate %arg19, %35 in 1 : vector<256x128xf32>, vector<256x128xf32> -> vector<256x256xf32>
      %cst_38 = arith.constant dense<0.000000e+00> : vector<256x256xf32>
      %37 = tpu.matmul %0, %36, %cst_38 {dimension_numbers = #tpu.dot_dimension_numbers<[1], [0], [0], [1], [0, 0, 1, 1], [], []>} : vector<256x256xf32>, vector<256x256xf32>, vector<256x256xf32> -> vector<256x256xf32>
      %cst_39 = arith.constant dense<0.000000e+00> : vector<256x256xf32>
      %38 = tpu.matmul %37, %2, %cst_39 {dimension_numbers = #tpu.dot_dimension_numbers<[1], [0], [0], [1], [0, 0, 1, 1], [], []>} : vector<256x256xf32>, vector<256x256xf32>, vector<256x256xf32> -> vector<256x256xf32>
      %39 = vector.broadcast %3 : vector<1x256xf32> to vector<256x256xf32>
      %40 = arith.addf %38, %39 : vector<256x256xf32>
      %cst_40 = arith.constant 0.000000e+00 : f32
      %41 = vector.broadcast %cst_40 : f32 to vector<256x256xf32>
      %42 = arith.maximumf %40, %41 : vector<256x256xf32>
      %cst_41 = arith.constant dense<0.000000e+00> : vector<256x128xf32>
      %43 = tpu.matmul %42, %4, %cst_41 {dimension_numbers = #tpu.dot_dimension_numbers<[1], [0], [0], [1], [0, 0, 1, 1], [], []>} : vector<256x256xf32>, vector<256x128xf32>, vector<256x128xf32> -> vector<256x128xf32>
      %44 = vector.broadcast %5 : vector<1x128xf32> to vector<256x128xf32>
      %45 = arith.addf %43, %44 : vector<256x128xf32>
      %cst_42 = arith.constant dense<0.000000e+00> : vector<128xf32>
      %46 = vector.multi_reduction <add>, %45, %cst_42 [0] : vector<256x128xf32> to vector<128xf32>
      %47 = vector.shape_cast %46 : vector<128xf32> to vector<1x128xf32>
      %cst_43 = arith.constant 2.560000e+02 : f32
      %48 = vector.broadcast %cst_43 : f32 to vector<1x128xf32>
      %49 = arith.divf %47, %48 : vector<1x128xf32>
      %50 = vector.broadcast %49 : vector<1x128xf32> to vector<256x128xf32>
      %51 = arith.subf %45, %50 : vector<256x128xf32>
      %52 = arith.mulf %51, %51 : vector<256x128xf32>
      %cst_44 = arith.constant dense<0.000000e+00> : vector<128xf32>
      %53 = vector.multi_reduction <add>, %52, %cst_44 [0] : vector<256x128xf32> to vector<128xf32>
      %54 = vector.shape_cast %53 : vector<128xf32> to vector<1x128xf32>
      %55 = vector.broadcast %cst : f32 to vector<1x128xf32>
      %56 = arith.mulf %54, %55 : vector<1x128xf32>
      %cst_45 = arith.constant 9.99999996E-13 : f32
      %57 = vector.broadcast %cst_45 : f32 to vector<1x128xf32>
      %58 = arith.addf %56, %57 : vector<1x128xf32>
      %59 = math.rsqrt %58 : vector<1x128xf32>
      %60 = vector.broadcast %59 : vector<1x128xf32> to vector<256x128xf32>
      %61 = arith.mulf %51, %60 : vector<256x128xf32>
      %cst_46 = arith.constant dense<0.000000e+00> : vector<256x128xf32>
      %62 = tpu.matmul %1, %61, %cst_46 {dimension_numbers = #tpu.dot_dimension_numbers<[1], [0], [0], [1], [0, 0, 1, 1], [], []>} : vector<256x256xf32>, vector<256x128xf32>, vector<256x128xf32> -> vector<256x128xf32>
      %cst_47 = arith.constant dense<0.000000e+00> : vector<256x128xf32>
      %63 = tpu.matmul %62, %6, %cst_47 {dimension_numbers = #tpu.dot_dimension_numbers<[1], [0], [0], [1], [0, 0, 1, 1], [], []>} : vector<256x128xf32>, vector<128x128xf32>, vector<256x128xf32> -> vector<256x128xf32>
      %64 = vector.broadcast %7 : vector<1x128xf32> to vector<256x128xf32>
      %65 = arith.addf %63, %64 : vector<256x128xf32>
      %cst_48 = arith.constant 0.000000e+00 : f32
      %66 = vector.broadcast %cst_48 : f32 to vector<256x128xf32>
      %67 = arith.maximumf %65, %66 : vector<256x128xf32>
      %cst_49 = arith.constant dense<0.000000e+00> : vector<256x128xf32>
      %68 = tpu.matmul %67, %8, %cst_49 {dimension_numbers = #tpu.dot_dimension_numbers<[1], [0], [0], [1], [0, 0, 1, 1], [], []>} : vector<256x128xf32>, vector<128x128xf32>, vector<256x128xf32> -> vector<256x128xf32>
      %69 = vector.broadcast %9 : vector<1x128xf32> to vector<256x128xf32>
      %70 = arith.addf %68, %69 : vector<256x128xf32>
      %cst_50 = arith.constant 1.000000e-01 : f32
      %71 = vector.broadcast %cst_50 : f32 to vector<256x128xf32>
      %72 = arith.mulf %71, %arg19 : vector<256x128xf32>
      %73 = arith.addf %70, %72 : vector<256x128xf32>
      %cst_51 = arith.constant dense<0.000000e+00> : vector<256xf32>
      %74 = vector.multi_reduction <add>, %73, %cst_51 [1] : vector<256x128xf32> to vector<256xf32>
      %75 = vector.shape_cast %74 : vector<256xf32> to vector<256x1xf32>
      %cst_52 = arith.constant 1.280000e+02 : f32
      %76 = vector.broadcast %cst_52 : f32 to vector<256x1xf32>
      %77 = arith.divf %75, %76 : vector<256x1xf32>
      %78 = vector.broadcast %77 : vector<256x1xf32> to vector<256x128xf32>
      %79 = arith.subf %73, %78 : vector<256x128xf32>
      %80 = arith.mulf %79, %79 : vector<256x128xf32>
      %cst_53 = arith.constant dense<0.000000e+00> : vector<256xf32>
      %81 = vector.multi_reduction <add>, %80, %cst_53 [1] : vector<256x128xf32> to vector<256xf32>
      %82 = vector.shape_cast %81 : vector<256xf32> to vector<256x1xf32>
      %cst_54 = arith.constant 1.280000e+02 : f32
      %83 = vector.broadcast %cst_54 : f32 to vector<256x1xf32>
      %84 = arith.divf %82, %83 : vector<256x1xf32>
      %cst_55 = arith.constant 9.99999974E-6 : f32
      %85 = vector.broadcast %cst_55 : f32 to vector<256x1xf32>
      %86 = arith.addf %84, %85 : vector<256x1xf32>
      %87 = math.rsqrt %86 : vector<256x1xf32>
      %88 = vector.broadcast %87 : vector<256x1xf32> to vector<256x128xf32>
      %89 = arith.mulf %79, %88 : vector<256x128xf32>
      %90 = vector.broadcast %10 : vector<1x128xf32> to vector<256x128xf32>
      %91 = arith.mulf %89, %90 : vector<256x128xf32>
      %92 = vector.broadcast %11 : vector<1x128xf32> to vector<256x128xf32>
      %93 = arith.addf %91, %92 : vector<256x128xf32>
      scf.yield %93 : vector<256x128xf32>
    }
    %17 = vector.extract_strided_slice %16 {offsets = [0, 0], sizes = [128, 128], strides = [1, 1]} : vector<256x128xf32> to vector<128x128xf32>
    %18 = vector.extract_strided_slice %16 {offsets = [128, 0], sizes = [128, 128], strides = [1, 1]} : vector<256x128xf32> to vector<128x128xf32>
    %19 = tpu.concatenate %17, %18 in 1 : vector<128x128xf32>, vector<128x128xf32> -> vector<128x256xf32>
    %c0_25 = arith.constant 0 : index
    %c0_26 = arith.constant 0 : index
    %20 = vector.load %arg13[%c0_25, %c0_26] : memref<256x512xf32, #tpu.memory_space<vmem>>, vector<256x512xf32>
    %cst_27 = arith.constant dense<0.000000e+00> : vector<128x512xf32>
    %21 = tpu.matmul %19, %20, %cst_27 {dimension_numbers = #tpu.dot_dimension_numbers<[1], [0], [0], [1], [0, 0, 1, 1], [], []>} : vector<128x256xf32>, vector<256x512xf32>, vector<128x512xf32> -> vector<128x512xf32>
    %c0_28 = arith.constant 0 : index
    %c0_29 = arith.constant 0 : index
    %22 = vector.load %arg14[%c0_28, %c0_29] : memref<1x512xf32, #tpu.memory_space<vmem>>, vector<1x512xf32>
    %23 = vector.broadcast %22 : vector<1x512xf32> to vector<128x512xf32>
    %24 = arith.addf %21, %23 : vector<128x512xf32>
    %cst_30 = arith.constant 0.000000e+00 : f32
    %25 = vector.broadcast %cst_30 : f32 to vector<128x512xf32>
    %26 = arith.maximumf %24, %25 : vector<128x512xf32>
    %c0_31 = arith.constant 0 : index
    %c0_32 = arith.constant 0 : index
    %27 = vector.load %arg15[%c0_31, %c0_32] : memref<512x128xf32, #tpu.memory_space<vmem>>, vector<512x128xf32>
    %cst_33 = arith.constant dense<0.000000e+00> : vector<128x128xf32>
    %28 = tpu.matmul %26, %27, %cst_33 {dimension_numbers = #tpu.dot_dimension_numbers<[1], [0], [0], [1], [0, 0, 1, 1], [], []>} : vector<128x512xf32>, vector<512x128xf32>, vector<128x128xf32> -> vector<128x128xf32>
    %c0_34 = arith.constant 0 : index
    %c0_35 = arith.constant 0 : index
    %29 = vector.load %arg16[%c0_34, %c0_35] : memref<1x128xf32, #tpu.memory_space<vmem>>, vector<1x128xf32>
    %30 = vector.broadcast %29 : vector<1x128xf32> to vector<128x128xf32>
    %31 = arith.addf %28, %30 : vector<128x128xf32>
    %c0_36 = arith.constant 0 : index
    %c0_37 = arith.constant 0 : index
    %32 = vector.load %arg17[%c0_36, %c0_37] : memref<128x128xf32, #tpu.memory_space<vmem>>, vector<128x128xf32>
    tpu.vector_store %arg17[%c0_36, %c0_37], %31 {strides = array<i32>} : memref<128x128xf32, #tpu.memory_space<vmem>>, vector<128x128xf32>,
    return
  }
}

</mosaic_0001>

<llo_original>
// kernel: rl_gnn1_forward.1
$region0: #{rl_gnn1_forward.1}
  #allocation0 [shape = 'u32[]', space=smem, size = 0x4, offset = 0x4, fixed_abs, tag = 'smem constant byte address 0x4 - core index']
  #allocation1 [shape = 'u32[144,128]{1,0:T(1,128)}', space=vmem, size = 0x12000, scoped, tag = 'internal scratch']
  %s0 = inlined_call_operand.vmem [shape: f32[256,256], index: 0, kind: input, shape index: {}]
  %s1 = inlined_call_operand.vmem [shape: f32[256,256], index: 1, kind: input, shape index: {}]
  %s2 = inlined_call_operand.vmem [shape: f32[1,128], index: 2, kind: input, shape index: {}]
  %s3 = inlined_call_operand.vmem [shape: f32[256,256], index: 3, kind: input, shape index: {}]
  %s4 = inlined_call_operand.vmem [shape: f32[1,256], index: 4, kind: input, shape index: {}]
  %s5 = inlined_call_operand.vmem [shape: f32[256,128], index: 5, kind: input, shape index: {}]
  %s6 = inlined_call_operand.vmem [shape: f32[1,128], index: 6, kind: input, shape index: {}]
  %s7 = inlined_call_operand.vmem [shape: f32[128,128], index: 7, kind: input, shape index: {}]
  %s8 = inlined_call_operand.vmem [shape: f32[1,128], index: 8, kind: input, shape index: {}]
  %s9 = inlined_call_operand.vmem [shape: f32[128,128], index: 9, kind: input, shape index: {}]
  %s10 = inlined_call_operand.vmem [shape: f32[1,128], index: 10, kind: input, shape index: {}]
  %s11 = inlined_call_operand.vmem [shape: f32[1,128], index: 11, kind: input, shape index: {}]
  %s12 = inlined_call_operand.vmem [shape: f32[1,128], index: 12, kind: input, shape index: {}]
  %s13 = inlined_call_operand.vmem [shape: f32[256,512], index: 13, kind: input, shape index: {}]
  %s14 = inlined_call_operand.vmem [shape: f32[1,512], index: 14, kind: input, shape index: {}]
  %s15 = inlined_call_operand.vmem [shape: f32[512,128], index: 15, kind: input, shape index: {}]
  %s16 = inlined_call_operand.vmem [shape: f32[1,128], index: 16, kind: input, shape index: {}]
  %s17 = inlined_call_operand.vmem [shape: f32[128,128], index: 17, kind: output, shape index: {}]
  %s18 = sld [smem:[#allocation0]]
  $region85: #{rl_gnn1_forward.1} parent=0
    _
  %s20 = ssub.s32 1, %s18
  %s21 = scalar_select 0, %s20, %s18
  // Predicated region
  $region2: #{rl_gnn1_forward.1} parent=0 // pred_check
    _
  $region3: #{rl_gnn1_forward.1} parent=0 // pred_check_branch
    %23 = sbr.rel (0) target = $region5
  $region4: #{rl_gnn1_forward.1} parent=0 // pred_region
    _
  $region5: #{rl_gnn1_forward.1} parent=0 // pred_fallthru
    _
  // Predicated region
  $region6: #{rl_gnn1_forward.1} parent=0 // pred_check
    _
  $region7: #{rl_gnn1_forward.1} parent=0 // pred_check_branch
    %25 = sbr.rel (0) target = $region9
  $region8: #{rl_gnn1_forward.1} parent=0 // pred_region
    _
  $region9: #{rl_gnn1_forward.1} parent=0 // pred_fallthru
    _
  // Predicated region
  $region10: #{rl_gnn1_forward.1} parent=0 // pred_check
    _
  $region11: #{rl_gnn1_forward.1} parent=0 // pred_check_branch
    %27 = sbr.rel (0) target = $region13
  $region12: #{rl_gnn1_forward.1} parent=0 // pred_region
    _
  $region13: #{rl_gnn1_forward.1} parent=0 // pred_fallthru
    _
  // Predicated region
  $region14: #{rl_gnn1_forward.1} parent=0 // pred_check
    _
  $region15: #{rl_gnn1_forward.1} parent=0 // pred_check_branch
    %29 = sbr.rel (0) target = $region17
  $region16: #{rl_gnn1_forward.1} parent=0 // pred_region
    _
  $region17: #{rl_gnn1_forward.1} parent=0 // pred_fallthru
    _
  // Predicated region
  $region18: #{rl_gnn1_forward.1} parent=0 // pred_check
    _
  $region19: #{rl_gnn1_forward.1} parent=0 // pred_check_branch
    %31 = sbr.rel (0) target = $region21
  $region20: #{rl_gnn1_forward.1} parent=0 // pred_region
    _
  $region21: #{rl_gnn1_forward.1} parent=0 // pred_fallthru
    _
  // Predicated region
  $region22: #{rl_gnn1_forward.1} parent=0 // pred_check
    _
  $region23: #{rl_gnn1_forward.1} parent=0 // pred_check_branch
    %33 = sbr.rel (0) target = $region25
  $region24: #{rl_gnn1_forward.1} parent=0 // pred_region
    _
  $region25: #{rl_gnn1_forward.1} parent=0 // pred_fallthru
    _
  // Predicated region
  $region26: #{rl_gnn1_forward.1} parent=0 // pred_check
    _
  $region27: #{rl_gnn1_forward.1} parent=0 // pred_check_branch
    %35 = sbr.rel (0) target = $region29
  $region28: #{rl_gnn1_forward.1} parent=0 // pred_region
    _
  $region29: #{rl_gnn1_forward.1} parent=0 // pred_fallthru
    _
  // Predicated region
  $region30: #{rl_gnn1_forward.1} parent=0 // pred_check
    _
  $region31: #{rl_gnn1_forward.1} parent=0 // pred_check_branch
    %37 = sbr.rel (0) target = $region33
  $region32: #{rl_gnn1_forward.1} parent=0 // pred_region
    _
  $region33: #{rl_gnn1_forward.1} parent=0 // pred_fallthru
    _
  // Predicated region
  $region34: #{rl_gnn1_forward.1} parent=0 // pred_check
    _
  $region35: #{rl_gnn1_forward.1} parent=0 // pred_check_branch
    %39 = sbr.rel (0) target = $region37
  $region36: #{rl_gnn1_forward.1} parent=0 // pred_region
    _
  $region37: #{rl_gnn1_forward.1} parent=0 // pred_fallthru
    _
  // Predicated region
  $region38: #{rl_gnn1_forward.1} parent=0 // pred_check
    _
  $region39: #{rl_gnn1_forward.1} parent=0 // pred_check_branch
    %41 = sbr.rel (0) target = $region41
  $region40: #{rl_gnn1_forward.1} parent=0 // pred_region
    _
  $region41: #{rl_gnn1_forward.1} parent=0 // pred_fallthru
    _
  // Predicated region
  $region42: #{rl_gnn1_forward.1} parent=0 // pred_check
    _
  $region43: #{rl_gnn1_forward.1} parent=0 // pred_check_branch
    %43 = sbr.rel (0) target = $region45
  $region44: #{rl_gnn1_forward.1} parent=0 // pred_region
    _
  $region45: #{rl_gnn1_forward.1} parent=0 // pred_fallthru
    _
  // Predicated region
  $region46: #{rl_gnn1_forward.1} parent=0 // pred_check
    _
  $region47: #{rl_gnn1_forward.1} parent=0 // pred_check_branch
    %45 = sbr.rel (0) target = $region49
  $region48: #{rl_gnn1_forward.1} parent=0 // pred_region
    _
  $region49: #{rl_gnn1_forward.1} parent=0 // pred_fallthru
    _
  // Predicated region
  $region50: #{rl_gnn1_forward.1} parent=0 // pred_check
    _
  $region51: #{rl_gnn1_forward.1} parent=0 // pred_check_branch
    %47 = sbr.rel (0) target = $region53
  $region52: #{rl_gnn1_forward.1} parent=0 // pred_region
    _
  $region53: #{rl_gnn1_forward.1} parent=0 // pred_fallthru
    _
  // Predicated region
  $region54: #{rl_gnn1_forward.1} parent=0 // pred_check
    _
  $region55: #{rl_gnn1_forward.1} parent=0 // pred_check_branch
    %49 = sbr.rel (0) target = $region57
  $region56: #{rl_gnn1_forward.1} parent=0 // pred_region
    _
  $region57: #{rl_gnn1_forward.1} parent=0 // pred_fallthru
    _
  // Predicated region
  $region58: #{rl_gnn1_forward.1} parent=0 // pred_check
    _
  $region59: #{rl_gnn1_forward.1} parent=0 // pred_check_branch
    %51 = sbr.rel (0) target = $region61
  $region60: #{rl_gnn1_forward.1} parent=0 // pred_region
    _
  $region61: #{rl_gnn1_forward.1} parent=0 // pred_fallthru
    _
  // Predicated region
  $region62: #{rl_gnn1_forward.1} parent=0 // pred_check
    _
  $region63: #{rl_gnn1_forward.1} parent=0 // pred_check_branch
    %53 = sbr.rel (0) target = $region65
  $region64: #{rl_gnn1_forward.1} parent=0 // pred_region
    _
  $region65: #{rl_gnn1_forward.1} parent=0 // pred_fallthru
    _
  // Predicated region
  $region66: #{rl_gnn1_forward.1} parent=0 // pred_check
    _
  $region67: #{rl_gnn1_forward.1} parent=0 // pred_check_branch
    %55 = sbr.rel (0) target = $region69
  $region68: #{rl_gnn1_forward.1} parent=0 // pred_region
    _
  $region69: #{rl_gnn1_forward.1} parent=0 // pred_fallthru
    _
  %v56 = vld [vmem:[%s0] sm:$0xff]
  %v57 = vld [vmem:[%s0 + $0x8] sm:$0xff]
  %v58 = vld [vmem:[%s0 + $0x10] sm:$0xff]
  %v59 = vld [vmem:[%s0 + $0x18] sm:$0xff]
  %v60 = vld [vmem:[%s0 + $0x20] sm:$0xff]
  %v61 = vld [vmem:[%s0 + $0x28] sm:$0xff]
  %v62 = vld [vmem:[%s0 + $0x30] sm:$0xff]
  %v63 = vld [vmem:[%s0 + $0x38] sm:$0xff]
  %v64 = vld [vmem:[%s0 + $0x40] sm:$0xff]
  %v65 = vld [vmem:[%s0 + $0x48] sm:$0xff]
  %v66 = vld [vmem:[%s0 + $0x50] sm:$0xff]
  %v67 = vld [vmem:[%s0 + $0x58] sm:$0xff]
  %v68 = vld [vmem:[%s0 + $0x60] sm:$0xff]
  %v69 = vld [vmem:[%s0 + $0x68] sm:$0xff]
  %v70 = vld [vmem:[%s0 + $0x70] sm:$0xff]
  %v71 = vld [vmem:[%s0 + $0x78] sm:$0xff]
  %v72 = vld [vmem:[%s0 + $0x80] sm:$0xff]
  %v73 = vld [vmem:[%s0 + $0x88] sm:$0xff]
  %v74 = vld [vmem:[%s0 + $0x90] sm:$0xff]
  %v75 = vld [vmem:[%s0 + $0x98] sm:$0xff]
  %v76 = vld [vmem:[%s0 + $0xa0] sm:$0xff]
  %v77 = vld [vmem:[%s0 + $0xa8] sm:$0xff]
  %v78 = vld [vmem:[%s0 + $0xb0] sm:$0xff]
  %v79 = vld [vmem:[%s0 + $0xb8] sm:$0xff]
  %v80 = vld [vmem:[%s0 + $0xc0] sm:$0xff]
  %v81 = vld [vmem:[%s0 + $0xc8] sm:$0xff]
  %v82 = vld [vmem:[%s0 + $0xd0] sm:$0xff]
  %v83 = vld [vmem:[%s0 + $0xd8] sm:$0xff]
  %v84 = vld [vmem:[%s0 + $0xe0] sm:$0xff]
  %v85 = vld [vmem:[%s0 + $0xe8] sm:$0xff]
  %v86 = vld [vmem:[%s0 + $0xf0] sm:$0xff]
  %v87 = vld [vmem:[%s0 + $0xf8] sm:$0xff]
  %v88 = vld [vmem:[%s0 + $0x100] sm:$0xff]
  %v89 = vld [vmem:[%s0 + $0x108] sm:$0xff]
  %v90 = vld [vmem:[%s0 + $0x110] sm:$0xff]
  %v91 = vld [vmem:[%s0 + $0x118] sm:$0xff]
  %v92 = vld [vmem:[%s0 + $0x120] sm:$0xff]
  %v93 = vld [vmem:[%s0 + $0x128] sm:$0xff]
  %v94 = vld [vmem:[%s0 + $0x130] sm:$0xff]
  %v95 = vld [vmem:[%s0 + $0x138] sm:$0xff]
  %v96 = vld [vmem:[%s0 + $0x140] sm:$0xff]
  %v97 = vld [vmem:[%s0 + $0x148] sm:$0xff]
  %v98 = vld [vmem:[%s0 + $0x150] sm:$0xff]
  %v99 = vld [vmem:[%s0 + $0x158] sm:$0xff]
  %v100 = vld [vmem:[%s0 + $0x160] sm:$0xff]
  %v101 = vld [vmem:[%s0 + $0x168] sm:$0xff]
  %v102 = vld [vmem:[%s0 + $0x170] sm:$0xff]
  %v103 = vld [vmem:[%s0 + $0x178] sm:$0xff]
  %v104 = vld [vmem:[%s0 + $0x180] sm:$0xff]
  %v105 = vld [vmem:[%s0 + $0x188] sm:$0xff]
  %v106 = vld [vmem:[%s0 + $0x190] sm:$0xff]
  %v107 = vld [vmem:[%s0 + $0x198] sm:$0xff]
  %v108 = vld [vmem:[%s0 + $0x1a0] sm:$0xff]
  %v109 = vld [vmem:[%s0 + $0x1a8] sm:$0xff]
  %v110 = vld [vmem:[%s0 + $0x1b0] sm:$0xff]
  %v111 = vld [vmem:[%s0 + $0x1b8] sm:$0xff]
  %v112 = vld [vmem:[%s0 + $0x1c0] sm:$0xff]
  %v113 = vld [vmem:[%s0 + $0x1c8] sm:$0xff]
  %v114 = vld [vmem:[%s0 + $0x1d0] sm:$0xff]
  %v115 = vld [vmem:[%s0 + $0x1d8] sm:$0xff]
  %v116 = vld [vmem:[%s0 + $0x1e0] sm:$0xff]
  %v117 = vld [vmem:[%s0 + $0x1e8] sm:$0xff]
  %v118 = vld [vmem:[%s0 + $0x1f0] sm:$0xff]
  %v119 = vld [vmem:[%s0 + $0x1f8] sm:$0xff]
  %v120 = vld [vmem:[%s1] sm:$0xff]
  %v121 = vld [vmem:[%s1 + $0x8] sm:$0xff]
  %v122 = vld [vmem:[%s1 + $0x10] sm:$0xff]
  %v123 = vld [vmem:[%s1 + $0x18] sm:$0xff]
  %v124 = vld [vmem:[%s1 + $0x20] sm:$0xff]
  %v125 = vld [vmem:[%s1 + $0x28] sm:$0xff]
  %v126 = vld [vmem:[%s1 + $0x30] sm:$0xff]
  %v127 = vld [vmem:[%s1 + $0x38] sm:$0xff]
  %v128 = vld [vmem:[%s1 + $0x40] sm:$0xff]
  %v129 = vld [vmem:[%s1 + $0x48] sm:$0xff]
  %v130 = vld [vmem:[%s1 + $0x50] sm:$0xff]
  %v131 = vld [vmem:[%s1 + $0x58] sm:$0xff]
  %v132 = vld [vmem:[%s1 + $0x60] sm:$0xff]
  %v133 = vld [vmem:[%s1 + $0x68] sm:$0xff]
  %v134 = vld [vmem:[%s1 + $0x70] sm:$0xff]
  %v135 = vld [vmem:[%s1 + $0x78] sm:$0xff]
  %v136 = vld [vmem:[%s1 + $0x80] sm:$0xff]
  %v137 = vld [vmem:[%s1 + $0x88] sm:$0xff]
  %v138 = vld [vmem:[%s1 + $0x90] sm:$0xff]
  %v139 = vld [vmem:[%s1 + $0x98] sm:$0xff]
  %v140 = vld [vmem:[%s1 + $0xa0] sm:$0xff]
  %v141 = vld [vmem:[%s1 + $0xa8] sm:$0xff]
  %v142 = vld [vmem:[%s1 + $0xb0] sm:$0xff]
  %v143 = vld [vmem:[%s1 + $0xb8] sm:$0xff]
  %v144 = vld [vmem:[%s1 + $0xc0] sm:$0xff]
  %v145 = vld [vmem:[%s1 + $0xc8] sm:$0xff]
  %v146 = vld [vmem:[%s1 + $0xd0] sm:$0xff]
  %v147 = vld [vmem:[%s1 + $0xd8] sm:$0xff]
  %v148 = vld [vmem:[%s1 + $0xe0] sm:$0xff]
  %v149 = vld [vmem:[%s1 + $0xe8] sm:$0xff]
  %v150 = vld [vmem:[%s1 + $0xf0] sm:$0xff]
  %v151 = vld [vmem:[%s1 + $0xf8] sm:$0xff]
  %v152 = vld [vmem:[%s1 + $0x100] sm:$0xff]
  %v153 = vld [vmem:[%s1 + $0x108] sm:$0xff]
  %v154 = vld [vmem:[%s1 + $0x110] sm:$0xff]
  %v155 = vld [vmem:[%s1 + $0x118] sm:$0xff]
  %v156 = vld [vmem:[%s1 + $0x120] sm:$0xff]
  %v157 = vld [vmem:[%s1 + $0x128] sm:$0xff]
  %v158 = vld [vmem:[%s1 + $0x130] sm:$0xff]
  %v159 = vld [vmem:[%s1 + $0x138] sm:$0xff]
  %v160 = vld [vmem:[%s1 + $0x140] sm:$0xff]
  %v161 = vld [vmem:[%s1 + $0x148] sm:$0xff]
  %v162 = vld [vmem:[%s1 + $0x150] sm:$0xff]
  %v163 = vld [vmem:[%s1 + $0x158] sm:$0xff]
  %v164 = vld [vmem:[%s1 + $0x160] sm:$0xff]
  %v165 = vld [vmem:[%s1 + $0x168] sm:$0xff]
  %v166 = vld [vmem:[%s1 + $0x170] sm:$0xff]
  %v167 = vld [vmem:[%s1 + $0x178] sm:$0xff]
  %v168 = vld [vmem:[%s1 + $0x180] sm:$0xff]
  %v169 = vld [vmem:[%s1 + $0x188] sm:$0xff]
  %v170 = vld [vmem:[%s1 + $0x190] sm:$0xff]
  %v171 = vld [vmem:[%s1 + $0x198] sm:$0xff]
  %v172 = vld [vmem:[%s1 + $0x1a0] sm:$0xff]
  %v173 = vld [vmem:[%s1 + $0x1a8] sm:$0xff]
  %v174 = vld [vmem:[%s1 + $0x1b0] sm:$0xff]
  %v175 = vld [vmem:[%s1 + $0x1b8] sm:$0xff]
  %v176 = vld [vmem:[%s1 + $0x1c0] sm:$0xff]
  %v177 = vld [vmem:[%s1 + $0x1c8] sm:$0xff]
  %v178 = vld [vmem:[%s1 + $0x1d0] sm:$0xff]
  %v179 = vld [vmem:[%s1 + $0x1d8] sm:$0xff]
  %v180 = vld [vmem:[%s1 + $0x1e0] sm:$0xff]
  %v181 = vld [vmem:[%s1 + $0x1e8] sm:$0xff]
  %v182 = vld [vmem:[%s1 + $0x1f0] sm:$0xff]
  %v183 = vld [vmem:[%s1 + $0x1f8] sm:$0xff]
  %v184 = vld [vmem:[%s3] sm:$0xff]
  %v185 = vld [vmem:[%s3 + $0x8] sm:$0xff]
  %v186 = vld [vmem:[%s3 + $0x10] sm:$0xff]
  %v187 = vld [vmem:[%s3 + $0x18] sm:$0xff]
  %v188 = vld [vmem:[%s3 + $0x20] sm:$0xff]
  %v189 = vld [vmem:[%s3 + $0x28] sm:$0xff]
  %v190 = vld [vmem:[%s3 + $0x30] sm:$0xff]
  %v191 = vld [vmem:[%s3 + $0x38] sm:$0xff]
  %v192 = vld [vmem:[%s3 + $0x40] sm:$0xff]
  %v193 = vld [vmem:[%s3 + $0x48] sm:$0xff]
  %v194 = vld [vmem:[%s3 + $0x50] sm:$0xff]
  %v195 = vld [vmem:[%s3 + $0x58] sm:$0xff]
  %v196 = vld [vmem:[%s3 + $0x60] sm:$0xff]
  %v197 = vld [vmem:[%s3 + $0x68] sm:$0xff]
  %v198 = vld [vmem:[%s3 + $0x70] sm:$0xff]
  %v199 = vld [vmem:[%s3 + $0x78] sm:$0xff]
  %v200 = vld [vmem:[%s3 + $0x80] sm:$0xff]
  %v201 = vld [vmem:[%s3 + $0x88] sm:$0xff]
  %v202 = vld [vmem:[%s3 + $0x90] sm:$0xff]
  %v203 = vld [vmem:[%s3 + $0x98] sm:$0xff]
  %v204 = vld [vmem:[%s3 + $0xa0] sm:$0xff]
  %v205 = vld [vmem:[%s3 + $0xa8] sm:$0xff]
  %v206 = vld [vmem:[%s3 + $0xb0] sm:$0xff]
  %v207 = vld [vmem:[%s3 + $0xb8] sm:$0xff]
  %v208 = vld [vmem:[%s3 + $0xc0] sm:$0xff]
  %v209 = vld [vmem:[%s3 + $0xc8] sm:$0xff]
  %v210 = vld [vmem:[%s3 + $0xd0] sm:$0xff]
  %v211 = vld [vmem:[%s3 + $0xd8] sm:$0xff]
  %v212 = vld [vmem:[%s3 + $0xe0] sm:$0xff]
  %v213 = vld [vmem:[%s3 + $0xe8] sm:$0xff]
  %v214 = vld [vmem:[%s3 + $0xf0] sm:$0xff]
  %v215 = vld [vmem:[%s3 + $0xf8] sm:$0xff]
  %v216 = vld [vmem:[%s3 + $0x100] sm:$0xff]
  %v217 = vld [vmem:[%s3 + $0x108] sm:$0xff]
  %v218 = vld [vmem:[%s3 + $0x110] sm:$0xff]
  %v219 = vld [vmem:[%s3 + $0x118] sm:$0xff]
  %v220 = vld [vmem:[%s3 + $0x120] sm:$0xff]
  %v221 = vld [vmem:[%s3 + $0x128] sm:$0xff]
  %v222 = vld [vmem:[%s3 + $0x130] sm:$0xff]
  %v223 = vld [vmem:[%s3 + $0x138] sm:$0xff]
  %v224 = vld [vmem:[%s3 + $0x140] sm:$0xff]
  %v225 = vld [vmem:[%s3 + $0x148] sm:$0xff]
  %v226 = vld [vmem:[%s3 + $0x150] sm:$0xff]
  %v227 = vld [vmem:[%s3 + $0x158] sm:$0xff]
  %v228 = vld [vmem:[%s3 + $0x160] sm:$0xff]
  %v229 = vld [vmem:[%s3 + $0x168] sm:$0xff]
  %v230 = vld [vmem:[%s3 + $0x170] sm:$0xff]
  %v231 = vld [vmem:[%s3 + $0x178] sm:$0xff]
  %v232 = vld [vmem:[%s3 + $0x180] sm:$0xff]
  %v233 = vld [vmem:[%s3 + $0x188] sm:$0xff]
  %v234 = vld [vmem:[%s3 + $0x190] sm:$0xff]
  %v235 = vld [vmem:[%s3 + $0x198] sm:$0xff]
  %v236 = vld [vmem:[%s3 + $0x1a0] sm:$0xff]
  %v237 = vld [vmem:[%s3 + $0x1a8] sm:$0xff]
  %v238 = vld [vmem:[%s3 + $0x1b0] sm:$0xff]
  %v239 = vld [vmem:[%s3 + $0x1b8] sm:$0xff]
  %v240 = vld [vmem:[%s3 + $0x1c0] sm:$0xff]
  %v241 = vld [vmem:[%s3 + $0x1c8] sm:$0xff]
  %v242 = vld [vmem:[%s3 + $0x1d0] sm:$0xff]
  %v243 = vld [vmem:[%s3 + $0x1d8] sm:$0xff]
  %v244 = vld [vmem:[%s3 + $0x1e0] sm:$0xff]
  %v245 = vld [vmem:[%s3 + $0x1e8] sm:$0xff]
  %v246 = vld [vmem:[%s3 + $0x1f0] sm:$0xff]
  %v247 = vld [vmem:[%s3 + $0x1f8] sm:$0xff]
  %v248 = vld [vmem:[%s4] sm:$0x3]
  %v249 = vld [vmem:[%s5] sm:$0xff]
  %v250 = vld [vmem:[%s5 + $0x8] sm:$0xff]
  %v251 = vld [vmem:[%s5 + $0x10] sm:$0xff]
  %v252 = vld [vmem:[%s5 + $0x18] sm:$0xff]
  %v253 = vld [vmem:[%s5 + $0x20] sm:$0xff]
  %v254 = vld [vmem:[%s5 + $0x28] sm:$0xff]
  %v255 = vld [vmem:[%s5 + $0x30] sm:$0xff]
  %v256 = vld [vmem:[%s5 + $0x38] sm:$0xff]
  %v257 = vld [vmem:[%s5 + $0x40] sm:$0xff]
  %v258 = vld [vmem:[%s5 + $0x48] sm:$0xff]
  %v259 = vld [vmem:[%s5 + $0x50] sm:$0xff]
  %v260 = vld [vmem:[%s5 + $0x58] sm:$0xff]
  %v261 = vld [vmem:[%s5 + $0x60] sm:$0xff]
  %v262 = vld [vmem:[%s5 + $0x68] sm:$0xff]
  %v263 = vld [vmem:[%s5 + $0x70] sm:$0xff]
  %v264 = vld [vmem:[%s5 + $0x78] sm:$0xff]
  %v265 = vld [vmem:[%s5 + $0x80] sm:$0xff]
  %v266 = vld [vmem:[%s5 + $0x88] sm:$0xff]
  %v267 = vld [vmem:[%s5 + $0x90] sm:$0xff]
  %v268 = vld [vmem:[%s5 + $0x98] sm:$0xff]
  %v269 = vld [vmem:[%s5 + $0xa0] sm:$0xff]
  %v270 = vld [vmem:[%s5 + $0xa8] sm:$0xff]
  %v271 = vld [vmem:[%s5 + $0xb0] sm:$0xff]
  %v272 = vld [vmem:[%s5 + $0xb8] sm:$0xff]
  %v273 = vld [vmem:[%s5 + $0xc0] sm:$0xff]
  %v274 = vld [vmem:[%s5 + $0xc8] sm:$0xff]
  %v275 = vld [vmem:[%s5 + $0xd0] sm:$0xff]
  %v276 = vld [vmem:[%s5 + $0xd8] sm:$0xff]
  %v277 = vld [vmem:[%s5 + $0xe0] sm:$0xff]
  %v278 = vld [vmem:[%s5 + $0xe8] sm:$0xff]
  %v279 = vld [vmem:[%s5 + $0xf0] sm:$0xff]
  %v280 = vld [vmem:[%s5 + $0xf8] sm:$0xff]
  %v281 = vld [vmem:[%s6] sm:$0x1]
  %v282 = vld [vmem:[%s7] sm:$0xff]
  %v283 = vld [vmem:[%s7 + $0x8] sm:$0xff]
  %v284 = vld [vmem:[%s7 + $0x10] sm:$0xff]
  %v285 = vld [vmem:[%s7 + $0x18] sm:$0xff]
  %v286 = vld [vmem:[%s7 + $0x20] sm:$0xff]
  %v287 = vld [vmem:[%s7 + $0x28] sm:$0xff]
  %v288 = vld [vmem:[%s7 + $0x30] sm:$0xff]
  %v289 = vld [vmem:[%s7 + $0x38] sm:$0xff]
  %v290 = vld [vmem:[%s7 + $0x40] sm:$0xff]
  %v291 = vld [vmem:[%s7 + $0x48] sm:$0xff]
  %v292 = vld [vmem:[%s7 + $0x50] sm:$0xff]
  %v293 = vld [vmem:[%s7 + $0x58] sm:$0xff]
  %v294 = vld [vmem:[%s7 + $0x60] sm:$0xff]
  %v295 = vld [vmem:[%s7 + $0x68] sm:$0xff]
  %v296 = vld [vmem:[%s7 + $0x70] sm:$0xff]
  %v297 = vld [vmem:[%s7 + $0x78] sm:$0xff]
  %v298 = vld [vmem:[%s8] sm:$0x1]
  %v299 = vld [vmem:[%s9] sm:$0xff]
  %v300 = vld [vmem:[%s9 + $0x8] sm:$0xff]
  %v301 = vld [vmem:[%s9 + $0x10] sm:$0xff]
  %v302 = vld [vmem:[%s9 + $0x18] sm:$0xff]
  %v303 = vld [vmem:[%s9 + $0x20] sm:$0xff]
  %v304 = vld [vmem:[%s9 + $0x28] sm:$0xff]
  %v305 = vld [vmem:[%s9 + $0x30] sm:$0xff]
  %v306 = vld [vmem:[%s9 + $0x38] sm:$0xff]
  %v307 = vld [vmem:[%s9 + $0x40] sm:$0xff]
  %v308 = vld [vmem:[%s9 + $0x48] sm:$0xff]
  %v309 = vld [vmem:[%s9 + $0x50] sm:$0xff]
  %v310 = vld [vmem:[%s9 + $0x58] sm:$0xff]
  %v311 = vld [vmem:[%s9 + $0x60] sm:$0xff]
  %v312 = vld [vmem:[%s9 + $0x68] sm:$0xff]
  %v313 = vld [vmem:[%s9 + $0x70] sm:$0xff]
  %v314 = vld [vmem:[%s9 + $0x78] sm:$0xff]
  %v315 = vld [vmem:[%s10] sm:$0x1]
  %v316 = vld [vmem:[%s11] sm:$0x1]
  %v317 = vld [vmem:[%s12] sm:$0x1]
  %v318 = vld [vmem:[%s2] sm:$0x1]
  %v320 = vlaneseq
  %v321 = vshrl.u32 %v320, 7
  %v322 = vsub.s32 0, %v321
  %v323 = vrot.slane %v318, %v322
  loop: start=0, step=1, limit=2
  $region70: #{rl_gnn1_forward.1} parent=0 // loop_pre_header
    _
  $region71: #{rl_gnn1_forward.1} parent=0 // loop_header
    %s326 = sphi 0, %s330
    %p327 = scmp.ge.s32.totalorder %s326, 2
    %v331 = vphi %v323, %v2538
    %v332 = vphi %v323, %v2539
    %v333 = vphi %v323, %v2540
    %v334 = vphi %v323, %v2541
    %v335 = vphi %v323, %v2542
    %v336 = vphi %v323, %v2543
    %v337 = vphi %v323, %v2544
    %v338 = vphi %v323, %v2545
    %v339 = vphi %v323, %v2546
    %v340 = vphi %v323, %v2547
    %v341 = vphi %v323, %v2548
    %v342 = vphi %v323, %v2549
    %v343 = vphi %v323, %v2550
    %v344 = vphi %v323, %v2551
    %v345 = vphi %v323, %v2552
    %v346 = vphi %v323, %v2553
    %v347 = vphi %v323, %v2554
    %v348 = vphi %v323, %v2555
    %v349 = vphi %v323, %v2556
    %v350 = vphi %v323, %v2557
    %v351 = vphi %v323, %v2558
    %v352 = vphi %v323, %v2559
    %v353 = vphi %v323, %v2560
    %v354 = vphi %v323, %v2561
    %v355 = vphi %v323, %v2562
    %v356 = vphi %v323, %v2563
    %v357 = vphi %v323, %v2564
    %v358 = vphi %v323, %v2565
    %v359 = vphi %v323, %v2566
    %v360 = vphi %v323, %v2567
    %v361 = vphi %v323, %v2568
    %v362 = vphi %v323, %v2569
  $region72: #{rl_gnn1_forward.1} parent=0 // loop_header_branch
    %329 = sbr.rel (%p327) target = $region76
  $region73: #{rl_gnn1_forward.1} parent=0 // loop_body
    %363 = vmatprep.subr.mxu0 %v362
    %364 = vmatpush1.msra.mxu0 %v346
    %365 = vmatprep.subr.mxu0 %v361
    %366 = vmatpush1.msra.mxu0 %v345
    %367 = vmatprep.subr.mxu0 %v360
    %368 = vmatpush1.msra.mxu0 %v344
    %369 = vmatprep.subr.mxu0 %v359
    %370 = vmatpush1.msra.mxu0 %v343
    %371 = vmatprep.subr.mxu0 %v358
    %372 = vmatpush1.msra.mxu0 %v342
    %373 = vmatprep.subr.mxu0 %v357
    %374 = vmatpush1.msra.mxu0 %v341
    %375 = vmatprep.subr.mxu0 %v356
    %376 = vmatpush1.msra.mxu0 %v340
    %377 = vmatprep.subr.mxu0 %v355
    %378 = vmatpush1.msra.mxu0 %v339
    %379 = vmatprep.subr.mxu0 %v354
    %380 = vmatpush1.msra.mxu0 %v338
    %381 = vmatprep.subr.mxu0 %v353
    %382 = vmatpush1.msra.mxu0 %v337
    %383 = vmatprep.subr.mxu0 %v352
    %384 = vmatpush1.msra.mxu0 %v336
    %385 = vmatprep.subr.mxu0 %v351
    %386 = vmatpush1.msra.mxu0 %v335
    %387 = vmatprep.subr.mxu0 %v350
    %388 = vmatpush1.msra.mxu0 %v334
    %389 = vmatprep.subr.mxu0 %v349
    %390 = vmatpush1.msra.mxu0 %v333
    %391 = vmatprep.subr.mxu0 %v348
    %392 = vmatpush1.msra.mxu0 %v332
    %393 = vmatprep.subr.mxu0 %v347
    %394 = vmatpush1.msra.mxu0 %v331
    %395 = vmatprep.subr.mxu0 %v346
    %396 = vmatpush2.msra.mxu0 %v362
    %397 = vmatprep.subr.mxu0 %v345
    %398 = vmatpush2.msra.mxu0 %v361
    %399 = vmatprep.subr.mxu0 %v344
    %400 = vmatpush2.msra.mxu0 %v360
    %401 = vmatprep.subr.mxu0 %v343
    %402 = vmatpush2.msra.mxu0 %v359
    %403 = vmatprep.subr.mxu0 %v342
    %404 = vmatpush2.msra.mxu0 %v358
    %405 = vmatprep.subr.mxu0 %v341
    %406 = vmatpush2.msra.mxu0 %v357
    %407 = vmatprep.subr.mxu0 %v340
    %408 = vmatpush2.msra.mxu0 %v356
    %409 = vmatprep.subr.mxu0 %v339
    %410 = vmatpush2.msra.mxu0 %v355
    %411 = vmatprep.subr.mxu0 %v338
    %412 = vmatpush2.msra.mxu0 %v354
    %413 = vmatprep.subr.mxu0 %v337
    %414 = vmatpush2.msra.mxu0 %v353
    %415 = vmatprep.subr.mxu0 %v336
    %416 = vmatpush2.msra.mxu0 %v352
    %417 = vmatprep.subr.mxu0 %v335
    %418 = vmatpush2.msra.mxu0 %v351
    %419 = vmatprep.subr.mxu0 %v334
    %420 = vmatpush2.msra.mxu0 %v350
    %421 = vmatprep.subr.mxu0 %v333
    %422 = vmatpush2.msra.mxu0 %v349
    %423 = vmatprep.subr.mxu0 %v332
    %424 = vmatpush2.msra.mxu0 %v348
    %425 = vmatprep.subr.mxu0 %v331
    %426 = vmatpush2.msra.mxu0 %v347
    %427 = vmatprep.mubr.f32.mxu0 %v57
    %428 = vmatmul.mubr.f32.gmra.mxu0 %v56
    %v429 = vpop.f32.mrf.mxu0
    %v430 = vadd.f32 0.0, %v429
    %v431 = vpop.f32.mrf.mxu0
    %v432 = vadd.f32 0.0, %v431
    %433 = vmatprep.mubr.f32.mxu0 %v59
    %434 = vmatmul.mubr.f32.gmra.mxu0 %v58
    %v435 = vpop.f32.mrf.mxu0
    %v436 = vadd.f32 0.0, %v435
    %v437 = vpop.f32.mrf.mxu0
    %v438 = vadd.f32 0.0, %v437
    %439 = vmatprep.mubr.f32.mxu0 %v61
    %440 = vmatmul.mubr.f32.gmra.mxu0 %v60
    %v441 = vpop.f32.mrf.mxu0
    %v442 = vadd.f32 0.0, %v441
    %v443 = vpop.f32.mrf.mxu0
    %v444 = vadd.f32 0.0, %v443
    %445 = vmatprep.mubr.f32.mxu0 %v63
    %446 = vmatmul.mubr.f32.gmra.mxu0 %v62
    %v447 = vpop.f32.mrf.mxu0
    %v448 = vadd.f32 0.0, %v447
    %v449 = vpop.f32.mrf.mxu0
    %v450 = vadd.f32 0.0, %v449
    %451 = vmatprep.mubr.f32.mxu0 %v65
    %452 = vmatmul.mubr.f32.gmra.mxu0 %v64
    %v453 = vpop.f32.mrf.mxu0
    %v454 = vadd.f32 0.0, %v453
    %v455 = vpop.f32.mrf.mxu0
    %v456 = vadd.f32 0.0, %v455
    %457 = vmatprep.mubr.f32.mxu0 %v67
    %458 = vmatmul.mubr.f32.gmra.mxu0 %v66
    %v459 = vpop.f32.mrf.mxu0
    %v460 = vadd.f32 0.0, %v459
    %v461 = vpop.f32.mrf.mxu0
    %v462 = vadd.f32 0.0, %v461
    %463 = vmatprep.mubr.f32.mxu0 %v69
    %464 = vmatmul.mubr.f32.gmra.mxu0 %v68
    %v465 = vpop.f32.mrf.mxu0
    %v466 = vadd.f32 0.0, %v465
    %v467 = vpop.f32.mrf.mxu0
    %v468 = vadd.f32 0.0, %v467
    %469 = vmatprep.mubr.f32.mxu0 %v71
    %470 = vmatmul.mubr.f32.gmra.mxu0 %v70
    %v471 = vpop.f32.mrf.mxu0
    %v472 = vadd.f32 0.0, %v471
    %v473 = vpop.f32.mrf.mxu0
    %v474 = vadd.f32 0.0, %v473
    %475 = vmatprep.mubr.f32.mxu0 %v73
    %476 = vmatmul.mubr.f32.gmra.mxu0 %v72
    %v477 = vpop.f32.mrf.mxu0
    %v478 = vadd.f32 0.0, %v477
    %v479 = vpop.f32.mrf.mxu0
    %v480 = vadd.f32 0.0, %v479
    %481 = vmatprep.mubr.f32.mxu0 %v75
    %482 = vmatmul.mubr.f32.gmra.mxu0 %v74
    %v483 = vpop.f32.mrf.mxu0
    %v484 = vadd.f32 0.0, %v483
    %v485 = vpop.f32.mrf.mxu0
    %v486 = vadd.f32 0.0, %v485
    %487 = vmatprep.mubr.f32.mxu0 %v77
    %488 = vmatmul.mubr.f32.gmra.mxu0 %v76
    %v489 = vpop.f32.mrf.mxu0
    %v490 = vadd.f32 0.0, %v489
    %v491 = vpop.f32.mrf.mxu0
    %v492 = vadd.f32 0.0, %v491
    %493 = vmatprep.mubr.f32.mxu0 %v79
    %494 = vmatmul.mubr.f32.gmra.mxu0 %v78
    %v495 = vpop.f32.mrf.mxu0
    %v496 = vadd.f32 0.0, %v495
    %v497 = vpop.f32.mrf.mxu0
    %v498 = vadd.f32 0.0, %v497
    %499 = vmatprep.mubr.f32.mxu0 %v81
    %500 = vmatmul.mubr.f32.gmra.mxu0 %v80
    %v501 = vpop.f32.mrf.mxu0
    %v502 = vadd.f32 0.0, %v501
    %v503 = vpop.f32.mrf.mxu0
    %v504 = vadd.f32 0.0, %v503
    %505 = vmatprep.mubr.f32.mxu0 %v83
    %506 = vmatmul.mubr.f32.gmra.mxu0 %v82
    %v507 = vpop.f32.mrf.mxu0
    %v508 = vadd.f32 0.0, %v507
    %v509 = vpop.f32.mrf.mxu0
    %v510 = vadd.f32 0.0, %v509
    %511 = vmatprep.mubr.f32.mxu0 %v85
    %512 = vmatmul.mubr.f32.gmra.mxu0 %v84
    %v513 = vpop.f32.mrf.mxu0
    %v514 = vadd.f32 0.0, %v513
    %v515 = vpop.f32.mrf.mxu0
    %v516 = vadd.f32 0.0, %v515
    %517 = vmatprep.mubr.f32.mxu0 %v87
    %518 = vmatmul.mubr.f32.gmra.mxu0 %v86
    %v519 = vpop.f32.mrf.mxu0
    %v520 = vadd.f32 0.0, %v519
    %v521 = vpop.f32.mrf.mxu0
    %v522 = vadd.f32 0.0, %v521
    %523 = vmatprep.mubr.f32.mxu0 %v89
    %524 = vmatmul.mubr.f32.gmra.mxu0 %v88
    %v525 = vpop.f32.mrf.mxu0
    %v526 = vadd.f32 0.0, %v525
    %v527 = vpop.f32.mrf.mxu0
    %v528 = vadd.f32 0.0, %v527
    %529 = vmatprep.mubr.f32.mxu0 %v91
    %530 = vmatmul.mubr.f32.gmra.mxu0 %v90
    %v531 = vpop.f32.mrf.mxu0
    %v532 = vadd.f32 0.0, %v531
    %v533 = vpop.f32.mrf.mxu0
    %v534 = vadd.f32 0.0, %v533
    %535 = vmatprep.mubr.f32.mxu0 %v93
    %536 = vmatmul.mubr.f32.gmra.mxu0 %v92
    %v537 = vpop.f32.mrf.mxu0
    %v538 = vadd.f32 0.0, %v537
    %v539 = vpop.f32.mrf.mxu0
    %v540 = vadd.f32 0.0, %v539
    %541 = vmatprep.mubr.f32.mxu0 %v95
    %542 = vmatmul.mubr.f32.gmra.mxu0 %v94
    %v543 = vpop.f32.mrf.mxu0
    %v544 = vadd.f32 0.0, %v543
    %v545 = vpop.f32.mrf.mxu0
    %v546 = vadd.f32 0.0, %v545
    %547 = vmatprep.mubr.f32.mxu0 %v97
    %548 = vmatmul.mubr.f32.gmra.mxu0 %v96
    %v549 = vpop.f32.mrf.mxu0
    %v550 = vadd.f32 0.0, %v549
    %v551 = vpop.f32.mrf.mxu0
    %v552 = vadd.f32 0.0, %v551
    %553 = vmatprep.mubr.f32.mxu0 %v99
    %554 = vmatmul.mubr.f32.gmra.mxu0 %v98
    %v555 = vpop.f32.mrf.mxu0
    %v556 = vadd.f32 0.0, %v555
    %v557 = vpop.f32.mrf.mxu0
    %v558 = vadd.f32 0.0, %v557
    %559 = vmatprep.mubr.f32.mxu0 %v101
    %560 = vmatmul.mubr.f32.gmra.mxu0 %v100
    %v561 = vpop.f32.mrf.mxu0
    %v562 = vadd.f32 0.0, %v561
    %v563 = vpop.f32.mrf.mxu0
    %v564 = vadd.f32 0.0, %v563
    %565 = vmatprep.mubr.f32.mxu0 %v103
    %566 = vmatmul.mubr.f32.gmra.mxu0 %v102
    %v567 = vpop.f32.mrf.mxu0
    %v568 = vadd.f32 0.0, %v567
    %v569 = vpop.f32.mrf.mxu0
    %v570 = vadd.f32 0.0, %v569
    %571 = vmatprep.mubr.f32.mxu0 %v105
    %572 = vmatmul.mubr.f32.gmra.mxu0 %v104
    %v573 = vpop.f32.mrf.mxu0
    %v574 = vadd.f32 0.0, %v573
    %v575 = vpop.f32.mrf.mxu0
    %v576 = vadd.f32 0.0, %v575
    %577 = vmatprep.mubr.f32.mxu0 %v107
    %578 = vmatmul.mubr.f32.gmra.mxu0 %v106
    %v579 = vpop.f32.mrf.mxu0
    %v580 = vadd.f32 0.0, %v579
    %v581 = vpop.f32.mrf.mxu0
    %v582 = vadd.f32 0.0, %v581
    %583 = vmatprep.mubr.f32.mxu0 %v109
    %584 = vmatmul.mubr.f32.gmra.mxu0 %v108
    %v585 = vpop.f32.mrf.mxu0
    %v586 = vadd.f32 0.0, %v585
    %v587 = vpop.f32.mrf.mxu0
    %v588 = vadd.f32 0.0, %v587
    %589 = vmatprep.mubr.f32.mxu0 %v111
    %590 = vmatmul.mubr.f32.gmra.mxu0 %v110
    %v591 = vpop.f32.mrf.mxu0
    %v592 = vadd.f32 0.0, %v591
    %v593 = vpop.f32.mrf.mxu0
    %v594 = vadd.f32 0.0, %v593
    %595 = vmatprep.mubr.f32.mxu0 %v113
    %596 = vmatmul.mubr.f32.gmra.mxu0 %v112
    %v597 = vpop.f32.mrf.mxu0
    %v598 = vadd.f32 0.0, %v597
    %v599 = vpop.f32.mrf.mxu0
    %v600 = vadd.f32 0.0, %v599
    %601 = vmatprep.mubr.f32.mxu0 %v115
    %602 = vmatmul.mubr.f32.gmra.mxu0 %v114
    %v603 = vpop.f32.mrf.mxu0
    %v604 = vadd.f32 0.0, %v603
    %v605 = vpop.f32.mrf.mxu0
    %v606 = vadd.f32 0.0, %v605
    %607 = vmatprep.mubr.f32.mxu0 %v117
    %608 = vmatmul.mubr.f32.gmra.mxu0 %v116
    %v609 = vpop.f32.mrf.mxu0
    %v610 = vadd.f32 0.0, %v609
    %v611 = vpop.f32.mrf.mxu0
    %v612 = vadd.f32 0.0, %v611
    %613 = vmatprep.mubr.f32.mxu0 %v119
    %614 = vmatmul.mubr.f32.gmra.mxu0 %v118
    %v615 = vpop.f32.mrf.mxu0
    %v616 = vadd.f32 0.0, %v615
    %v617 = vpop.f32.mrf.mxu0
    %v618 = vadd.f32 0.0, %v617
    %619 = vdwg.mxu0
    %v621 = vlaneseq
    %v622 = vshrl.u32 %v621, 7
    %v623 = vsub.s32 0, %v622
    %v624 = vrot.slane %v248, %v623
    %v625 = vlaneseq
    %v626 = vshrl.u32 %v625, 7
    %v627 = vsub.s32 1, %v626
    %v628 = vrot.slane %v248, %v627
    %631 = vmatprep.subr.mxu0 %v215
    %632 = vmatpush1.msra.mxu0 %v214
    %633 = vmatprep.subr.mxu0 %v213
    %634 = vmatpush1.msra.mxu0 %v212
    %635 = vmatprep.subr.mxu0 %v211
    %636 = vmatpush1.msra.mxu0 %v210
    %637 = vmatprep.subr.mxu0 %v209
    %638 = vmatpush1.msra.mxu0 %v208
    %639 = vmatprep.subr.mxu0 %v207
    %640 = vmatpush1.msra.mxu0 %v206
    %641 = vmatprep.subr.mxu0 %v205
    %642 = vmatpush1.msra.mxu0 %v204
    %643 = vmatprep.subr.mxu0 %v203
    %644 = vmatpush1.msra.mxu0 %v202
    %645 = vmatprep.subr.mxu0 %v201
    %646 = vmatpush1.msra.mxu0 %v200
    %647 = vmatprep.subr.mxu0 %v199
    %648 = vmatpush1.msra.mxu0 %v198
    %649 = vmatprep.subr.mxu0 %v197
    %650 = vmatpush1.msra.mxu0 %v196
    %651 = vmatprep.subr.mxu0 %v195
    %652 = vmatpush1.msra.mxu0 %v194
    %653 = vmatprep.subr.mxu0 %v193
    %654 = vmatpush1.msra.mxu0 %v192
    %655 = vmatprep.subr.mxu0 %v191
    %656 = vmatpush1.msra.mxu0 %v190
    %657 = vmatprep.subr.mxu0 %v189
    %658 = vmatpush1.msra.mxu0 %v188
    %659 = vmatprep.subr.mxu0 %v187
    %660 = vmatpush1.msra.mxu0 %v186
    %661 = vmatprep.subr.mxu0 %v185
    %662 = vmatpush1.msra.mxu0 %v184
    %663 = vmatprep.subr.mxu0 %v247
    %664 = vmatpush2.msra.mxu0 %v246
    %665 = vmatprep.subr.mxu0 %v245
    %666 = vmatpush2.msra.mxu0 %v244
    %667 = vmatprep.subr.mxu0 %v243
    %668 = vmatpush2.msra.mxu0 %v242
    %669 = vmatprep.subr.mxu0 %v241
    %670 = vmatpush2.msra.mxu0 %v240
    %671 = vmatprep.subr.mxu0 %v239
    %672 = vmatpush2.msra.mxu0 %v238
    %673 = vmatprep.subr.mxu0 %v237
    %674 = vmatpush2.msra.mxu0 %v236
    %675 = vmatprep.subr.mxu0 %v235
    %676 = vmatpush2.msra.mxu0 %v234
    %677 = vmatprep.subr.mxu0 %v233
    %678 = vmatpush2.msra.mxu0 %v232
    %679 = vmatprep.subr.mxu0 %v231
    %680 = vmatpush2.msra.mxu0 %v230
    %681 = vmatprep.subr.mxu0 %v229
    %682 = vmatpush2.msra.mxu0 %v228
    %683 = vmatprep.subr.mxu0 %v227
    %684 = vmatpush2.msra.mxu0 %v226
    %685 = vmatprep.subr.mxu0 %v225
    %686 = vmatpush2.msra.mxu0 %v224
    %687 = vmatprep.subr.mxu0 %v223
    %688 = vmatpush2.msra.mxu0 %v222
    %689 = vmatprep.subr.mxu0 %v221
    %690 = vmatpush2.msra.mxu0 %v220
    %691 = vmatprep.subr.mxu0 %v219
    %692 = vmatpush2.msra.mxu0 %v218
    %693 = vmatprep.subr.mxu0 %v217
    %694 = vmatpush2.msra.mxu0 %v216
    %695 = vmatprep.mubr.f32.mxu0 %v432
    %696 = vmatmul.mubr.f32.gmra.mxu0 %v430
    %v697 = vpop.f32.mrf.mxu0
    %v698 = vadd.f32 %v624, %v697
    %v699 = vpop.f32.mrf.mxu0
    %v700 = vadd.f32 %v628, %v699
    %701 = vmatprep.mubr.f32.mxu0 %v438
    %702 = vmatmul.mubr.f32.gmra.mxu0 %v436
    %v703 = vpop.f32.mrf.mxu0
    %v704 = vadd.f32 %v624, %v703
    %v705 = vpop.f32.mrf.mxu0
    %v706 = vadd.f32 %v628, %v705
    %707 = vmatprep.mubr.f32.mxu0 %v444
    %708 = vmatmul.mubr.f32.gmra.mxu0 %v442
    %v709 = vpop.f32.mrf.mxu0
    %v710 = vadd.f32 %v624, %v709
    %v711 = vpop.f32.mrf.mxu0
    %v712 = vadd.f32 %v628, %v711
    %713 = vmatprep.mubr.f32.mxu0 %v450
    %714 = vmatmul.mubr.f32.gmra.mxu0 %v448
    %v715 = vpop.f32.mrf.mxu0
    %v716 = vadd.f32 %v624, %v715
    %v717 = vpop.f32.mrf.mxu0
    %v718 = vadd.f32 %v628, %v717
    %719 = vmatprep.mubr.f32.mxu0 %v456
    %720 = vmatmul.mubr.f32.gmra.mxu0 %v454
    %v721 = vpop.f32.mrf.mxu0
    %v722 = vadd.f32 %v624, %v721
    %v723 = vpop.f32.mrf.mxu0
    %v724 = vadd.f32 %v628, %v723
    %725 = vmatprep.mubr.f32.mxu0 %v462
    %726 = vmatmul.mubr.f32.gmra.mxu0 %v460
    %v727 = vpop.f32.mrf.mxu0
    %v728 = vadd.f32 %v624, %v727
    %v729 = vpop.f32.mrf.mxu0
    %v730 = vadd.f32 %v628, %v729
    %731 = vmatprep.mubr.f32.mxu0 %v468
    %732 = vmatmul.mubr.f32.gmra.mxu0 %v466
    %v733 = vpop.f32.mrf.mxu0
    %v734 = vadd.f32 %v624, %v733
    %v735 = vpop.f32.mrf.mxu0
    %v736 = vadd.f32 %v628, %v735
    %737 = vmatprep.mubr.f32.mxu0 %v474
    %738 = vmatmul.mubr.f32.gmra.mxu0 %v472
    %v739 = vpop.f32.mrf.mxu0
    %v740 = vadd.f32 %v624, %v739
    %v741 = vpop.f32.mrf.mxu0
    %v742 = vadd.f32 %v628, %v741
    %743 = vmatprep.mubr.f32.mxu0 %v480
    %744 = vmatmul.mubr.f32.gmra.mxu0 %v478
    %v745 = vpop.f32.mrf.mxu0
    %v746 = vadd.f32 %v624, %v745
    %v747 = vpop.f32.mrf.mxu0
    %v748 = vadd.f32 %v628, %v747
    %749 = vmatprep.mubr.f32.mxu0 %v486
    %750 = vmatmul.mubr.f32.gmra.mxu0 %v484
    %v751 = vpop.f32.mrf.mxu0
    %v752 = vadd.f32 %v624, %v751
    %v753 = vpop.f32.mrf.mxu0
    %v754 = vadd.f32 %v628, %v753
    %755 = vmatprep.mubr.f32.mxu0 %v492
    %756 = vmatmul.mubr.f32.gmra.mxu0 %v490
    %v757 = vpop.f32.mrf.mxu0
    %v758 = vadd.f32 %v624, %v757
    %v759 = vpop.f32.mrf.mxu0
    %v760 = vadd.f32 %v628, %v759
    %761 = vmatprep.mubr.f32.mxu0 %v498
    %762 = vmatmul.mubr.f32.gmra.mxu0 %v496
    %v763 = vpop.f32.mrf.mxu0
    %v764 = vadd.f32 %v624, %v763
    %v765 = vpop.f32.mrf.mxu0
    %v766 = vadd.f32 %v628, %v765
    %767 = vmatprep.mubr.f32.mxu0 %v504
    %768 = vmatmul.mubr.f32.gmra.mxu0 %v502
    %v769 = vpop.f32.mrf.mxu0
    %v770 = vadd.f32 %v624, %v769
    %v771 = vpop.f32.mrf.mxu0
    %v772 = vadd.f32 %v628, %v771
    %773 = vmatprep.mubr.f32.mxu0 %v510
    %774 = vmatmul.mubr.f32.gmra.mxu0 %v508
    %v775 = vpop.f32.mrf.mxu0
    %v776 = vadd.f32 %v624, %v775
    %v777 = vpop.f32.mrf.mxu0
    %v778 = vadd.f32 %v628, %v777
    %779 = vmatprep.mubr.f32.mxu0 %v516
    %780 = vmatmul.mubr.f32.gmra.mxu0 %v514
    %v781 = vpop.f32.mrf.mxu0
    %v782 = vadd.f32 %v624, %v781
    %v783 = vpop.f32.mrf.mxu0
    %v784 = vadd.f32 %v628, %v783
    %785 = vmatprep.mubr.f32.mxu0 %v522
    %786 = vmatmul.mubr.f32.gmra.mxu0 %v520
    %v787 = vpop.f32.mrf.mxu0
    %v788 = vadd.f32 %v624, %v787
    %v789 = vpop.f32.mrf.mxu0
    %v790 = vadd.f32 %v628, %v789
    %791 = vmatprep.mubr.f32.mxu0 %v528
    %792 = vmatmul.mubr.f32.gmra.mxu0 %v526
    %v793 = vpop.f32.mrf.mxu0
    %v794 = vadd.f32 %v624, %v793
    %v795 = vpop.f32.mrf.mxu0
    %v796 = vadd.f32 %v628, %v795
    %797 = vmatprep.mubr.f32.mxu0 %v534
    %798 = vmatmul.mubr.f32.gmra.mxu0 %v532
    %v799 = vpop.f32.mrf.mxu0
    %v800 = vadd.f32 %v624, %v799
    %v801 = vpop.f32.mrf.mxu0
    %v802 = vadd.f32 %v628, %v801
    %803 = vmatprep.mubr.f32.mxu0 %v540
    %804 = vmatmul.mubr.f32.gmra.mxu0 %v538
    %v805 = vpop.f32.mrf.mxu0
    %v806 = vadd.f32 %v624, %v805
    %v807 = vpop.f32.mrf.mxu0
    %v808 = vadd.f32 %v628, %v807
    %809 = vmatprep.mubr.f32.mxu0 %v546
    %810 = vmatmul.mubr.f32.gmra.mxu0 %v544
    %v811 = vpop.f32.mrf.mxu0
    %v812 = vadd.f32 %v624, %v811
    %v813 = vpop.f32.mrf.mxu0
    %v814 = vadd.f32 %v628, %v813
    %815 = vmatprep.mubr.f32.mxu0 %v552
    %816 = vmatmul.mubr.f32.gmra.mxu0 %v550
    %v817 = vpop.f32.mrf.mxu0
    %v818 = vadd.f32 %v624, %v817
    %v819 = vpop.f32.mrf.mxu0
    %v820 = vadd.f32 %v628, %v819
    %821 = vmatprep.mubr.f32.mxu0 %v558
    %822 = vmatmul.mubr.f32.gmra.mxu0 %v556
    %v823 = vpop.f32.mrf.mxu0
    %v824 = vadd.f32 %v624, %v823
    %v825 = vpop.f32.mrf.mxu0
    %v826 = vadd.f32 %v628, %v825
    %827 = vmatprep.mubr.f32.mxu0 %v564
    %828 = vmatmul.mubr.f32.gmra.mxu0 %v562
    %v829 = vpop.f32.mrf.mxu0
    %v830 = vadd.f32 %v624, %v829
    %v831 = vpop.f32.mrf.mxu0
    %v832 = vadd.f32 %v628, %v831
    %833 = vmatprep.mubr.f32.mxu0 %v570
    %834 = vmatmul.mubr.f32.gmra.mxu0 %v568
    %v835 = vpop.f32.mrf.mxu0
    %v836 = vadd.f32 %v624, %v835
    %v837 = vpop.f32.mrf.mxu0
    %v838 = vadd.f32 %v628, %v837
    %839 = vmatprep.mubr.f32.mxu0 %v576
    %840 = vmatmul.mubr.f32.gmra.mxu0 %v574
    %v841 = vpop.f32.mrf.mxu0
    %v842 = vadd.f32 %v624, %v841
    %v843 = vpop.f32.mrf.mxu0
    %v844 = vadd.f32 %v628, %v843
    %845 = vmatprep.mubr.f32.mxu0 %v582
    %846 = vmatmul.mubr.f32.gmra.mxu0 %v580
    %v847 = vpop.f32.mrf.mxu0
    %v848 = vadd.f32 %v624, %v847
    %v849 = vpop.f32.mrf.mxu0
    %v850 = vadd.f32 %v628, %v849
    %851 = vmatprep.mubr.f32.mxu0 %v588
    %852 = vmatmul.mubr.f32.gmra.mxu0 %v586
    %v853 = vpop.f32.mrf.mxu0
    %v854 = vadd.f32 %v624, %v853
    %v855 = vpop.f32.mrf.mxu0
    %v856 = vadd.f32 %v628, %v855
    %857 = vmatprep.mubr.f32.mxu0 %v594
    %858 = vmatmul.mubr.f32.gmra.mxu0 %v592
    %v859 = vpop.f32.mrf.mxu0
    %v860 = vadd.f32 %v624, %v859
    %v861 = vpop.f32.mrf.mxu0
    %v862 = vadd.f32 %v628, %v861
    %863 = vmatprep.mubr.f32.mxu0 %v600
    %864 = vmatmul.mubr.f32.gmra.mxu0 %v598
    %v865 = vpop.f32.mrf.mxu0
    %v866 = vadd.f32 %v624, %v865
    %v867 = vpop.f32.mrf.mxu0
    %v868 = vadd.f32 %v628, %v867
    %869 = vmatprep.mubr.f32.mxu0 %v606
    %870 = vmatmul.mubr.f32.gmra.mxu0 %v604
    %v871 = vpop.f32.mrf.mxu0
    %v872 = vadd.f32 %v624, %v871
    %v873 = vpop.f32.mrf.mxu0
    %v874 = vadd.f32 %v628, %v873
    %875 = vmatprep.mubr.f32.mxu0 %v612
    %876 = vmatmul.mubr.f32.gmra.mxu0 %v610
    %v877 = vpop.f32.mrf.mxu0
    %v878 = vadd.f32 %v624, %v877
    %v879 = vpop.f32.mrf.mxu0
    %v880 = vadd.f32 %v628, %v879
    %881 = vmatprep.mubr.f32.mxu0 %v618
    %882 = vmatmul.mubr.f32.gmra.mxu0 %v616
    %v883 = vpop.f32.mrf.mxu0
    %v884 = vadd.f32 %v624, %v883
    %v885 = vpop.f32.mrf.mxu0
    %v886 = vadd.f32 %v628, %v885
    %887 = vdwg.mxu0
    %v888 = vmax.f32 %v698, 0.0
    %v889 = vmax.f32 %v700, 0.0
    %v890 = vmax.f32 %v704, 0.0
    %v891 = vmax.f32 %v706, 0.0
    %v892 = vmax.f32 %v710, 0.0
    %v893 = vmax.f32 %v712, 0.0
    %v894 = vmax.f32 %v716, 0.0
    %v895 = vmax.f32 %v718, 0.0
    %v896 = vmax.f32 %v722, 0.0
    %v897 = vmax.f32 %v724, 0.0
    %v898 = vmax.f32 %v728, 0.0
    %v899 = vmax.f32 %v730, 0.0
    %v900 = vmax.f32 %v734, 0.0
    %v901 = vmax.f32 %v736, 0.0
    %v902 = vmax.f32 %v740, 0.0
    %v903 = vmax.f32 %v742, 0.0
    %v904 = vmax.f32 %v746, 0.0
    %v905 = vmax.f32 %v748, 0.0
    %v906 = vmax.f32 %v752, 0.0
    %v907 = vmax.f32 %v754, 0.0
    %v908 = vmax.f32 %v758, 0.0
    %v909 = vmax.f32 %v760, 0.0
    %v910 = vmax.f32 %v764, 0.0
    %v911 = vmax.f32 %v766, 0.0
    %v912 = vmax.f32 %v770, 0.0
    %v913 = vmax.f32 %v772, 0.0
    %v914 = vmax.f32 %v776, 0.0
    %v915 = vmax.f32 %v778, 0.0
    %v916 = vmax.f32 %v782, 0.0
    %v917 = vmax.f32 %v784, 0.0
    %v918 = vmax.f32 %v788, 0.0
    %v919 = vmax.f32 %v790, 0.0
    %v920 = vmax.f32 %v794, 0.0
    %v921 = vmax.f32 %v796, 0.0
    %v922 = vmax.f32 %v800, 0.0
    %v923 = vmax.f32 %v802, 0.0
    %v924 = vmax.f32 %v806, 0.0
    %v925 = vmax.f32 %v808, 0.0
    %v926 = vmax.f32 %v812, 0.0
    %v927 = vmax.f32 %v814, 0.0
    %v928 = vmax.f32 %v818, 0.0
    %v929 = vmax.f32 %v820, 0.0
    %v930 = vmax.f32 %v824, 0.0
    %v931 = vmax.f32 %v826, 0.0
    %v932 = vmax.f32 %v830, 0.0
    %v933 = vmax.f32 %v832, 0.0
    %v934 = vmax.f32 %v836, 0.0
    %v935 = vmax.f32 %v838, 0.0
    %v936 = vmax.f32 %v842, 0.0
    %v937 = vmax.f32 %v844, 0.0
    %v938 = vmax.f32 %v848, 0.0
    %v939 = vmax.f32 %v850, 0.0
    %v940 = vmax.f32 %v854, 0.0
    %v941 = vmax.f32 %v856, 0.0
    %v942 = vmax.f32 %v860, 0.0
    %v943 = vmax.f32 %v862, 0.0
    %v944 = vmax.f32 %v866, 0.0
    %v945 = vmax.f32 %v868, 0.0
    %v946 = vmax.f32 %v872, 0.0
    %v947 = vmax.f32 %v874, 0.0
    %v948 = vmax.f32 %v878, 0.0
    %v949 = vmax.f32 %v880, 0.0
    %v950 = vmax.f32 %v884, 0.0
    %v951 = vmax.f32 %v886, 0.0
    %v953 = vlaneseq
    %v954 = vshrl.u32 %v953, 7
    %v955 = vsub.s32 0, %v954
    %v956 = vrot.slane %v281, %v955
    %958 = vmatprep.subr.mxu0 0.0
    %959 = vmatpush1.msra.mxu0 %v264
    %960 = vmatprep.subr.mxu0 0.0
    %961 = vmatpush1.msra.mxu0 %v263
    %962 = vmatprep.subr.mxu0 0.0
    %963 = vmatpush1.msra.mxu0 %v262
    %964 = vmatprep.subr.mxu0 0.0
    %965 = vmatpush1.msra.mxu0 %v261
    %966 = vmatprep.subr.mxu0 0.0
    %967 = vmatpush1.msra.mxu0 %v260
    %968 = vmatprep.subr.mxu0 0.0
    %969 = vmatpush1.msra.mxu0 %v259
    %970 = vmatprep.subr.mxu0 0.0
    %971 = vmatpush1.msra.mxu0 %v258
    %972 = vmatprep.subr.mxu0 0.0
    %973 = vmatpush1.msra.mxu0 %v257
    %974 = vmatprep.subr.mxu0 0.0
    %975 = vmatpush1.msra.mxu0 %v256
    %976 = vmatprep.subr.mxu0 0.0
    %977 = vmatpush1.msra.mxu0 %v255
    %978 = vmatprep.subr.mxu0 0.0
    %979 = vmatpush1.msra.mxu0 %v254
    %980 = vmatprep.subr.mxu0 0.0
    %981 = vmatpush1.msra.mxu0 %v253
    %982 = vmatprep.subr.mxu0 0.0
    %983 = vmatpush1.msra.mxu0 %v252
    %984 = vmatprep.subr.mxu0 0.0
    %985 = vmatpush1.msra.mxu0 %v251
    %986 = vmatprep.subr.mxu0 0.0
    %987 = vmatpush1.msra.mxu0 %v250
    %988 = vmatprep.subr.mxu0 0.0
    %989 = vmatpush1.msra.mxu0 %v249
    %990 = vmatprep.subr.mxu0 0.0
    %991 = vmatpush2.msra.mxu0 %v280
    %992 = vmatprep.subr.mxu0 0.0
    %993 = vmatpush2.msra.mxu0 %v279
    %994 = vmatprep.subr.mxu0 0.0
    %995 = vmatpush2.msra.mxu0 %v278
    %996 = vmatprep.subr.mxu0 0.0
    %997 = vmatpush2.msra.mxu0 %v277
    %998 = vmatprep.subr.mxu0 0.0
    %999 = vmatpush2.msra.mxu0 %v276
    %1000 = vmatprep.subr.mxu0 0.0
    %1001 = vmatpush2.msra.mxu0 %v275
    %1002 = vmatprep.subr.mxu0 0.0
    %1003 = vmatpush2.msra.mxu0 %v274
    %1004 = vmatprep.subr.mxu0 0.0
    %1005 = vmatpush2.msra.mxu0 %v273
    %1006 = vmatprep.subr.mxu0 0.0
    %1007 = vmatpush2.msra.mxu0 %v272
    %1008 = vmatprep.subr.mxu0 0.0
    %1009 = vmatpush2.msra.mxu0 %v271
    %1010 = vmatprep.subr.mxu0 0.0
    %1011 = vmatpush2.msra.mxu0 %v270
    %1012 = vmatprep.subr.mxu0 0.0
    %1013 = vmatpush2.msra.mxu0 %v269
    %1014 = vmatprep.subr.mxu0 0.0
    %1015 = vmatpush2.msra.mxu0 %v268
    %1016 = vmatprep.subr.mxu0 0.0
    %1017 = vmatpush2.msra.mxu0 %v267
    %1018 = vmatprep.subr.mxu0 0.0
    %1019 = vmatpush2.msra.mxu0 %v266
    %1020 = vmatprep.subr.mxu0 0.0
    %1021 = vmatpush2.msra.mxu0 %v265
    %1022 = vmatprep.mubr.f32.mxu0 %v889
    %1023 = vmatmul.mubr.f32.gmra.mxu0 %v888
    %v1024 = vpop.f32.mrf.mxu0
    %v1025 = vadd.f32 %v956, %v1024
    %v1026 = vpop.f32.mrf.mxu0
    %1027 = vmatprep.mubr.f32.mxu0 %v891
    %1028 = vmatmul.mubr.f32.gmra.mxu0 %v890
    %v1029 = vpop.f32.mrf.mxu0
    %v1030 = vadd.f32 %v956, %v1029
    %v1031 = vpop.f32.mrf.mxu0
    %1032 = vmatprep.mubr.f32.mxu0 %v893
    %1033 = vmatmul.mubr.f32.gmra.mxu0 %v892
    %v1034 = vpop.f32.mrf.mxu0
    %v1035 = vadd.f32 %v956, %v1034
    %v1036 = vpop.f32.mrf.mxu0
    %1037 = vmatprep.mubr.f32.mxu0 %v895
    %1038 = vmatmul.mubr.f32.gmra.mxu0 %v894
    %v1039 = vpop.f32.mrf.mxu0
    %v1040 = vadd.f32 %v956, %v1039
    %v1041 = vpop.f32.mrf.mxu0
    %1042 = vmatprep.mubr.f32.mxu0 %v897
    %1043 = vmatmul.mubr.f32.gmra.mxu0 %v896
    %v1044 = vpop.f32.mrf.mxu0
    %v1045 = vadd.f32 %v956, %v1044
    %v1046 = vpop.f32.mrf.mxu0
    %1047 = vmatprep.mubr.f32.mxu0 %v899
    %1048 = vmatmul.mubr.f32.gmra.mxu0 %v898
    %v1049 = vpop.f32.mrf.mxu0
    %v1050 = vadd.f32 %v956, %v1049
    %v1051 = vpop.f32.mrf.mxu0
    %1052 = vmatprep.mubr.f32.mxu0 %v901
    %1053 = vmatmul.mubr.f32.gmra.mxu0 %v900
    %v1054 = vpop.f32.mrf.mxu0
    %v1055 = vadd.f32 %v956, %v1054
    %v1056 = vpop.f32.mrf.mxu0
    %1057 = vmatprep.mubr.f32.mxu0 %v903
    %1058 = vmatmul.mubr.f32.gmra.mxu0 %v902
    %v1059 = vpop.f32.mrf.mxu0
    %v1060 = vadd.f32 %v956, %v1059
    %v1061 = vpop.f32.mrf.mxu0
    %1062 = vmatprep.mubr.f32.mxu0 %v905
    %1063 = vmatmul.mubr.f32.gmra.mxu0 %v904
    %v1064 = vpop.f32.mrf.mxu0
    %v1065 = vadd.f32 %v956, %v1064
    %v1066 = vpop.f32.mrf.mxu0
    %1067 = vmatprep.mubr.f32.mxu0 %v907
    %1068 = vmatmul.mubr.f32.gmra.mxu0 %v906
    %v1069 = vpop.f32.mrf.mxu0
    %v1070 = vadd.f32 %v956, %v1069
    %v1071 = vpop.f32.mrf.mxu0
    %1072 = vmatprep.mubr.f32.mxu0 %v909
    %1073 = vmatmul.mubr.f32.gmra.mxu0 %v908
    %v1074 = vpop.f32.mrf.mxu0
    %v1075 = vadd.f32 %v956, %v1074
    %v1076 = vpop.f32.mrf.mxu0
    %1077 = vmatprep.mubr.f32.mxu0 %v911
    %1078 = vmatmul.mubr.f32.gmra.mxu0 %v910
    %v1079 = vpop.f32.mrf.mxu0
    %v1080 = vadd.f32 %v956, %v1079
    %v1081 = vpop.f32.mrf.mxu0
    %1082 = vmatprep.mubr.f32.mxu0 %v913
    %1083 = vmatmul.mubr.f32.gmra.mxu0 %v912
    %v1084 = vpop.f32.mrf.mxu0
    %v1085 = vadd.f32 %v956, %v1084
    %v1086 = vpop.f32.mrf.mxu0
    %1087 = vmatprep.mubr.f32.mxu0 %v915
    %1088 = vmatmul.mubr.f32.gmra.mxu0 %v914
    %v1089 = vpop.f32.mrf.mxu0
    %v1090 = vadd.f32 %v956, %v1089
    %v1091 = vpop.f32.mrf.mxu0
    %1092 = vmatprep.mubr.f32.mxu0 %v917
    %1093 = vmatmul.mubr.f32.gmra.mxu0 %v916
    %v1094 = vpop.f32.mrf.mxu0
    %v1095 = vadd.f32 %v956, %v1094
    %v1096 = vpop.f32.mrf.mxu0
    %1097 = vmatprep.mubr.f32.mxu0 %v919
    %1098 = vmatmul.mubr.f32.gmra.mxu0 %v918
    %v1099 = vpop.f32.mrf.mxu0
    %v1100 = vadd.f32 %v956, %v1099
    %v1101 = vpop.f32.mrf.mxu0
    %1102 = vmatprep.mubr.f32.mxu0 %v921
    %1103 = vmatmul.mubr.f32.gmra.mxu0 %v920
    %v1104 = vpop.f32.mrf.mxu0
    %v1105 = vadd.f32 %v956, %v1104
    %v1106 = vpop.f32.mrf.mxu0
    %1107 = vmatprep.mubr.f32.mxu0 %v923
    %1108 = vmatmul.mubr.f32.gmra.mxu0 %v922
    %v1109 = vpop.f32.mrf.mxu0
    %v1110 = vadd.f32 %v956, %v1109
    %v1111 = vpop.f32.mrf.mxu0
    %1112 = vmatprep.mubr.f32.mxu0 %v925
    %1113 = vmatmul.mubr.f32.gmra.mxu0 %v924
    %v1114 = vpop.f32.mrf.mxu0
    %v1115 = vadd.f32 %v956, %v1114
    %v1116 = vpop.f32.mrf.mxu0
    %1117 = vmatprep.mubr.f32.mxu0 %v927
    %1118 = vmatmul.mubr.f32.gmra.mxu0 %v926
    %v1119 = vpop.f32.mrf.mxu0
    %v1120 = vadd.f32 %v956, %v1119
    %v1121 = vpop.f32.mrf.mxu0
    %1122 = vmatprep.mubr.f32.mxu0 %v929
    %1123 = vmatmul.mubr.f32.gmra.mxu0 %v928
    %v1124 = vpop.f32.mrf.mxu0
    %v1125 = vadd.f32 %v956, %v1124
    %v1126 = vpop.f32.mrf.mxu0
    %1127 = vmatprep.mubr.f32.mxu0 %v931
    %1128 = vmatmul.mubr.f32.gmra.mxu0 %v930
    %v1129 = vpop.f32.mrf.mxu0
    %v1130 = vadd.f32 %v956, %v1129
    %v1131 = vpop.f32.mrf.mxu0
    %1132 = vmatprep.mubr.f32.mxu0 %v933
    %1133 = vmatmul.mubr.f32.gmra.mxu0 %v932
    %v1134 = vpop.f32.mrf.mxu0
    %v1135 = vadd.f32 %v956, %v1134
    %v1136 = vpop.f32.mrf.mxu0
    %1137 = vmatprep.mubr.f32.mxu0 %v935
    %1138 = vmatmul.mubr.f32.gmra.mxu0 %v934
    %v1139 = vpop.f32.mrf.mxu0
    %v1140 = vadd.f32 %v956, %v1139
    %v1141 = vpop.f32.mrf.mxu0
    %1142 = vmatprep.mubr.f32.mxu0 %v937
    %1143 = vmatmul.mubr.f32.gmra.mxu0 %v936
    %v1144 = vpop.f32.mrf.mxu0
    %v1145 = vadd.f32 %v956, %v1144
    %v1146 = vpop.f32.mrf.mxu0
    %1147 = vmatprep.mubr.f32.mxu0 %v939
    %1148 = vmatmul.mubr.f32.gmra.mxu0 %v938
    %v1149 = vpop.f32.mrf.mxu0
    %v1150 = vadd.f32 %v956, %v1149
    %v1151 = vpop.f32.mrf.mxu0
    %1152 = vmatprep.mubr.f32.mxu0 %v941
    %1153 = vmatmul.mubr.f32.gmra.mxu0 %v940
    %v1154 = vpop.f32.mrf.mxu0
    %v1155 = vadd.f32 %v956, %v1154
    %v1156 = vpop.f32.mrf.mxu0
    %1157 = vmatprep.mubr.f32.mxu0 %v943
    %1158 = vmatmul.mubr.f32.gmra.mxu0 %v942
    %v1159 = vpop.f32.mrf.mxu0
    %v1160 = vadd.f32 %v956, %v1159
    %v1161 = vpop.f32.mrf.mxu0
    %1162 = vmatprep.mubr.f32.mxu0 %v945
    %1163 = vmatmul.mubr.f32.gmra.mxu0 %v944
    %v1164 = vpop.f32.mrf.mxu0
    %v1165 = vadd.f32 %v956, %v1164
    %v1166 = vpop.f32.mrf.mxu0
    %1167 = vmatprep.mubr.f32.mxu0 %v947
    %1168 = vmatmul.mubr.f32.gmra.mxu0 %v946
    %v1169 = vpop.f32.mrf.mxu0
    %v1170 = vadd.f32 %v956, %v1169
    %v1171 = vpop.f32.mrf.mxu0
    %1172 = vmatprep.mubr.f32.mxu0 %v949
    %1173 = vmatmul.mubr.f32.gmra.mxu0 %v948
    %v1174 = vpop.f32.mrf.mxu0
    %v1175 = vadd.f32 %v956, %v1174
    %v1176 = vpop.f32.mrf.mxu0
    %1177 = vmatprep.mubr.f32.mxu0 %v951
    %1178 = vmatmul.mubr.f32.gmra.mxu0 %v950
    %v1179 = vpop.f32.mrf.mxu0
    %v1180 = vadd.f32 %v956, %v1179
    %v1181 = vpop.f32.mrf.mxu0
    %1182 = vdwg.mxu0
    %v1183 = vadd.f32 %v1025, %v1030
    %v1184 = vadd.f32 %v1183, %v1035
    %v1185 = vadd.f32 %v1184, %v1040
    %v1186 = vadd.f32 %v1185, %v1045
    %v1187 = vadd.f32 %v1186, %v1050
    %v1188 = vadd.f32 %v1187, %v1055
    %v1189 = vadd.f32 %v1188, %v1060
    %v1190 = vadd.f32 %v1189, %v1065
    %v1191 = vadd.f32 %v1190, %v1070
    %v1192 = vadd.f32 %v1191, %v1075
    %v1193 = vadd.f32 %v1192, %v1080
    %v1194 = vadd.f32 %v1193, %v1085
    %v1195 = vadd.f32 %v1194, %v1090
    %v1196 = vadd.f32 %v1195, %v1095
    %v1197 = vadd.f32 %v1196, %v1100
    %v1198 = vadd.f32 %v1197, %v1105
    %v1199 = vadd.f32 %v1198, %v1110
    %v1200 = vadd.f32 %v1199, %v1115
    %v1201 = vadd.f32 %v1200, %v1120
    %v1202 = vadd.f32 %v1201, %v1125
    %v1203 = vadd.f32 %v1202, %v1130
    %v1204 = vadd.f32 %v1203, %v1135
    %v1205 = vadd.f32 %v1204, %v1140
    %v1206 = vadd.f32 %v1205, %v1145
    %v1207 = vadd.f32 %v1206, %v1150
    %v1208 = vadd.f32 %v1207, %v1155
    %v1209 = vadd.f32 %v1208, %v1160
    %v1210 = vadd.f32 %v1209, %v1165
    %v1211 = vadd.f32 %v1210, %v1170
    %v1212 = vadd.f32 %v1211, %v1175
    %v1213 = vadd.f32 %v1212, %v1180
    %v1214 = vrot.slane %v1213, 4
    %v1215 = vadd.f32 %v1213, %v1214
    %v1216 = vrot.slane %v1215, 2
    %v1217 = vadd.f32 %v1215, %v1216
    %v1218 = vrot.slane %v1217, 1
    %v1219 = vadd.f32 %v1217, %v1218
    %v1220 = vrcp.pop 256.0
    %v1221 = vmul.f32 %v1219, %v1220
    %v1222 = vsub.f32 %v1025, %v1221
    %v1223 = vsub.f32 %v1030, %v1221
    %v1224 = vsub.f32 %v1035, %v1221
    %v1225 = vsub.f32 %v1040, %v1221
    %v1226 = vsub.f32 %v1045, %v1221
    %v1227 = vsub.f32 %v1050, %v1221
    %v1228 = vsub.f32 %v1055, %v1221
    %v1229 = vsub.f32 %v1060, %v1221
    %v1230 = vsub.f32 %v1065, %v1221
    %v1231 = vsub.f32 %v1070, %v1221
    %v1232 = vsub.f32 %v1075, %v1221
    %v1233 = vsub.f32 %v1080, %v1221
    %v1234 = vsub.f32 %v1085, %v1221
    %v1235 = vsub.f32 %v1090, %v1221
    %v1236 = vsub.f32 %v1095, %v1221
    %v1237 = vsub.f32 %v1100, %v1221
    %v1238 = vsub.f32 %v1105, %v1221
    %v1239 = vsub.f32 %v1110, %v1221
    %v1240 = vsub.f32 %v1115, %v1221
    %v1241 = vsub.f32 %v1120, %v1221
    %v1242 = vsub.f32 %v1125, %v1221
    %v1243 = vsub.f32 %v1130, %v1221
    %v1244 = vsub.f32 %v1135, %v1221
    %v1245 = vsub.f32 %v1140, %v1221
    %v1246 = vsub.f32 %v1145, %v1221
    %v1247 = vsub.f32 %v1150, %v1221
    %v1248 = vsub.f32 %v1155, %v1221
    %v1249 = vsub.f32 %v1160, %v1221
    %v1250 = vsub.f32 %v1165, %v1221
    %v1251 = vsub.f32 %v1170, %v1221
    %v1252 = vsub.f32 %v1175, %v1221
    %v1253 = vsub.f32 %v1180, %v1221
    %v1254 = vmul.f32 %v1222, %v1222
    %v1255 = vmul.f32 %v1223, %v1223
    %v1256 = vmul.f32 %v1224, %v1224
    %v1257 = vmul.f32 %v1225, %v1225
    %v1258 = vmul.f32 %v1226, %v1226
    %v1259 = vmul.f32 %v1227, %v1227
    %v1260 = vmul.f32 %v1228, %v1228
    %v1261 = vmul.f32 %v1229, %v1229
    %v1262 = vmul.f32 %v1230, %v1230
    %v1263 = vmul.f32 %v1231, %v1231
    %v1264 = vmul.f32 %v1232, %v1232
    %v1265 = vmul.f32 %v1233, %v1233
    %v1266 = vmul.f32 %v1234, %v1234
    %v1267 = vmul.f32 %v1235, %v1235
    %v1268 = vmul.f32 %v1236, %v1236
    %v1269 = vmul.f32 %v1237, %v1237
    %v1270 = vmul.f32 %v1238, %v1238
    %v1271 = vmul.f32 %v1239, %v1239
    %v1272 = vmul.f32 %v1240, %v1240
    %v1273 = vmul.f32 %v1241, %v1241
    %v1274 = vmul.f32 %v1242, %v1242
    %v1275 = vmul.f32 %v1243, %v1243
    %v1276 = vmul.f32 %v1244, %v1244
    %v1277 = vmul.f32 %v1245, %v1245
    %v1278 = vmul.f32 %v1246, %v1246
    %v1279 = vmul.f32 %v1247, %v1247
    %v1280 = vmul.f32 %v1248, %v1248
    %v1281 = vmul.f32 %v1249, %v1249
    %v1282 = vmul.f32 %v1250, %v1250
    %v1283 = vmul.f32 %v1251, %v1251
    %v1284 = vmul.f32 %v1252, %v1252
    %v1285 = vmul.f32 %v1253, %v1253
    %v1286 = vadd.f32 %v1254, %v1255
    %v1287 = vadd.f32 %v1286, %v1256
    %v1288 = vadd.f32 %v1287, %v1257
    %v1289 = vadd.f32 %v1288, %v1258
    %v1290 = vadd.f32 %v1289, %v1259
    %v1291 = vadd.f32 %v1290, %v1260
    %v1292 = vadd.f32 %v1291, %v1261
    %v1293 = vadd.f32 %v1292, %v1262
    %v1294 = vadd.f32 %v1293, %v1263
    %v1295 = vadd.f32 %v1294, %v1264
    %v1296 = vadd.f32 %v1295, %v1265
    %v1297 = vadd.f32 %v1296, %v1266
    %v1298 = vadd.f32 %v1297, %v1267
    %v1299 = vadd.f32 %v1298, %v1268
    %v1300 = vadd.f32 %v1299, %v1269
    %v1301 = vadd.f32 %v1300, %v1270
    %v1302 = vadd.f32 %v1301, %v1271
    %v1303 = vadd.f32 %v1302, %v1272
    %v1304 = vadd.f32 %v1303, %v1273
    %v1305 = vadd.f32 %v1304, %v1274
    %v1306 = vadd.f32 %v1305, %v1275
    %v1307 = vadd.f32 %v1306, %v1276
    %v1308 = vadd.f32 %v1307, %v1277
    %v1309 = vadd.f32 %v1308, %v1278
    %v1310 = vadd.f32 %v1309, %v1279
    %v1311 = vadd.f32 %v1310, %v1280
    %v1312 = vadd.f32 %v1311, %v1281
    %v1313 = vadd.f32 %v1312, %v1282
    %v1314 = vadd.f32 %v1313, %v1283
    %v1315 = vadd.f32 %v1314, %v1284
    %v1316 = vadd.f32 %v1315, %v1285
    %v1317 = vrot.slane %v1316, 4
    %v1318 = vadd.f32 %v1316, %v1317
    %v1319 = vrot.slane %v1318, 2
    %v1320 = vadd.f32 %v1318, %v1319
    %v1321 = vrot.slane %v1320, 1
    %v1322 = vadd.f32 %v1320, %v1321
    %v1323 = vmul.f32 %v1322, 0.003921569
    %v1324 = vadd.f32 %v1323, 1e-12
    %v1325 = vrsqrt.pop %v1324
    %v1326 = vmul.f32 %v1222, %v1325
    %v1327 = vmul.f32 %v1223, %v1325
    %v1328 = vmul.f32 %v1224, %v1325
    %v1329 = vmul.f32 %v1225, %v1325
    %v1330 = vmul.f32 %v1226, %v1325
    %v1331 = vmul.f32 %v1227, %v1325
    %v1332 = vmul.f32 %v1228, %v1325
    %v1333 = vmul.f32 %v1229, %v1325
    %v1334 = vmul.f32 %v1230, %v1325
    %v1335 = vmul.f32 %v1231, %v1325
    %v1336 = vmul.f32 %v1232, %v1325
    %v1337 = vmul.f32 %v1233, %v1325
    %v1338 = vmul.f32 %v1234, %v1325
    %v1339 = vmul.f32 %v1235, %v1325
    %v1340 = vmul.f32 %v1236, %v1325
    %v1341 = vmul.f32 %v1237, %v1325
    %v1342 = vmul.f32 %v1238, %v1325
    %v1343 = vmul.f32 %v1239, %v1325
    %v1344 = vmul.f32 %v1240, %v1325
    %v1345 = vmul.f32 %v1241, %v1325
    %v1346 = vmul.f32 %v1242, %v1325
    %v1347 = vmul.f32 %v1243, %v1325
    %v1348 = vmul.f32 %v1244, %v1325
    %v1349 = vmul.f32 %v1245, %v1325
    %v1350 = vmul.f32 %v1246, %v1325
    %v1351 = vmul.f32 %v1247, %v1325
    %v1352 = vmul.f32 %v1248, %v1325
    %v1353 = vmul.f32 %v1249, %v1325
    %v1354 = vmul.f32 %v1250, %v1325
    %v1355 = vmul.f32 %v1251, %v1325
    %v1356 = vmul.f32 %v1252, %v1325
    %v1357 = vmul.f32 %v1253, %v1325
    %1358 = vmatprep.subr.mxu0 0.0
    %1359 = vmatpush1.msra.mxu0 %v1341
    %1360 = vmatprep.subr.mxu0 0.0
    %1361 = vmatpush1.msra.mxu0 %v1340
    %1362 = vmatprep.subr.mxu0 0.0
    %1363 = vmatpush1.msra.mxu0 %v1339
    %1364 = vmatprep.subr.mxu0 0.0
    %1365 = vmatpush1.msra.mxu0 %v1338
    %1366 = vmatprep.subr.mxu0 0.0
    %1367 = vmatpush1.msra.mxu0 %v1337
    %1368 = vmatprep.subr.mxu0 0.0
    %1369 = vmatpush1.msra.mxu0 %v1336
    %1370 = vmatprep.subr.mxu0 0.0
    %1371 = vmatpush1.msra.mxu0 %v1335
    %1372 = vmatprep.subr.mxu0 0.0
    %1373 = vmatpush1.msra.mxu0 %v1334
    %1374 = vmatprep.subr.mxu0 0.0
    %1375 = vmatpush1.msra.mxu0 %v1333
    %1376 = vmatprep.subr.mxu0 0.0
    %1377 = vmatpush1.msra.mxu0 %v1332
    %1378 = vmatprep.subr.mxu0 0.0
    %1379 = vmatpush1.msra.mxu0 %v1331
    %1380 = vmatprep.subr.mxu0 0.0
    %1381 = vmatpush1.msra.mxu0 %v1330
    %1382 = vmatprep.subr.mxu0 0.0
    %1383 = vmatpush1.msra.mxu0 %v1329
    %1384 = vmatprep.subr.mxu0 0.0
    %1385 = vmatpush1.msra.mxu0 %v1328
    %1386 = vmatprep.subr.mxu0 0.0
    %1387 = vmatpush1.msra.mxu0 %v1327
    %1388 = vmatprep.subr.mxu0 0.0
    %1389 = vmatpush1.msra.mxu0 %v1326
    %1390 = vmatprep.subr.mxu0 0.0
    %1391 = vmatpush2.msra.mxu0 %v1357
    %1392 = vmatprep.subr.mxu0 0.0
    %1393 = vmatpush2.msra.mxu0 %v1356
    %1394 = vmatprep.subr.mxu0 0.0
    %1395 = vmatpush2.msra.mxu0 %v1355
    %1396 = vmatprep.subr.mxu0 0.0
    %1397 = vmatpush2.msra.mxu0 %v1354
    %1398 = vmatprep.subr.mxu0 0.0
    %1399 = vmatpush2.msra.mxu0 %v1353
    %1400 = vmatprep.subr.mxu0 0.0
    %1401 = vmatpush2.msra.mxu0 %v1352
    %1402 = vmatprep.subr.mxu0 0.0
    %1403 = vmatpush2.msra.mxu0 %v1351
    %1404 = vmatprep.subr.mxu0 0.0
    %1405 = vmatpush2.msra.mxu0 %v1350
    %1406 = vmatprep.subr.mxu0 0.0
    %1407 = vmatpush2.msra.mxu0 %v1349
    %1408 = vmatprep.subr.mxu0 0.0
    %1409 = vmatpush2.msra.mxu0 %v1348
    %1410 = vmatprep.subr.mxu0 0.0
    %1411 = vmatpush2.msra.mxu0 %v1347
    %1412 = vmatprep.subr.mxu0 0.0
    %1413 = vmatpush2.msra.mxu0 %v1346
    %1414 = vmatprep.subr.mxu0 0.0
    %1415 = vmatpush2.msra.mxu0 %v1345
    %1416 = vmatprep.subr.mxu0 0.0
    %1417 = vmatpush2.msra.mxu0 %v1344
    %1418 = vmatprep.subr.mxu0 0.0
    %1419 = vmatpush2.msra.mxu0 %v1343
    %1420 = vmatprep.subr.mxu0 0.0
    %1421 = vmatpush2.msra.mxu0 %v1342
    %1422 = vmatprep.mubr.f32.mxu0 %v121
    %1423 = vmatmul.mubr.f32.gmra.mxu0 %v120
    %v1424 = vpop.f32.mrf.mxu0
    %v1425 = vadd.f32 0.0, %v1424
    %v1426 = vpop.f32.mrf.mxu0
    %1427 = vmatprep.mubr.f32.mxu0 %v123
    %1428 = vmatmul.mubr.f32.gmra.mxu0 %v122
    %v1429 = vpop.f32.mrf.mxu0
    %v1430 = vadd.f32 0.0, %v1429
    %v1431 = vpop.f32.mrf.mxu0
    %1432 = vmatprep.mubr.f32.mxu0 %v125
    %1433 = vmatmul.mubr.f32.gmra.mxu0 %v124
    %v1434 = vpop.f32.mrf.mxu0
    %v1435 = vadd.f32 0.0, %v1434
    %v1436 = vpop.f32.mrf.mxu0
    %1437 = vmatprep.mubr.f32.mxu0 %v127
    %1438 = vmatmul.mubr.f32.gmra.mxu0 %v126
    %v1439 = vpop.f32.mrf.mxu0
    %v1440 = vadd.f32 0.0, %v1439
    %v1441 = vpop.f32.mrf.mxu0
    %1442 = vmatprep.mubr.f32.mxu0 %v129
    %1443 = vmatmul.mubr.f32.gmra.mxu0 %v128
    %v1444 = vpop.f32.mrf.mxu0
    %v1445 = vadd.f32 0.0, %v1444
    %v1446 = vpop.f32.mrf.mxu0
    %1447 = vmatprep.mubr.f32.mxu0 %v131
    %1448 = vmatmul.mubr.f32.gmra.mxu0 %v130
    %v1449 = vpop.f32.mrf.mxu0
    %v1450 = vadd.f32 0.0, %v1449
    %v1451 = vpop.f32.mrf.mxu0
    %1452 = vmatprep.mubr.f32.mxu0 %v133
    %1453 = vmatmul.mubr.f32.gmra.mxu0 %v132
    %v1454 = vpop.f32.mrf.mxu0
    %v1455 = vadd.f32 0.0, %v1454
    %v1456 = vpop.f32.mrf.mxu0
    %1457 = vmatprep.mubr.f32.mxu0 %v135
    %1458 = vmatmul.mubr.f32.gmra.mxu0 %v134
    %v1459 = vpop.f32.mrf.mxu0
    %v1460 = vadd.f32 0.0, %v1459
    %v1461 = vpop.f32.mrf.mxu0
    %1462 = vmatprep.mubr.f32.mxu0 %v137
    %1463 = vmatmul.mubr.f32.gmra.mxu0 %v136
    %v1464 = vpop.f32.mrf.mxu0
    %v1465 = vadd.f32 0.0, %v1464
    %v1466 = vpop.f32.mrf.mxu0
    %1467 = vmatprep.mubr.f32.mxu0 %v139
    %1468 = vmatmul.mubr.f32.gmra.mxu0 %v138
    %v1469 = vpop.f32.mrf.mxu0
    %v1470 = vadd.f32 0.0, %v1469
    %v1471 = vpop.f32.mrf.mxu0
    %1472 = vmatprep.mubr.f32.mxu0 %v141
    %1473 = vmatmul.mubr.f32.gmra.mxu0 %v140
    %v1474 = vpop.f32.mrf.mxu0
    %v1475 = vadd.f32 0.0, %v1474
    %v1476 = vpop.f32.mrf.mxu0
    %1477 = vmatprep.mubr.f32.mxu0 %v143
    %1478 = vmatmul.mubr.f32.gmra.mxu0 %v142
    %v1479 = vpop.f32.mrf.mxu0
    %v1480 = vadd.f32 0.0, %v1479
    %v1481 = vpop.f32.mrf.mxu0
    %1482 = vmatprep.mubr.f32.mxu0 %v145
    %1483 = vmatmul.mubr.f32.gmra.mxu0 %v144
    %v1484 = vpop.f32.mrf.mxu0
    %v1485 = vadd.f32 0.0, %v1484
    %v1486 = vpop.f32.mrf.mxu0
    %1487 = vmatprep.mubr.f32.mxu0 %v147
    %1488 = vmatmul.mubr.f32.gmra.mxu0 %v146
    %v1489 = vpop.f32.mrf.mxu0
    %v1490 = vadd.f32 0.0, %v1489
    %v1491 = vpop.f32.mrf.mxu0
    %1492 = vmatprep.mubr.f32.mxu0 %v149
    %1493 = vmatmul.mubr.f32.gmra.mxu0 %v148
    %v1494 = vpop.f32.mrf.mxu0
    %v1495 = vadd.f32 0.0, %v1494
    %v1496 = vpop.f32.mrf.mxu0
    %1497 = vmatprep.mubr.f32.mxu0 %v151
    %1498 = vmatmul.mubr.f32.gmra.mxu0 %v150
    %v1499 = vpop.f32.mrf.mxu0
    %v1500 = vadd.f32 0.0, %v1499
    %v1501 = vpop.f32.mrf.mxu0
    %1502 = vmatprep.mubr.f32.mxu0 %v153
    %1503 = vmatmul.mubr.f32.gmra.mxu0 %v152
    %v1504 = vpop.f32.mrf.mxu0
    %v1505 = vadd.f32 0.0, %v1504
    %v1506 = vpop.f32.mrf.mxu0
    %1507 = vmatprep.mubr.f32.mxu0 %v155
    %1508 = vmatmul.mubr.f32.gmra.mxu0 %v154
    %v1509 = vpop.f32.mrf.mxu0
    %v1510 = vadd.f32 0.0, %v1509
    %v1511 = vpop.f32.mrf.mxu0
    %1512 = vmatprep.mubr.f32.mxu0 %v157
    %1513 = vmatmul.mubr.f32.gmra.mxu0 %v156
    %v1514 = vpop.f32.mrf.mxu0
    %v1515 = vadd.f32 0.0, %v1514
    %v1516 = vpop.f32.mrf.mxu0
    %1517 = vmatprep.mubr.f32.mxu0 %v159
    %1518 = vmatmul.mubr.f32.gmra.mxu0 %v158
    %v1519 = vpop.f32.mrf.mxu0
    %v1520 = vadd.f32 0.0, %v1519
    %v1521 = vpop.f32.mrf.mxu0
    %1522 = vmatprep.mubr.f32.mxu0 %v161
    %1523 = vmatmul.mubr.f32.gmra.mxu0 %v160
    %v1524 = vpop.f32.mrf.mxu0
    %v1525 = vadd.f32 0.0, %v1524
    %v1526 = vpop.f32.mrf.mxu0
    %1527 = vmatprep.mubr.f32.mxu0 %v163
    %1528 = vmatmul.mubr.f32.gmra.mxu0 %v162
    %v1529 = vpop.f32.mrf.mxu0
    %v1530 = vadd.f32 0.0, %v1529
    %v1531 = vpop.f32.mrf.mxu0
    %1532 = vmatprep.mubr.f32.mxu0 %v165
    %1533 = vmatmul.mubr.f32.gmra.mxu0 %v164
    %v1534 = vpop.f32.mrf.mxu0
    %v1535 = vadd.f32 0.0, %v1534
    %v1536 = vpop.f32.mrf.mxu0
    %1537 = vmatprep.mubr.f32.mxu0 %v167
    %1538 = vmatmul.mubr.f32.gmra.mxu0 %v166
    %v1539 = vpop.f32.mrf.mxu0
    %v1540 = vadd.f32 0.0, %v1539
    %v1541 = vpop.f32.mrf.mxu0
    %1542 = vmatprep.mubr.f32.mxu0 %v169
    %1543 = vmatmul.mubr.f32.gmra.mxu0 %v168
    %v1544 = vpop.f32.mrf.mxu0
    %v1545 = vadd.f32 0.0, %v1544
    %v1546 = vpop.f32.mrf.mxu0
    %1547 = vmatprep.mubr.f32.mxu0 %v171
    %1548 = vmatmul.mubr.f32.gmra.mxu0 %v170
    %v1549 = vpop.f32.mrf.mxu0
    %v1550 = vadd.f32 0.0, %v1549
    %v1551 = vpop.f32.mrf.mxu0
    %1552 = vmatprep.mubr.f32.mxu0 %v173
    %1553 = vmatmul.mubr.f32.gmra.mxu0 %v172
    %v1554 = vpop.f32.mrf.mxu0
    %v1555 = vadd.f32 0.0, %v1554
    %v1556 = vpop.f32.mrf.mxu0
    %1557 = vmatprep.mubr.f32.mxu0 %v175
    %1558 = vmatmul.mubr.f32.gmra.mxu0 %v174
    %v1559 = vpop.f32.mrf.mxu0
    %v1560 = vadd.f32 0.0, %v1559
    %v1561 = vpop.f32.mrf.mxu0
    %1562 = vmatprep.mubr.f32.mxu0 %v177
    %1563 = vmatmul.mubr.f32.gmra.mxu0 %v176
    %v1564 = vpop.f32.mrf.mxu0
    %v1565 = vadd.f32 0.0, %v1564
    %v1566 = vpop.f32.mrf.mxu0
    %1567 = vmatprep.mubr.f32.mxu0 %v179
    %1568 = vmatmul.mubr.f32.gmra.mxu0 %v178
    %v1569 = vpop.f32.mrf.mxu0
    %v1570 = vadd.f32 0.0, %v1569
    %v1571 = vpop.f32.mrf.mxu0
    %1572 = vmatprep.mubr.f32.mxu0 %v181
    %1573 = vmatmul.mubr.f32.gmra.mxu0 %v180
    %v1574 = vpop.f32.mrf.mxu0
    %v1575 = vadd.f32 0.0, %v1574
    %v1576 = vpop.f32.mrf.mxu0
    %1577 = vmatprep.mubr.f32.mxu0 %v183
    %1578 = vmatmul.mubr.f32.gmra.mxu0 %v182
    %v1579 = vpop.f32.mrf.mxu0
    %v1580 = vadd.f32 0.0, %v1579
    %v1581 = vpop.f32.mrf.mxu0
    %1582 = vdwg.mxu0
    %v1584 = vlaneseq
    %v1585 = vshrl.u32 %v1584, 7
    %v1586 = vsub.s32 0, %v1585
    %v1587 = vrot.slane %v298, %v1586
    %1589 = vmatprep.subr.mxu0 0.0
    %1590 = vmatpush1.msra.mxu0 %v297
    %1591 = vmatprep.subr.mxu0 0.0
    %1592 = vmatpush1.msra.mxu0 %v296
    %1593 = vmatprep.subr.mxu0 0.0
    %1594 = vmatpush1.msra.mxu0 %v295
    %1595 = vmatprep.subr.mxu0 0.0
    %1596 = vmatpush1.msra.mxu0 %v294
    %1597 = vmatprep.subr.mxu0 0.0
    %1598 = vmatpush1.msra.mxu0 %v293
    %1599 = vmatprep.subr.mxu0 0.0
    %1600 = vmatpush1.msra.mxu0 %v292
    %1601 = vmatprep.subr.mxu0 0.0
    %1602 = vmatpush1.msra.mxu0 %v291
    %1603 = vmatprep.subr.mxu0 0.0
    %1604 = vmatpush1.msra.mxu0 %v290
    %1605 = vmatprep.subr.mxu0 0.0
    %1606 = vmatpush1.msra.mxu0 %v289
    %1607 = vmatprep.subr.mxu0 0.0
    %1608 = vmatpush1.msra.mxu0 %v288
    %1609 = vmatprep.subr.mxu0 0.0
    %1610 = vmatpush1.msra.mxu0 %v287
    %1611 = vmatprep.subr.mxu0 0.0
    %1612 = vmatpush1.msra.mxu0 %v286
    %1613 = vmatprep.subr.mxu0 0.0
    %1614 = vmatpush1.msra.mxu0 %v285
    %1615 = vmatprep.subr.mxu0 0.0
    %1616 = vmatpush1.msra.mxu0 %v284
    %1617 = vmatprep.subr.mxu0 0.0
    %1618 = vmatpush1.msra.mxu0 %v283
    %1619 = vmatprep.subr.mxu0 0.0
    %1620 = vmatpush1.msra.mxu0 %v282
    %1621 = vmatprep.subr.mxu0 0.0
    %1622 = vmatpush2.msra.mxu0 0.0
    %1623 = vmatprep.subr.mxu0 0.0
    %1624 = vmatpush2.msra.mxu0 0.0
    %1625 = vmatprep.subr.mxu0 0.0
    %1626 = vmatpush2.msra.mxu0 0.0
    %1627 = vmatprep.subr.mxu0 0.0
    %1628 = vmatpush2.msra.mxu0 0.0
    %1629 = vmatprep.subr.mxu0 0.0
    %1630 = vmatpush2.msra.mxu0 0.0
    %1631 = vmatprep.subr.mxu0 0.0
    %1632 = vmatpush2.msra.mxu0 0.0
    %1633 = vmatprep.subr.mxu0 0.0
    %1634 = vmatpush2.msra.mxu0 0.0
    %1635 = vmatprep.subr.mxu0 0.0
    %1636 = vmatpush2.msra.mxu0 0.0
    %1637 = vmatprep.subr.mxu0 0.0
    %1638 = vmatpush2.msra.mxu0 0.0
    %1639 = vmatprep.subr.mxu0 0.0
    %1640 = vmatpush2.msra.mxu0 0.0
    %1641 = vmatprep.subr.mxu0 0.0
    %1642 = vmatpush2.msra.mxu0 0.0
    %1643 = vmatprep.subr.mxu0 0.0
    %1644 = vmatpush2.msra.mxu0 0.0
    %1645 = vmatprep.subr.mxu0 0.0
    %1646 = vmatpush2.msra.mxu0 0.0
    %1647 = vmatprep.subr.mxu0 0.0
    %1648 = vmatpush2.msra.mxu0 0.0
    %1649 = vmatprep.subr.mxu0 0.0
    %1650 = vmatpush2.msra.mxu0 0.0
    %1651 = vmatprep.subr.mxu0 0.0
    %1652 = vmatpush2.msra.mxu0 0.0
    %1653 = vmatprep.mubr.f32.mxu0 0.0
    %1654 = vmatmul.mubr.f32.gmra.mxu0 %v1425
    %v1655 = vpop.f32.mrf.mxu0
    %v1656 = vadd.f32 %v1587, %v1655
    %v1657 = vpop.f32.mrf.mxu0
    %1658 = vmatprep.mubr.f32.mxu0 0.0
    %1659 = vmatmul.mubr.f32.gmra.mxu0 %v1430
    %v1660 = vpop.f32.mrf.mxu0
    %v1661 = vadd.f32 %v1587, %v1660
    %v1662 = vpop.f32.mrf.mxu0
    %1663 = vmatprep.mubr.f32.mxu0 0.0
    %1664 = vmatmul.mubr.f32.gmra.mxu0 %v1435
    %v1665 = vpop.f32.mrf.mxu0
    %v1666 = vadd.f32 %v1587, %v1665
    %v1667 = vpop.f32.mrf.mxu0
    %1668 = vmatprep.mubr.f32.mxu0 0.0
    %1669 = vmatmul.mubr.f32.gmra.mxu0 %v1440
    %v1670 = vpop.f32.mrf.mxu0
    %v1671 = vadd.f32 %v1587, %v1670
    %v1672 = vpop.f32.mrf.mxu0
    %1673 = vmatprep.mubr.f32.mxu0 0.0
    %1674 = vmatmul.mubr.f32.gmra.mxu0 %v1445
    %v1675 = vpop.f32.mrf.mxu0
    %v1676 = vadd.f32 %v1587, %v1675
    %v1677 = vpop.f32.mrf.mxu0
    %1678 = vmatprep.mubr.f32.mxu0 0.0
    %1679 = vmatmul.mubr.f32.gmra.mxu0 %v1450
    %v1680 = vpop.f32.mrf.mxu0
    %v1681 = vadd.f32 %v1587, %v1680
    %v1682 = vpop.f32.mrf.mxu0
    %1683 = vmatprep.mubr.f32.mxu0 0.0
    %1684 = vmatmul.mubr.f32.gmra.mxu0 %v1455
    %v1685 = vpop.f32.mrf.mxu0
    %v1686 = vadd.f32 %v1587, %v1685
    %v1687 = vpop.f32.mrf.mxu0
    %1688 = vmatprep.mubr.f32.mxu0 0.0
    %1689 = vmatmul.mubr.f32.gmra.mxu0 %v1460
    %v1690 = vpop.f32.mrf.mxu0
    %v1691 = vadd.f32 %v1587, %v1690
    %v1692 = vpop.f32.mrf.mxu0
    %1693 = vmatprep.mubr.f32.mxu0 0.0
    %1694 = vmatmul.mubr.f32.gmra.mxu0 %v1465
    %v1695 = vpop.f32.mrf.mxu0
    %v1696 = vadd.f32 %v1587, %v1695
    %v1697 = vpop.f32.mrf.mxu0
    %1698 = vmatprep.mubr.f32.mxu0 0.0
    %1699 = vmatmul.mubr.f32.gmra.mxu0 %v1470
    %v1700 = vpop.f32.mrf.mxu0
    %v1701 = vadd.f32 %v1587, %v1700
    %v1702 = vpop.f32.mrf.mxu0
    %1703 = vmatprep.mubr.f32.mxu0 0.0
    %1704 = vmatmul.mubr.f32.gmra.mxu0 %v1475
    %v1705 = vpop.f32.mrf.mxu0
    %v1706 = vadd.f32 %v1587, %v1705
    %v1707 = vpop.f32.mrf.mxu0
    %1708 = vmatprep.mubr.f32.mxu0 0.0
    %1709 = vmatmul.mubr.f32.gmra.mxu0 %v1480
    %v1710 = vpop.f32.mrf.mxu0
    %v1711 = vadd.f32 %v1587, %v1710
    %v1712 = vpop.f32.mrf.mxu0
    %1713 = vmatprep.mubr.f32.mxu0 0.0
    %1714 = vmatmul.mubr.f32.gmra.mxu0 %v1485
    %v1715 = vpop.f32.mrf.mxu0
    %v1716 = vadd.f32 %v1587, %v1715
    %v1717 = vpop.f32.mrf.mxu0
    %1718 = vmatprep.mubr.f32.mxu0 0.0
    %1719 = vmatmul.mubr.f32.gmra.mxu0 %v1490
    %v1720 = vpop.f32.mrf.mxu0
    %v1721 = vadd.f32 %v1587, %v1720
    %v1722 = vpop.f32.mrf.mxu0
    %1723 = vmatprep.mubr.f32.mxu0 0.0
    %1724 = vmatmul.mubr.f32.gmra.mxu0 %v1495
    %v1725 = vpop.f32.mrf.mxu0
    %v1726 = vadd.f32 %v1587, %v1725
    %v1727 = vpop.f32.mrf.mxu0
    %1728 = vmatprep.mubr.f32.mxu0 0.0
    %1729 = vmatmul.mubr.f32.gmra.mxu0 %v1500
    %v1730 = vpop.f32.mrf.mxu0
    %v1731 = vadd.f32 %v1587, %v1730
    %v1732 = vpop.f32.mrf.mxu0
    %1733 = vmatprep.mubr.f32.mxu0 0.0
    %1734 = vmatmul.mubr.f32.gmra.mxu0 %v1505
    %v1735 = vpop.f32.mrf.mxu0
    %v1736 = vadd.f32 %v1587, %v1735
    %v1737 = vpop.f32.mrf.mxu0
    %1738 = vmatprep.mubr.f32.mxu0 0.0
    %1739 = vmatmul.mubr.f32.gmra.mxu0 %v1510
    %v1740 = vpop.f32.mrf.mxu0
    %v1741 = vadd.f32 %v1587, %v1740
    %v1742 = vpop.f32.mrf.mxu0
    %1743 = vmatprep.mubr.f32.mxu0 0.0
    %1744 = vmatmul.mubr.f32.gmra.mxu0 %v1515
    %v1745 = vpop.f32.mrf.mxu0
    %v1746 = vadd.f32 %v1587, %v1745
    %v1747 = vpop.f32.mrf.mxu0
    %1748 = vmatprep.mubr.f32.mxu0 0.0
    %1749 = vmatmul.mubr.f32.gmra.mxu0 %v1520
    %v1750 = vpop.f32.mrf.mxu0
    %v1751 = vadd.f32 %v1587, %v1750
    %v1752 = vpop.f32.mrf.mxu0
    %1753 = vmatprep.mubr.f32.mxu0 0.0
    %1754 = vmatmul.mubr.f32.gmra.mxu0 %v1525
    %v1755 = vpop.f32.mrf.mxu0
    %v1756 = vadd.f32 %v1587, %v1755
    %v1757 = vpop.f32.mrf.mxu0
    %1758 = vmatprep.mubr.f32.mxu0 0.0
    %1759 = vmatmul.mubr.f32.gmra.mxu0 %v1530
    %v1760 = vpop.f32.mrf.mxu0
    %v1761 = vadd.f32 %v1587, %v1760
    %v1762 = vpop.f32.mrf.mxu0
    %1763 = vmatprep.mubr.f32.mxu0 0.0
    %1764 = vmatmul.mubr.f32.gmra.mxu0 %v1535
    %v1765 = vpop.f32.mrf.mxu0
    %v1766 = vadd.f32 %v1587, %v1765
    %v1767 = vpop.f32.mrf.mxu0
    %1768 = vmatprep.mubr.f32.mxu0 0.0
    %1769 = vmatmul.mubr.f32.gmra.mxu0 %v1540
    %v1770 = vpop.f32.mrf.mxu0
    %v1771 = vadd.f32 %v1587, %v1770
    %v1772 = vpop.f32.mrf.mxu0
    %1773 = vmatprep.mubr.f32.mxu0 0.0
    %1774 = vmatmul.mubr.f32.gmra.mxu0 %v1545
    %v1775 = vpop.f32.mrf.mxu0
    %v1776 = vadd.f32 %v1587, %v1775
    %v1777 = vpop.f32.mrf.mxu0
    %1778 = vmatprep.mubr.f32.mxu0 0.0
    %1779 = vmatmul.mubr.f32.gmra.mxu0 %v1550
    %v1780 = vpop.f32.mrf.mxu0
    %v1781 = vadd.f32 %v1587, %v1780
    %v1782 = vpop.f32.mrf.mxu0
    %1783 = vmatprep.mubr.f32.mxu0 0.0
    %1784 = vmatmul.mubr.f32.gmra.mxu0 %v1555
    %v1785 = vpop.f32.mrf.mxu0
    %v1786 = vadd.f32 %v1587, %v1785
    %v1787 = vpop.f32.mrf.mxu0
    %1788 = vmatprep.mubr.f32.mxu0 0.0
    %1789 = vmatmul.mubr.f32.gmra.mxu0 %v1560
    %v1790 = vpop.f32.mrf.mxu0
    %v1791 = vadd.f32 %v1587, %v1790
    %v1792 = vpop.f32.mrf.mxu0
    %1793 = vmatprep.mubr.f32.mxu0 0.0
    %1794 = vmatmul.mubr.f32.gmra.mxu0 %v1565
    %v1795 = vpop.f32.mrf.mxu0
    %v1796 = vadd.f32 %v1587, %v1795
    %v1797 = vpop.f32.mrf.mxu0
    %1798 = vmatprep.mubr.f32.mxu0 0.0
    %1799 = vmatmul.mubr.f32.gmra.mxu0 %v1570
    %v1800 = vpop.f32.mrf.mxu0
    %v1801 = vadd.f32 %v1587, %v1800
    %v1802 = vpop.f32.mrf.mxu0
    %1803 = vmatprep.mubr.f32.mxu0 0.0
    %1804 = vmatmul.mubr.f32.gmra.mxu0 %v1575
    %v1805 = vpop.f32.mrf.mxu0
    %v1806 = vadd.f32 %v1587, %v1805
    %v1807 = vpop.f32.mrf.mxu0
    %1808 = vmatprep.mubr.f32.mxu0 0.0
    %1809 = vmatmul.mubr.f32.gmra.mxu0 %v1580
    %v1810 = vpop.f32.mrf.mxu0
    %v1811 = vadd.f32 %v1587, %v1810
    %v1812 = vpop.f32.mrf.mxu0
    %1813 = vdwg.mxu0
    %v1814 = vmax.f32 %v1656, 0.0
    %v1815 = vmax.f32 %v1661, 0.0
    %v1816 = vmax.f32 %v1666, 0.0
    %v1817 = vmax.f32 %v1671, 0.0
    %v1818 = vmax.f32 %v1676, 0.0
    %v1819 = vmax.f32 %v1681, 0.0
    %v1820 = vmax.f32 %v1686, 0.0
    %v1821 = vmax.f32 %v1691, 0.0
    %v1822 = vmax.f32 %v1696, 0.0
    %v1823 = vmax.f32 %v1701, 0.0
    %v1824 = vmax.f32 %v1706, 0.0
    %v1825 = vmax.f32 %v1711, 0.0
    %v1826 = vmax.f32 %v1716, 0.0
    %v1827 = vmax.f32 %v1721, 0.0
    %v1828 = vmax.f32 %v1726, 0.0
    %v1829 = vmax.f32 %v1731, 0.0
    %v1830 = vmax.f32 %v1736, 0.0
    %v1831 = vmax.f32 %v1741, 0.0
    %v1832 = vmax.f32 %v1746, 0.0
    %v1833 = vmax.f32 %v1751, 0.0
    %v1834 = vmax.f32 %v1756, 0.0
    %v1835 = vmax.f32 %v1761, 0.0
    %v1836 = vmax.f32 %v1766, 0.0
    %v1837 = vmax.f32 %v1771, 0.0
    %v1838 = vmax.f32 %v1776, 0.0
    %v1839 = vmax.f32 %v1781, 0.0
    %v1840 = vmax.f32 %v1786, 0.0
    %v1841 = vmax.f32 %v1791, 0.0
    %v1842 = vmax.f32 %v1796, 0.0
    %v1843 = vmax.f32 %v1801, 0.0
    %v1844 = vmax.f32 %v1806, 0.0
    %v1845 = vmax.f32 %v1811, 0.0
    %v1847 = vlaneseq
    %v1848 = vshrl.u32 %v1847, 7
    %v1849 = vsub.s32 0, %v1848
    %v1850 = vrot.slane %v315, %v1849
    %1852 = vmatprep.subr.mxu0 0.0
    %1853 = vmatpush1.msra.mxu0 %v314
    %1854 = vmatprep.subr.mxu0 0.0
    %1855 = vmatpush1.msra.mxu0 %v313
    %1856 = vmatprep.subr.mxu0 0.0
    %1857 = vmatpush1.msra.mxu0 %v312
    %1858 = vmatprep.subr.mxu0 0.0
    %1859 = vmatpush1.msra.mxu0 %v311
    %1860 = vmatprep.subr.mxu0 0.0
    %1861 = vmatpush1.msra.mxu0 %v310
    %1862 = vmatprep.subr.mxu0 0.0
    %1863 = vmatpush1.msra.mxu0 %v309
    %1864 = vmatprep.subr.mxu0 0.0
    %1865 = vmatpush1.msra.mxu0 %v308
    %1866 = vmatprep.subr.mxu0 0.0
    %1867 = vmatpush1.msra.mxu0 %v307
    %1868 = vmatprep.subr.mxu0 0.0
    %1869 = vmatpush1.msra.mxu0 %v306
    %1870 = vmatprep.subr.mxu0 0.0
    %1871 = vmatpush1.msra.mxu0 %v305
    %1872 = vmatprep.subr.mxu0 0.0
    %1873 = vmatpush1.msra.mxu0 %v304
    %1874 = vmatprep.subr.mxu0 0.0
    %1875 = vmatpush1.msra.mxu0 %v303
    %1876 = vmatprep.subr.mxu0 0.0
    %1877 = vmatpush1.msra.mxu0 %v302
    %1878 = vmatprep.subr.mxu0 0.0
    %1879 = vmatpush1.msra.mxu0 %v301
    %1880 = vmatprep.subr.mxu0 0.0
    %1881 = vmatpush1.msra.mxu0 %v300
    %1882 = vmatprep.subr.mxu0 0.0
    %1883 = vmatpush1.msra.mxu0 %v299
    %1884 = vmatprep.subr.mxu0 0.0
    %1885 = vmatpush2.msra.mxu0 0.0
    %1886 = vmatprep.subr.mxu0 0.0
    %1887 = vmatpush2.msra.mxu0 0.0
    %1888 = vmatprep.subr.mxu0 0.0
    %1889 = vmatpush2.msra.mxu0 0.0
    %1890 = vmatprep.subr.mxu0 0.0
    %1891 = vmatpush2.msra.mxu0 0.0
    %1892 = vmatprep.subr.mxu0 0.0
    %1893 = vmatpush2.msra.mxu0 0.0
    %1894 = vmatprep.subr.mxu0 0.0
    %1895 = vmatpush2.msra.mxu0 0.0
    %1896 = vmatprep.subr.mxu0 0.0
    %1897 = vmatpush2.msra.mxu0 0.0
    %1898 = vmatprep.subr.mxu0 0.0
    %1899 = vmatpush2.msra.mxu0 0.0
    %1900 = vmatprep.subr.mxu0 0.0
    %1901 = vmatpush2.msra.mxu0 0.0
    %1902 = vmatprep.subr.mxu0 0.0
    %1903 = vmatpush2.msra.mxu0 0.0
    %1904 = vmatprep.subr.mxu0 0.0
    %1905 = vmatpush2.msra.mxu0 0.0
    %1906 = vmatprep.subr.mxu0 0.0
    %1907 = vmatpush2.msra.mxu0 0.0
    %1908 = vmatprep.subr.mxu0 0.0
    %1909 = vmatpush2.msra.mxu0 0.0
    %1910 = vmatprep.subr.mxu0 0.0
    %1911 = vmatpush2.msra.mxu0 0.0
    %1912 = vmatprep.subr.mxu0 0.0
    %1913 = vmatpush2.msra.mxu0 0.0
    %1914 = vmatprep.subr.mxu0 0.0
    %1915 = vmatpush2.msra.mxu0 0.0
    %1916 = vmatprep.mubr.f32.mxu0 0.0
    %1917 = vmatmul.mubr.f32.gmra.mxu0 %v1814
    %v1918 = vpop.f32.mrf.mxu0
    %v1919 = vadd.f32 %v1850, %v1918
    %v1920 = vpop.f32.mrf.mxu0
    %1921 = vmatprep.mubr.f32.mxu0 0.0
    %1922 = vmatmul.mubr.f32.gmra.mxu0 %v1815
    %v1923 = vpop.f32.mrf.mxu0
    %v1924 = vadd.f32 %v1850, %v1923
    %v1925 = vpop.f32.mrf.mxu0
    %1926 = vmatprep.mubr.f32.mxu0 0.0
    %1927 = vmatmul.mubr.f32.gmra.mxu0 %v1816
    %v1928 = vpop.f32.mrf.mxu0
    %v1929 = vadd.f32 %v1850, %v1928
    %v1930 = vpop.f32.mrf.mxu0
    %1931 = vmatprep.mubr.f32.mxu0 0.0
    %1932 = vmatmul.mubr.f32.gmra.mxu0 %v1817
    %v1933 = vpop.f32.mrf.mxu0
    %v1934 = vadd.f32 %v1850, %v1933
    %v1935 = vpop.f32.mrf.mxu0
    %1936 = vmatprep.mubr.f32.mxu0 0.0
    %1937 = vmatmul.mubr.f32.gmra.mxu0 %v1818
    %v1938 = vpop.f32.mrf.mxu0
    %v1939 = vadd.f32 %v1850, %v1938
    %v1940 = vpop.f32.mrf.mxu0
    %1941 = vmatprep.mubr.f32.mxu0 0.0
    %1942 = vmatmul.mubr.f32.gmra.mxu0 %v1819
    %v1943 = vpop.f32.mrf.mxu0
    %v1944 = vadd.f32 %v1850, %v1943
    %v1945 = vpop.f32.mrf.mxu0
    %1946 = vmatprep.mubr.f32.mxu0 0.0
    %1947 = vmatmul.mubr.f32.gmra.mxu0 %v1820
    %v1948 = vpop.f32.mrf.mxu0
    %v1949 = vadd.f32 %v1850, %v1948
    %v1950 = vpop.f32.mrf.mxu0
    %1951 = vmatprep.mubr.f32.mxu0 0.0
    %1952 = vmatmul.mubr.f32.gmra.mxu0 %v1821
    %v1953 = vpop.f32.mrf.mxu0
    %v1954 = vadd.f32 %v1850, %v1953
    %v1955 = vpop.f32.mrf.mxu0
    %1956 = vmatprep.mubr.f32.mxu0 0.0
    %1957 = vmatmul.mubr.f32.gmra.mxu0 %v1822
    %v1958 = vpop.f32.mrf.mxu0
    %v1959 = vadd.f32 %v1850, %v1958
    %v1960 = vpop.f32.mrf.mxu0
    %1961 = vmatprep.mubr.f32.mxu0 0.0
    %1962 = vmatmul.mubr.f32.gmra.mxu0 %v1823
    %v1963 = vpop.f32.mrf.mxu0
    %v1964 = vadd.f32 %v1850, %v1963
    %v1965 = vpop.f32.mrf.mxu0
    %1966 = vmatprep.mubr.f32.mxu0 0.0
    %1967 = vmatmul.mubr.f32.gmra.mxu0 %v1824
    %v1968 = vpop.f32.mrf.mxu0
    %v1969 = vadd.f32 %v1850, %v1968
    %v1970 = vpop.f32.mrf.mxu0
    %1971 = vmatprep.mubr.f32.mxu0 0.0
    %1972 = vmatmul.mubr.f32.gmra.mxu0 %v1825
    %v1973 = vpop.f32.mrf.mxu0
    %v1974 = vadd.f32 %v1850, %v1973
    %v1975 = vpop.f32.mrf.mxu0
    %1976 = vmatprep.mubr.f32.mxu0 0.0
    %1977 = vmatmul.mubr.f32.gmra.mxu0 %v1826
    %v1978 = vpop.f32.mrf.mxu0
    %v1979 = vadd.f32 %v1850, %v1978
    %v1980 = vpop.f32.mrf.mxu0
    %1981 = vmatprep.mubr.f32.mxu0 0.0
    %1982 = vmatmul.mubr.f32.gmra.mxu0 %v1827
    %v1983 = vpop.f32.mrf.mxu0
    %v1984 = vadd.f32 %v1850, %v1983
    %v1985 = vpop.f32.mrf.mxu0
    %1986 = vmatprep.mubr.f32.mxu0 0.0
    %1987 = vmatmul.mubr.f32.gmra.mxu0 %v1828
    %v1988 = vpop.f32.mrf.mxu0
    %v1989 = vadd.f32 %v1850, %v1988
    %v1990 = vpop.f32.mrf.mxu0
    %1991 = vmatprep.mubr.f32.mxu0 0.0
    %1992 = vmatmul.mubr.f32.gmra.mxu0 %v1829
    %v1993 = vpop.f32.mrf.mxu0
    %v1994 = vadd.f32 %v1850, %v1993
    %v1995 = vpop.f32.mrf.mxu0
    %1996 = vmatprep.mubr.f32.mxu0 0.0
    %1997 = vmatmul.mubr.f32.gmra.mxu0 %v1830
    %v1998 = vpop.f32.mrf.mxu0
    %v1999 = vadd.f32 %v1850, %v1998
    %v2000 = vpop.f32.mrf.mxu0
    %2001 = vmatprep.mubr.f32.mxu0 0.0
    %2002 = vmatmul.mubr.f32.gmra.mxu0 %v1831
    %v2003 = vpop.f32.mrf.mxu0
    %v2004 = vadd.f32 %v1850, %v2003
    %v2005 = vpop.f32.mrf.mxu0
    %2006 = vmatprep.mubr.f32.mxu0 0.0
    %2007 = vmatmul.mubr.f32.gmra.mxu0 %v1832
    %v2008 = vpop.f32.mrf.mxu0
    %v2009 = vadd.f32 %v1850, %v2008
    %v2010 = vpop.f32.mrf.mxu0
    %2011 = vmatprep.mubr.f32.mxu0 0.0
    %2012 = vmatmul.mubr.f32.gmra.mxu0 %v1833
    %v2013 = vpop.f32.mrf.mxu0
    %v2014 = vadd.f32 %v1850, %v2013
    %v2015 = vpop.f32.mrf.mxu0
    %2016 = vmatprep.mubr.f32.mxu0 0.0
    %2017 = vmatmul.mubr.f32.gmra.mxu0 %v1834
    %v2018 = vpop.f32.mrf.mxu0
    %v2019 = vadd.f32 %v1850, %v2018
    %v2020 = vpop.f32.mrf.mxu0
    %2021 = vmatprep.mubr.f32.mxu0 0.0
    %2022 = vmatmul.mubr.f32.gmra.mxu0 %v1835
    %v2023 = vpop.f32.mrf.mxu0
    %v2024 = vadd.f32 %v1850, %v2023
    %v2025 = vpop.f32.mrf.mxu0
    %2026 = vmatprep.mubr.f32.mxu0 0.0
    %2027 = vmatmul.mubr.f32.gmra.mxu0 %v1836
    %v2028 = vpop.f32.mrf.mxu0
    %v2029 = vadd.f32 %v1850, %v2028
    %v2030 = vpop.f32.mrf.mxu0
    %2031 = vmatprep.mubr.f32.mxu0 0.0
    %2032 = vmatmul.mubr.f32.gmra.mxu0 %v1837
    %v2033 = vpop.f32.mrf.mxu0
    %v2034 = vadd.f32 %v1850, %v2033
    %v2035 = vpop.f32.mrf.mxu0
    %2036 = vmatprep.mubr.f32.mxu0 0.0
    %2037 = vmatmul.mubr.f32.gmra.mxu0 %v1838
    %v2038 = vpop.f32.mrf.mxu0
    %v2039 = vadd.f32 %v1850, %v2038
    %v2040 = vpop.f32.mrf.mxu0
    %2041 = vmatprep.mubr.f32.mxu0 0.0
    %2042 = vmatmul.mubr.f32.gmra.mxu0 %v1839
    %v2043 = vpop.f32.mrf.mxu0
    %v2044 = vadd.f32 %v1850, %v2043
    %v2045 = vpop.f32.mrf.mxu0
    %2046 = vmatprep.mubr.f32.mxu0 0.0
    %2047 = vmatmul.mubr.f32.gmra.mxu0 %v1840
    %v2048 = vpop.f32.mrf.mxu0
    %v2049 = vadd.f32 %v1850, %v2048
    %v2050 = vpop.f32.mrf.mxu0
    %2051 = vmatprep.mubr.f32.mxu0 0.0
    %2052 = vmatmul.mubr.f32.gmra.mxu0 %v1841
    %v2053 = vpop.f32.mrf.mxu0
    %v2054 = vadd.f32 %v1850, %v2053
    %v2055 = vpop.f32.mrf.mxu0
    %2056 = vmatprep.mubr.f32.mxu0 0.0
    %2057 = vmatmul.mubr.f32.gmra.mxu0 %v1842
    %v2058 = vpop.f32.mrf.mxu0
    %v2059 = vadd.f32 %v1850, %v2058
    %v2060 = vpop.f32.mrf.mxu0
    %2061 = vmatprep.mubr.f32.mxu0 0.0
    %2062 = vmatmul.mubr.f32.gmra.mxu0 %v1843
    %v2063 = vpop.f32.mrf.mxu0
    %v2064 = vadd.f32 %v1850, %v2063
    %v2065 = vpop.f32.mrf.mxu0
    %2066 = vmatprep.mubr.f32.mxu0 0.0
    %2067 = vmatmul.mubr.f32.gmra.mxu0 %v1844
    %v2068 = vpop.f32.mrf.mxu0
    %v2069 = vadd.f32 %v1850, %v2068
    %v2070 = vpop.f32.mrf.mxu0
    %2071 = vmatprep.mubr.f32.mxu0 0.0
    %2072 = vmatmul.mubr.f32.gmra.mxu0 %v1845
    %v2073 = vpop.f32.mrf.mxu0
    %v2074 = vadd.f32 %v1850, %v2073
    %v2075 = vpop.f32.mrf.mxu0
    %2076 = vdwg.mxu0
    %v2077 = vmul.f32 %v331, 0.1
    %v2078 = vmul.f32 %v332, 0.1
    %v2079 = vmul.f32 %v333, 0.1
    %v2080 = vmul.f32 %v334, 0.1
    %v2081 = vmul.f32 %v335, 0.1
    %v2082 = vmul.f32 %v336, 0.1
    %v2083 = vmul.f32 %v337, 0.1
    %v2084 = vmul.f32 %v338, 0.1
    %v2085 = vmul.f32 %v339, 0.1
    %v2086 = vmul.f32 %v340, 0.1
    %v2087 = vmul.f32 %v341, 0.1
    %v2088 = vmul.f32 %v342, 0.1
    %v2089 = vmul.f32 %v343, 0.1
    %v2090 = vmul.f32 %v344, 0.1
    %v2091 = vmul.f32 %v345, 0.1
    %v2092 = vmul.f32 %v346, 0.1
    %v2093 = vmul.f32 %v347, 0.1
    %v2094 = vmul.f32 %v348, 0.1
    %v2095 = vmul.f32 %v349, 0.1
    %v2096 = vmul.f32 %v350, 0.1
    %v2097 = vmul.f32 %v351, 0.1
    %v2098 = vmul.f32 %v352, 0.1
    %v2099 = vmul.f32 %v353, 0.1
    %v2100 = vmul.f32 %v354, 0.1
    %v2101 = vmul.f32 %v355, 0.1
    %v2102 = vmul.f32 %v356, 0.1
    %v2103 = vmul.f32 %v357, 0.1
    %v2104 = vmul.f32 %v358, 0.1
    %v2105 = vmul.f32 %v359, 0.1
    %v2106 = vmul.f32 %v360, 0.1
    %v2107 = vmul.f32 %v361, 0.1
    %v2108 = vmul.f32 %v362, 0.1
    %v2109 = vadd.f32 %v1919, %v2077
    %v2110 = vadd.f32 %v1924, %v2078
    %v2111 = vadd.f32 %v1929, %v2079
    %v2112 = vadd.f32 %v1934, %v2080
    %v2113 = vadd.f32 %v1939, %v2081
    %v2114 = vadd.f32 %v1944, %v2082
    %v2115 = vadd.f32 %v1949, %v2083
    %v2116 = vadd.f32 %v1954, %v2084
    %v2117 = vadd.f32 %v1959, %v2085
    %v2118 = vadd.f32 %v1964, %v2086
    %v2119 = vadd.f32 %v1969, %v2087
    %v2120 = vadd.f32 %v1974, %v2088
    %v2121 = vadd.f32 %v1979, %v2089
    %v2122 = vadd.f32 %v1984, %v2090
    %v2123 = vadd.f32 %v1989, %v2091
    %v2124 = vadd.f32 %v1994, %v2092
    %v2125 = vadd.f32 %v1999, %v2093
    %v2126 = vadd.f32 %v2004, %v2094
    %v2127 = vadd.f32 %v2009, %v2095
    %v2128 = vadd.f32 %v2014, %v2096
    %v2129 = vadd.f32 %v2019, %v2097
    %v2130 = vadd.f32 %v2024, %v2098
    %v2131 = vadd.f32 %v2029, %v2099
    %v2132 = vadd.f32 %v2034, %v2100
    %v2133 = vadd.f32 %v2039, %v2101
    %v2134 = vadd.f32 %v2044, %v2102
    %v2135 = vadd.f32 %v2049, %v2103
    %v2136 = vadd.f32 %v2054, %v2104
    %v2137 = vadd.f32 %v2059, %v2105
    %v2138 = vadd.f32 %v2064, %v2106
    %v2139 = vadd.f32 %v2069, %v2107
    %v2140 = vadd.f32 %v2074, %v2108
    %2141 = vadd.xlane.f32.xlu0 %v2109
    %v2142 = vpop.xlane.xlu0 %2141
    %2143 = vadd.xlane.f32.xlu0 %v2110
    %v2144 = vpop.xlane.xlu0 %2143
    %2145 = vadd.xlane.f32.xlu0 %v2111
    %v2146 = vpop.xlane.xlu0 %2145
    %2147 = vadd.xlane.f32.xlu0 %v2112
    %v2148 = vpop.xlane.xlu0 %2147
    %2149 = vadd.xlane.f32.xlu0 %v2113
    %v2150 = vpop.xlane.xlu0 %2149
    %2151 = vadd.xlane.f32.xlu0 %v2114
    %v2152 = vpop.xlane.xlu0 %2151
    %2153 = vadd.xlane.f32.xlu0 %v2115
    %v2154 = vpop.xlane.xlu0 %2153
    %2155 = vadd.xlane.f32.xlu0 %v2116
    %v2156 = vpop.xlane.xlu0 %2155
    %2157 = vadd.xlane.f32.xlu0 %v2117
    %v2158 = vpop.xlane.xlu0 %2157
    %2159 = vadd.xlane.f32.xlu0 %v2118
    %v2160 = vpop.xlane.xlu0 %2159
    %2161 = vadd.xlane.f32.xlu0 %v2119
    %v2162 = vpop.xlane.xlu0 %2161
    %2163 = vadd.xlane.f32.xlu0 %v2120
    %v2164 = vpop.xlane.xlu0 %2163
    %2165 = vadd.xlane.f32.xlu0 %v2121
    %v2166 = vpop.xlane.xlu0 %2165
    %2167 = vadd.xlane.f32.xlu0 %v2122
    %v2168 = vpop.xlane.xlu0 %2167
    %2169 = vadd.xlane.f32.xlu0 %v2123
    %v2170 = vpop.xlane.xlu0 %2169
    %2171 = vadd.xlane.f32.xlu0 %v2124
    %v2172 = vpop.xlane.xlu0 %2171
    %2173 = vadd.xlane.f32.xlu0 %v2125
    %v2174 = vpop.xlane.xlu0 %2173
    %2175 = vadd.xlane.f32.xlu0 %v2126
    %v2176 = vpop.xlane.xlu0 %2175
    %2177 = vadd.xlane.f32.xlu0 %v2127
    %v2178 = vpop.xlane.xlu0 %2177
    %2179 = vadd.xlane.f32.xlu0 %v2128
    %v2180 = vpop.xlane.xlu0 %2179
    %2181 = vadd.xlane.f32.xlu0 %v2129
    %v2182 = vpop.xlane.xlu0 %2181
    %2183 = vadd.xlane.f32.xlu0 %v2130
    %v2184 = vpop.xlane.xlu0 %2183
    %2185 = vadd.xlane.f32.xlu0 %v2131
    %v2186 = vpop.xlane.xlu0 %2185
    %2187 = vadd.xlane.f32.xlu0 %v2132
    %v2188 = vpop.xlane.xlu0 %2187
    %2189 = vadd.xlane.f32.xlu0 %v2133
    %v2190 = vpop.xlane.xlu0 %2189
    %2191 = vadd.xlane.f32.xlu0 %v2134
    %v2192 = vpop.xlane.xlu0 %2191
    %2193 = vadd.xlane.f32.xlu0 %v2135
    %v2194 = vpop.xlane.xlu0 %2193
    %2195 = vadd.xlane.f32.xlu0 %v2136
    %v2196 = vpop.xlane.xlu0 %2195
    %2197 = vadd.xlane.f32.xlu0 %v2137
    %v2198 = vpop.xlane.xlu0 %2197
    %2199 = vadd.xlane.f32.xlu0 %v2138
    %v2200 = vpop.xlane.xlu0 %2199
    %2201 = vadd.xlane.f32.xlu0 %v2139
    %v2202 = vpop.xlane.xlu0 %2201
    %2203 = vadd.xlane.f32.xlu0 %v2140
    %v2204 = vpop.xlane.xlu0 %2203
    %v2205 = vrcp.pop 128.0
    %v2206 = vmul.f32 %v2142, %v2205
    %v2207 = vmul.f32 %v2144, %v2205
    %v2208 = vmul.f32 %v2146, %v2205
    %v2209 = vmul.f32 %v2148, %v2205
    %v2210 = vmul.f32 %v2150, %v2205
    %v2211 = vmul.f32 %v2152, %v2205
    %v2212 = vmul.f32 %v2154, %v2205
    %v2213 = vmul.f32 %v2156, %v2205
    %v2214 = vmul.f32 %v2158, %v2205
    %v2215 = vmul.f32 %v2160, %v2205
    %v2216 = vmul.f32 %v2162, %v2205
    %v2217 = vmul.f32 %v2164, %v2205
    %v2218 = vmul.f32 %v2166, %v2205
    %v2219 = vmul.f32 %v2168, %v2205
    %v2220 = vmul.f32 %v2170, %v2205
    %v2221 = vmul.f32 %v2172, %v2205
    %v2222 = vmul.f32 %v2174, %v2205
    %v2223 = vmul.f32 %v2176, %v2205
    %v2224 = vmul.f32 %v2178, %v2205
    %v2225 = vmul.f32 %v2180, %v2205
    %v2226 = vmul.f32 %v2182, %v2205
    %v2227 = vmul.f32 %v2184, %v2205
    %v2228 = vmul.f32 %v2186, %v2205
    %v2229 = vmul.f32 %v2188, %v2205
    %v2230 = vmul.f32 %v2190, %v2205
    %v2231 = vmul.f32 %v2192, %v2205
    %v2232 = vmul.f32 %v2194, %v2205
    %v2233 = vmul.f32 %v2196, %v2205
    %v2234 = vmul.f32 %v2198, %v2205
    %v2235 = vmul.f32 %v2200, %v2205
    %v2236 = vmul.f32 %v2202, %v2205
    %v2237 = vmul.f32 %v2204, %v2205
    %v2238 = vsub.f32 %v2109, %v2206
    %v2239 = vsub.f32 %v2110, %v2207
    %v2240 = vsub.f32 %v2111, %v2208
    %v2241 = vsub.f32 %v2112, %v2209
    %v2242 = vsub.f32 %v2113, %v2210
    %v2243 = vsub.f32 %v2114, %v2211
    %v2244 = vsub.f32 %v2115, %v2212
    %v2245 = vsub.f32 %v2116, %v2213
    %v2246 = vsub.f32 %v2117, %v2214
    %v2247 = vsub.f32 %v2118, %v2215
    %v2248 = vsub.f32 %v2119, %v2216
    %v2249 = vsub.f32 %v2120, %v2217
    %v2250 = vsub.f32 %v2121, %v2218
    %v2251 = vsub.f32 %v2122, %v2219
    %v2252 = vsub.f32 %v2123, %v2220
    %v2253 = vsub.f32 %v2124, %v2221
    %v2254 = vsub.f32 %v2125, %v2222
    %v2255 = vsub.f32 %v2126, %v2223
    %v2256 = vsub.f32 %v2127, %v2224
    %v2257 = vsub.f32 %v2128, %v2225
    %v2258 = vsub.f32 %v2129, %v2226
    %v2259 = vsub.f32 %v2130, %v2227
    %v2260 = vsub.f32 %v2131, %v2228
    %v2261 = vsub.f32 %v2132, %v2229
    %v2262 = vsub.f32 %v2133, %v2230
    %v2263 = vsub.f32 %v2134, %v2231
    %v2264 = vsub.f32 %v2135, %v2232
    %v2265 = vsub.f32 %v2136, %v2233
    %v2266 = vsub.f32 %v2137, %v2234
    %v2267 = vsub.f32 %v2138, %v2235
    %v2268 = vsub.f32 %v2139, %v2236
    %v2269 = vsub.f32 %v2140, %v2237
    %v2270 = vmul.f32 %v2238, %v2238
    %v2271 = vmul.f32 %v2239, %v2239
    %v2272 = vmul.f32 %v2240, %v2240
    %v2273 = vmul.f32 %v2241, %v2241
    %v2274 = vmul.f32 %v2242, %v2242
    %v2275 = vmul.f32 %v2243, %v2243
    %v2276 = vmul.f32 %v2244, %v2244
    %v2277 = vmul.f32 %v2245, %v2245
    %v2278 = vmul.f32 %v2246, %v2246
    %v2279 = vmul.f32 %v2247, %v2247
    %v2280 = vmul.f32 %v2248, %v2248
    %v2281 = vmul.f32 %v2249, %v2249
    %v2282 = vmul.f32 %v2250, %v2250
    %v2283 = vmul.f32 %v2251, %v2251
    %v2284 = vmul.f32 %v2252, %v2252
    %v2285 = vmul.f32 %v2253, %v2253
    %v2286 = vmul.f32 %v2254, %v2254
    %v2287 = vmul.f32 %v2255, %v2255
    %v2288 = vmul.f32 %v2256, %v2256
    %v2289 = vmul.f32 %v2257, %v2257
    %v2290 = vmul.f32 %v2258, %v2258
    %v2291 = vmul.f32 %v2259, %v2259
    %v2292 = vmul.f32 %v2260, %v2260
    %v2293 = vmul.f32 %v2261, %v2261
    %v2294 = vmul.f32 %v2262, %v2262
    %v2295 = vmul.f32 %v2263, %v2263
    %v2296 = vmul.f32 %v2264, %v2264
    %v2297 = vmul.f32 %v2265, %v2265
    %v2298 = vmul.f32 %v2266, %v2266
    %v2299 = vmul.f32 %v2267, %v2267
    %v2300 = vmul.f32 %v2268, %v2268
    %v2301 = vmul.f32 %v2269, %v2269
    %2302 = vadd.xlane.f32.xlu0 %v2270
    %v2303 = vpop.xlane.xlu0 %2302
    %2304 = vadd.xlane.f32.xlu0 %v2271
    %v2305 = vpop.xlane.xlu0 %2304
    %2306 = vadd.xlane.f32.xlu0 %v2272
    %v2307 = vpop.xlane.xlu0 %2306
    %2308 = vadd.xlane.f32.xlu0 %v2273
    %v2309 = vpop.xlane.xlu0 %2308
    %2310 = vadd.xlane.f32.xlu0 %v2274
    %v2311 = vpop.xlane.xlu0 %2310
    %2312 = vadd.xlane.f32.xlu0 %v2275
    %v2313 = vpop.xlane.xlu0 %2312
    %2314 = vadd.xlane.f32.xlu0 %v2276
    %v2315 = vpop.xlane.xlu0 %2314
    %2316 = vadd.xlane.f32.xlu0 %v2277
    %v2317 = vpop.xlane.xlu0 %2316
    %2318 = vadd.xlane.f32.xlu0 %v2278
    %v2319 = vpop.xlane.xlu0 %2318
    %2320 = vadd.xlane.f32.xlu0 %v2279
    %v2321 = vpop.xlane.xlu0 %2320
    %2322 = vadd.xlane.f32.xlu0 %v2280
    %v2323 = vpop.xlane.xlu0 %2322
    %2324 = vadd.xlane.f32.xlu0 %v2281
    %v2325 = vpop.xlane.xlu0 %2324
    %2326 = vadd.xlane.f32.xlu0 %v2282
    %v2327 = vpop.xlane.xlu0 %2326
    %2328 = vadd.xlane.f32.xlu0 %v2283
    %v2329 = vpop.xlane.xlu0 %2328
    %2330 = vadd.xlane.f32.xlu0 %v2284
    %v2331 = vpop.xlane.xlu0 %2330
    %2332 = vadd.xlane.f32.xlu0 %v2285
    %v2333 = vpop.xlane.xlu0 %2332
    %2334 = vadd.xlane.f32.xlu0 %v2286
    %v2335 = vpop.xlane.xlu0 %2334
    %2336 = vadd.xlane.f32.xlu0 %v2287
    %v2337 = vpop.xlane.xlu0 %2336
    %2338 = vadd.xlane.f32.xlu0 %v2288
    %v2339 = vpop.xlane.xlu0 %2338
    %2340 = vadd.xlane.f32.xlu0 %v2289
    %v2341 = vpop.xlane.xlu0 %2340
    %2342 = vadd.xlane.f32.xlu0 %v2290
    %v2343 = vpop.xlane.xlu0 %2342
    %2344 = vadd.xlane.f32.xlu0 %v2291
    %v2345 = vpop.xlane.xlu0 %2344
    %2346 = vadd.xlane.f32.xlu0 %v2292
    %v2347 = vpop.xlane.xlu0 %2346
    %2348 = vadd.xlane.f32.xlu0 %v2293
    %v2349 = vpop.xlane.xlu0 %2348
    %2350 = vadd.xlane.f32.xlu0 %v2294
    %v2351 = vpop.xlane.xlu0 %2350
    %2352 = vadd.xlane.f32.xlu0 %v2295
    %v2353 = vpop.xlane.xlu0 %2352
    %2354 = vadd.xlane.f32.xlu0 %v2296
    %v2355 = vpop.xlane.xlu0 %2354
    %2356 = vadd.xlane.f32.xlu0 %v2297
    %v2357 = vpop.xlane.xlu0 %2356
    %2358 = vadd.xlane.f32.xlu0 %v2298
    %v2359 = vpop.xlane.xlu0 %2358
    %2360 = vadd.xlane.f32.xlu0 %v2299
    %v2361 = vpop.xlane.xlu0 %2360
    %2362 = vadd.xlane.f32.xlu0 %v2300
    %v2363 = vpop.xlane.xlu0 %2362
    %2364 = vadd.xlane.f32.xlu0 %v2301
    %v2365 = vpop.xlane.xlu0 %2364
    %v2366 = vmul.f32 %v2303, %v2205
    %v2367 = vmul.f32 %v2305, %v2205
    %v2368 = vmul.f32 %v2307, %v2205
    %v2369 = vmul.f32 %v2309, %v2205
    %v2370 = vmul.f32 %v2311, %v2205
    %v2371 = vmul.f32 %v2313, %v2205
    %v2372 = vmul.f32 %v2315, %v2205
    %v2373 = vmul.f32 %v2317, %v2205
    %v2374 = vmul.f32 %v2319, %v2205
    %v2375 = vmul.f32 %v2321, %v2205
    %v2376 = vmul.f32 %v2323, %v2205
    %v2377 = vmul.f32 %v2325, %v2205
    %v2378 = vmul.f32 %v2327, %v2205
    %v2379 = vmul.f32 %v2329, %v2205
    %v2380 = vmul.f32 %v2331, %v2205
    %v2381 = vmul.f32 %v2333, %v2205
    %v2382 = vmul.f32 %v2335, %v2205
    %v2383 = vmul.f32 %v2337, %v2205
    %v2384 = vmul.f32 %v2339, %v2205
    %v2385 = vmul.f32 %v2341, %v2205
    %v2386 = vmul.f32 %v2343, %v2205
    %v2387 = vmul.f32 %v2345, %v2205
    %v2388 = vmul.f32 %v2347, %v2205
    %v2389 = vmul.f32 %v2349, %v2205
    %v2390 = vmul.f32 %v2351, %v2205
    %v2391 = vmul.f32 %v2353, %v2205
    %v2392 = vmul.f32 %v2355, %v2205
    %v2393 = vmul.f32 %v2357, %v2205
    %v2394 = vmul.f32 %v2359, %v2205
    %v2395 = vmul.f32 %v2361, %v2205
    %v2396 = vmul.f32 %v2363, %v2205
    %v2397 = vmul.f32 %v2365, %v2205
    %v2398 = vadd.f32 %v2366, 1e-05
    %v2399 = vadd.f32 %v2367, 1e-05
    %v2400 = vadd.f32 %v2368, 1e-05
    %v2401 = vadd.f32 %v2369, 1e-05
    %v2402 = vadd.f32 %v2370, 1e-05
    %v2403 = vadd.f32 %v2371, 1e-05
    %v2404 = vadd.f32 %v2372, 1e-05
    %v2405 = vadd.f32 %v2373, 1e-05
    %v2406 = vadd.f32 %v2374, 1e-05
    %v2407 = vadd.f32 %v2375, 1e-05
    %v2408 = vadd.f32 %v2376, 1e-05
    %v2409 = vadd.f32 %v2377, 1e-05
    %v2410 = vadd.f32 %v2378, 1e-05
    %v2411 = vadd.f32 %v2379, 1e-05
    %v2412 = vadd.f32 %v2380, 1e-05
    %v2413 = vadd.f32 %v2381, 1e-05
    %v2414 = vadd.f32 %v2382, 1e-05
    %v2415 = vadd.f32 %v2383, 1e-05
    %v2416 = vadd.f32 %v2384, 1e-05
    %v2417 = vadd.f32 %v2385, 1e-05
    %v2418 = vadd.f32 %v2386, 1e-05
    %v2419 = vadd.f32 %v2387, 1e-05
    %v2420 = vadd.f32 %v2388, 1e-05
    %v2421 = vadd.f32 %v2389, 1e-05
    %v2422 = vadd.f32 %v2390, 1e-05
    %v2423 = vadd.f32 %v2391, 1e-05
    %v2424 = vadd.f32 %v2392, 1e-05
    %v2425 = vadd.f32 %v2393, 1e-05
    %v2426 = vadd.f32 %v2394, 1e-05
    %v2427 = vadd.f32 %v2395, 1e-05
    %v2428 = vadd.f32 %v2396, 1e-05
    %v2429 = vadd.f32 %v2397, 1e-05
    %v2430 = vrsqrt.pop %v2398
    %v2431 = vrsqrt.pop %v2399
    %v2432 = vrsqrt.pop %v2400
    %v2433 = vrsqrt.pop %v2401
    %v2434 = vrsqrt.pop %v2402
    %v2435 = vrsqrt.pop %v2403
    %v2436 = vrsqrt.pop %v2404
    %v2437 = vrsqrt.pop %v2405
    %v2438 = vrsqrt.pop %v2406
    %v2439 = vrsqrt.pop %v2407
    %v2440 = vrsqrt.pop %v2408
    %v2441 = vrsqrt.pop %v2409
    %v2442 = vrsqrt.pop %v2410
    %v2443 = vrsqrt.pop %v2411
    %v2444 = vrsqrt.pop %v2412
    %v2445 = vrsqrt.pop %v2413
    %v2446 = vrsqrt.pop %v2414
    %v2447 = vrsqrt.pop %v2415
    %v2448 = vrsqrt.pop %v2416
    %v2449 = vrsqrt.pop %v2417
    %v2450 = vrsqrt.pop %v2418
    %v2451 = vrsqrt.pop %v2419
    %v2452 = vrsqrt.pop %v2420
    %v2453 = vrsqrt.pop %v2421
    %v2454 = vrsqrt.pop %v2422
    %v2455 = vrsqrt.pop %v2423
    %v2456 = vrsqrt.pop %v2424
    %v2457 = vrsqrt.pop %v2425
    %v2458 = vrsqrt.pop %v2426
    %v2459 = vrsqrt.pop %v2427
    %v2460 = vrsqrt.pop %v2428
    %v2461 = vrsqrt.pop %v2429
    %v2462 = vmul.f32 %v2238, %v2430
    %v2463 = vmul.f32 %v2239, %v2431
    %v2464 = vmul.f32 %v2240, %v2432
    %v2465 = vmul.f32 %v2241, %v2433
    %v2466 = vmul.f32 %v2242, %v2434
    %v2467 = vmul.f32 %v2243, %v2435
    %v2468 = vmul.f32 %v2244, %v2436
    %v2469 = vmul.f32 %v2245, %v2437
    %v2470 = vmul.f32 %v2246, %v2438
    %v2471 = vmul.f32 %v2247, %v2439
    %v2472 = vmul.f32 %v2248, %v2440
    %v2473 = vmul.f32 %v2249, %v2441
    %v2474 = vmul.f32 %v2250, %v2442
    %v2475 = vmul.f32 %v2251, %v2443
    %v2476 = vmul.f32 %v2252, %v2444
    %v2477 = vmul.f32 %v2253, %v2445
    %v2478 = vmul.f32 %v2254, %v2446
    %v2479 = vmul.f32 %v2255, %v2447
    %v2480 = vmul.f32 %v2256, %v2448
    %v2481 = vmul.f32 %v2257, %v2449
    %v2482 = vmul.f32 %v2258, %v2450
    %v2483 = vmul.f32 %v2259, %v2451
    %v2484 = vmul.f32 %v2260, %v2452
    %v2485 = vmul.f32 %v2261, %v2453
    %v2486 = vmul.f32 %v2262, %v2454
    %v2487 = vmul.f32 %v2263, %v2455
    %v2488 = vmul.f32 %v2264, %v2456
    %v2489 = vmul.f32 %v2265, %v2457
    %v2490 = vmul.f32 %v2266, %v2458
    %v2491 = vmul.f32 %v2267, %v2459
    %v2492 = vmul.f32 %v2268, %v2460
    %v2493 = vmul.f32 %v2269, %v2461
    %v2495 = vlaneseq
    %v2496 = vshrl.u32 %v2495, 7
    %v2497 = vsub.s32 0, %v2496
    %v2498 = vrot.slane %v316, %v2497
    %v2500 = vmul.f32 %v2462, %v2498
    %v2501 = vmul.f32 %v2463, %v2498
    %v2502 = vmul.f32 %v2464, %v2498
    %v2503 = vmul.f32 %v2465, %v2498
    %v2504 = vmul.f32 %v2466, %v2498
    %v2505 = vmul.f32 %v2467, %v2498
    %v2506 = vmul.f32 %v2468, %v2498
    %v2507 = vmul.f32 %v2469, %v2498
    %v2508 = vmul.f32 %v2470, %v2498
    %v2509 = vmul.f32 %v2471, %v2498
    %v2510 = vmul.f32 %v2472, %v2498
    %v2511 = vmul.f32 %v2473, %v2498
    %v2512 = vmul.f32 %v2474, %v2498
    %v2513 = vmul.f32 %v2475, %v2498
    %v2514 = vmul.f32 %v2476, %v2498
    %v2515 = vmul.f32 %v2477, %v2498
    %v2516 = vmul.f32 %v2478, %v2498
    %v2517 = vmul.f32 %v2479, %v2498
    %v2518 = vmul.f32 %v2480, %v2498
    %v2519 = vmul.f32 %v2481, %v2498
    %v2520 = vmul.f32 %v2482, %v2498
    %v2521 = vmul.f32 %v2483, %v2498
    %v2522 = vmul.f32 %v2484, %v2498
    %v2523 = vmul.f32 %v2485, %v2498
    %v2524 = vmul.f32 %v2486, %v2498
    %v2525 = vmul.f32 %v2487, %v2498
    %v2526 = vmul.f32 %v2488, %v2498
    %v2527 = vmul.f32 %v2489, %v2498
    %v2528 = vmul.f32 %v2490, %v2498
    %v2529 = vmul.f32 %v2491, %v2498
    %v2530 = vmul.f32 %v2492, %v2498
    %v2531 = vmul.f32 %v2493, %v2498
    %v2533 = vlaneseq
    %v2534 = vshrl.u32 %v2533, 7
    %v2535 = vsub.s32 0, %v2534
    %v2536 = vrot.slane %v317, %v2535
    %v2538 = vadd.f32 %v2500, %v2536
    %v2539 = vadd.f32 %v2501, %v2536
    %v2540 = vadd.f32 %v2502, %v2536
    %v2541 = vadd.f32 %v2503, %v2536
    %v2542 = vadd.f32 %v2504, %v2536
    %v2543 = vadd.f32 %v2505, %v2536
    %v2544 = vadd.f32 %v2506, %v2536
    %v2545 = vadd.f32 %v2507, %v2536
    %v2546 = vadd.f32 %v2508, %v2536
    %v2547 = vadd.f32 %v2509, %v2536
    %v2548 = vadd.f32 %v2510, %v2536
    %v2549 = vadd.f32 %v2511, %v2536
    %v2550 = vadd.f32 %v2512, %v2536
    %v2551 = vadd.f32 %v2513, %v2536
    %v2552 = vadd.f32 %v2514, %v2536
    %v2553 = vadd.f32 %v2515, %v2536
    %v2554 = vadd.f32 %v2516, %v2536
    %v2555 = vadd.f32 %v2517, %v2536
    %v2556 = vadd.f32 %v2518, %v2536
    %v2557 = vadd.f32 %v2519, %v2536
    %v2558 = vadd.f32 %v2520, %v2536
    %v2559 = vadd.f32 %v2521, %v2536
    %v2560 = vadd.f32 %v2522, %v2536
    %v2561 = vadd.f32 %v2523, %v2536
    %v2562 = vadd.f32 %v2524, %v2536
    %v2563 = vadd.f32 %v2525, %v2536
    %v2564 = vadd.f32 %v2526, %v2536
    %v2565 = vadd.f32 %v2527, %v2536
    %v2566 = vadd.f32 %v2528, %v2536
    %v2567 = vadd.f32 %v2529, %v2536
    %v2568 = vadd.f32 %v2530, %v2536
    %v2569 = vadd.f32 %v2531, %v2536
  $region74: #{rl_gnn1_forward.1} parent=0 // loop_footer
    %s330 = sadd.s32 1, %s326
  $region75: #{rl_gnn1_forward.1} parent=0 // loop_footer_branch
    %325 = sbr.rel target = $region71
  $region76: #{rl_gnn1_forward.1} parent=0 // loop_exit
    _
  %v2570 = vld [vmem:[%s13] sm:$0xff]
  %v2571 = vld [vmem:[%s13 + $0x8] sm:$0xff]
  %v2572 = vld [vmem:[%s13 + $0x10] sm:$0xff]
  %v2573 = vld [vmem:[%s13 + $0x18] sm:$0xff]
  %v2574 = vld [vmem:[%s13 + $0x20] sm:$0xff]
  %v2575 = vld [vmem:[%s13 + $0x28] sm:$0xff]
  %v2576 = vld [vmem:[%s13 + $0x30] sm:$0xff]
  %v2577 = vld [vmem:[%s13 + $0x38] sm:$0xff]
  %v2578 = vld [vmem:[%s13 + $0x40] sm:$0xff]
  %v2579 = vld [vmem:[%s13 + $0x48] sm:$0xff]
  %v2580 = vld [vmem:[%s13 + $0x50] sm:$0xff]
  %v2581 = vld [vmem:[%s13 + $0x58] sm:$0xff]
  %v2582 = vld [vmem:[%s13 + $0x60] sm:$0xff]
  %v2583 = vld [vmem:[%s13 + $0x68] sm:$0xff]
  %v2584 = vld [vmem:[%s13 + $0x70] sm:$0xff]
  %v2585 = vld [vmem:[%s13 + $0x78] sm:$0xff]
  %v2586 = vld [vmem:[%s13 + $0x80] sm:$0xff]
  %v2587 = vld [vmem:[%s13 + $0x88] sm:$0xff]
  %v2588 = vld [vmem:[%s13 + $0x90] sm:$0xff]
  %v2589 = vld [vmem:[%s13 + $0x98] sm:$0xff]
  %v2590 = vld [vmem:[%s13 + $0xa0] sm:$0xff]
  %v2591 = vld [vmem:[%s13 + $0xa8] sm:$0xff]
  %v2592 = vld [vmem:[%s13 + $0xb0] sm:$0xff]
  %v2593 = vld [vmem:[%s13 + $0xb8] sm:$0xff]
  %v2594 = vld [vmem:[%s13 + $0xc0] sm:$0xff]
  %v2595 = vld [vmem:[%s13 + $0xc8] sm:$0xff]
  %v2596 = vld [vmem:[%s13 + $0xd0] sm:$0xff]
  %v2597 = vld [vmem:[%s13 + $0xd8] sm:$0xff]
  %v2598 = vld [vmem:[%s13 + $0xe0] sm:$0xff]
  %v2599 = vld [vmem:[%s13 + $0xe8] sm:$0xff]
  %v2600 = vld [vmem:[%s13 + $0xf0] sm:$0xff]
  %v2601 = vld [vmem:[%s13 + $0xf8] sm:$0xff]
  %v2602 = vld [vmem:[%s13 + $0x100] sm:$0xff]
  %v2603 = vld [vmem:[%s13 + $0x108] sm:$0xff]
  %v2604 = vld [vmem:[%s13 + $0x110] sm:$0xff]
  %v2605 = vld [vmem:[%s13 + $0x118] sm:$0xff]
  %v2606 = vld [vmem:[%s13 + $0x120] sm:$0xff]
  %v2607 = vld [vmem:[%s13 + $0x128] sm:$0xff]
  %v2608 = vld [vmem:[%s13 + $0x130] sm:$0xff]
  %v2609 = vld [vmem:[%s13 + $0x138] sm:$0xff]
  %v2610 = vld [vmem:[%s13 + $0x140] sm:$0xff]
  %v2611 = vld [vmem:[%s13 + $0x148] sm:$0xff]
  %v2612 = vld [vmem:[%s13 + $0x150] sm:$0xff]
  %v2613 = vld [vmem:[%s13 + $0x158] sm:$0xff]
  %v2614 = vld [vmem:[%s13 + $0x160] sm:$0xff]
  %v2615 = vld [vmem:[%s13 + $0x168] sm:$0xff]
  %v2616 = vld [vmem:[%s13 + $0x170] sm:$0xff]
  %v2617 = vld [vmem:[%s13 + $0x178] sm:$0xff]
  %v2618 = vld [vmem:[%s13 + $0x180] sm:$0xff]
  %v2619 = vld [vmem:[%s13 + $0x188] sm:$0xff]
  %v2620 = vld [vmem:[%s13 + $0x190] sm:$0xff]
  %v2621 = vld [vmem:[%s13 + $0x198] sm:$0xff]
  %v2622 = vld [vmem:[%s13 + $0x1a0] sm:$0xff]
  %v2623 = vld [vmem:[%s13 + $0x1a8] sm:$0xff]
  %v2624 = vld [vmem:[%s13 + $0x1b0] sm:$0xff]
  %v2625 = vld [vmem:[%s13 + $0x1b8] sm:$0xff]
  %v2626 = vld [vmem:[%s13 + $0x1c0] sm:$0xff]
  %v2627 = vld [vmem:[%s13 + $0x1c8] sm:$0xff]
  %v2628 = vld [vmem:[%s13 + $0x1d0] sm:$0xff]
  %v2629 = vld [vmem:[%s13 + $0x1d8] sm:$0xff]
  %v2630 = vld [vmem:[%s13 + $0x1e0] sm:$0xff]
  %v2631 = vld [vmem:[%s13 + $0x1e8] sm:$0xff]
  %v2632 = vld [vmem:[%s13 + $0x1f0] sm:$0xff]
  %v2633 = vld [vmem:[%s13 + $0x1f8] sm:$0xff]
  %v2634 = vld [vmem:[%s13 + $0x200] sm:$0xff]
  %v2635 = vld [vmem:[%s13 + $0x208] sm:$0xff]
  %v2636 = vld [vmem:[%s13 + $0x210] sm:$0xff]
  %v2637 = vld [vmem:[%s13 + $0x218] sm:$0xff]
  %v2638 = vld [vmem:[%s13 + $0x220] sm:$0xff]
  %v2639 = vld [vmem:[%s13 + $0x228] sm:$0xff]
  %v2640 = vld [vmem:[%s13 + $0x230] sm:$0xff]
  %v2641 = vld [vmem:[%s13 + $0x238] sm:$0xff]
  %v2642 = vld [vmem:[%s13 + $0x240] sm:$0xff]
  %v2643 = vld [vmem:[%s13 + $0x248] sm:$0xff]
  %v2644 = vld [vmem:[%s13 + $0x250] sm:$0xff]
  %v2645 = vld [vmem:[%s13 + $0x258] sm:$0xff]
  %v2646 = vld [vmem:[%s13 + $0x260] sm:$0xff]
  %v2647 = vld [vmem:[%s13 + $0x268] sm:$0xff]
  %v2648 = vld [vmem:[%s13 + $0x270] sm:$0xff]
  %v2649 = vld [vmem:[%s13 + $0x278] sm:$0xff]
  %v2650 = vld [vmem:[%s13 + $0x280] sm:$0xff]
  %v2651 = vld [vmem:[%s13 + $0x288] sm:$0xff]
  %v2652 = vld [vmem:[%s13 + $0x290] sm:$0xff]
  %v2653 = vld [vmem:[%s13 + $0x298] sm:$0xff]
  %v2654 = vld [vmem:[%s13 + $0x2a0] sm:$0xff]
  %v2655 = vld [vmem:[%s13 + $0x2a8] sm:$0xff]
  %v2656 = vld [vmem:[%s13 + $0x2b0] sm:$0xff]
  %v2657 = vld [vmem:[%s13 + $0x2b8] sm:$0xff]
  %v2658 = vld [vmem:[%s13 + $0x2c0] sm:$0xff]
  %v2659 = vld [vmem:[%s13 + $0x2c8] sm:$0xff]
  %v2660 = vld [vmem:[%s13 + $0x2d0] sm:$0xff]
  %v2661 = vld [vmem:[%s13 + $0x2d8] sm:$0xff]
  %v2662 = vld [vmem:[%s13 + $0x2e0] sm:$0xff]
  %v2663 = vld [vmem:[%s13 + $0x2e8] sm:$0xff]
  %v2664 = vld [vmem:[%s13 + $0x2f0] sm:$0xff]
  %v2665 = vld [vmem:[%s13 + $0x2f8] sm:$0xff]
  %v2666 = vld [vmem:[%s13 + $0x300] sm:$0xff]
  %v2667 = vld [vmem:[%s13 + $0x308] sm:$0xff]
  %v2668 = vld [vmem:[%s13 + $0x310] sm:$0xff]
  %v2669 = vld [vmem:[%s13 + $0x318] sm:$0xff]
  %v2670 = vld [vmem:[%s13 + $0x320] sm:$0xff]
  %v2671 = vld [vmem:[%s13 + $0x328] sm:$0xff]
  %v2672 = vld [vmem:[%s13 + $0x330] sm:$0xff]
  %v2673 = vld [vmem:[%s13 + $0x338] sm:$0xff]
  %v2674 = vld [vmem:[%s13 + $0x340] sm:$0xff]
  %v2675 = vld [vmem:[%s13 + $0x348] sm:$0xff]
  %v2676 = vld [vmem:[%s13 + $0x350] sm:$0xff]
  %v2677 = vld [vmem:[%s13 + $0x358] sm:$0xff]
  %v2678 = vld [vmem:[%s13 + $0x360] sm:$0xff]
  %v2679 = vld [vmem:[%s13 + $0x368] sm:$0xff]
  %v2680 = vld [vmem:[%s13 + $0x370] sm:$0xff]
  %v2681 = vld [vmem:[%s13 + $0x378] sm:$0xff]
  %v2682 = vld [vmem:[%s13 + $0x380] sm:$0xff]
  %v2683 = vld [vmem:[%s13 + $0x388] sm:$0xff]
  %v2684 = vld [vmem:[%s13 + $0x390] sm:$0xff]
  %v2685 = vld [vmem:[%s13 + $0x398] sm:$0xff]
  %v2686 = vld [vmem:[%s13 + $0x3a0] sm:$0xff]
  %v2687 = vld [vmem:[%s13 + $0x3a8] sm:$0xff]
  %v2688 = vld [vmem:[%s13 + $0x3b0] sm:$0xff]
  %v2689 = vld [vmem:[%s13 + $0x3b8] sm:$0xff]
  %v2690 = vld [vmem:[%s13 + $0x3c0] sm:$0xff]
  %v2691 = vld [vmem:[%s13 + $0x3c8] sm:$0xff]
  %v2692 = vld [vmem:[%s13 + $0x3d0] sm:$0xff]
  %v2693 = vld [vmem:[%s13 + $0x3d8] sm:$0xff]
  %v2694 = vld [vmem:[%s13 + $0x3e0] sm:$0xff]
  %v2695 = vld [vmem:[%s13 + $0x3e8] sm:$0xff]
  %v2696 = vld [vmem:[%s13 + $0x3f0] sm:$0xff]
  %v2697 = vld [vmem:[%s13 + $0x3f8] sm:$0xff]
  %v2698 = vld [vmem:[%s14] sm:$0xf]
  %v2700 = vlaneseq
  %v2701 = vshrl.u32 %v2700, 7
  %v2702 = vsub.s32 0, %v2701
  %v2703 = vrot.slane %v2698, %v2702
  %v2704 = vlaneseq
  %v2705 = vshrl.u32 %v2704, 7
  %v2706 = vsub.s32 1, %v2705
  %v2707 = vrot.slane %v2698, %v2706
  %v2708 = vlaneseq
  %v2709 = vshrl.u32 %v2708, 7
  %v2710 = vsub.s32 2, %v2709
  %v2711 = vrot.slane %v2698, %v2710
  %v2712 = vlaneseq
  %v2713 = vshrl.u32 %v2712, 7
  %v2714 = vsub.s32 3, %v2713
  %v2715 = vrot.slane %v2698, %v2714
  %2720 = vmatprep.subr.mxu0 %v2631
  %2721 = vmatpush1.msra.mxu0 %v2630
  %2722 = vmatprep.subr.mxu0 %v2627
  %2723 = vmatpush1.msra.mxu0 %v2626
  %2724 = vmatprep.subr.mxu0 %v2623
  %2725 = vmatpush1.msra.mxu0 %v2622
  %2726 = vmatprep.subr.mxu0 %v2619
  %2727 = vmatpush1.msra.mxu0 %v2618
  %2728 = vmatprep.subr.mxu0 %v2615
  %2729 = vmatpush1.msra.mxu0 %v2614
  %2730 = vmatprep.subr.mxu0 %v2611
  %2731 = vmatpush1.msra.mxu0 %v2610
  %2732 = vmatprep.subr.mxu0 %v2607
  %2733 = vmatpush1.msra.mxu0 %v2606
  %2734 = vmatprep.subr.mxu0 %v2603
  %2735 = vmatpush1.msra.mxu0 %v2602
  %2736 = vmatprep.subr.mxu0 %v2599
  %2737 = vmatpush1.msra.mxu0 %v2598
  %2738 = vmatprep.subr.mxu0 %v2595
  %2739 = vmatpush1.msra.mxu0 %v2594
  %2740 = vmatprep.subr.mxu0 %v2591
  %2741 = vmatpush1.msra.mxu0 %v2590
  %2742 = vmatprep.subr.mxu0 %v2587
  %2743 = vmatpush1.msra.mxu0 %v2586
  %2744 = vmatprep.subr.mxu0 %v2583
  %2745 = vmatpush1.msra.mxu0 %v2582
  %2746 = vmatprep.subr.mxu0 %v2579
  %2747 = vmatpush1.msra.mxu0 %v2578
  %2748 = vmatprep.subr.mxu0 %v2575
  %2749 = vmatpush1.msra.mxu0 %v2574
  %2750 = vmatprep.subr.mxu0 %v2571
  %2751 = vmatpush1.msra.mxu0 %v2570
  %2752 = vmatprep.subr.mxu0 %v2695
  %2753 = vmatpush2.msra.mxu0 %v2694
  %2754 = vmatprep.subr.mxu0 %v2691
  %2755 = vmatpush2.msra.mxu0 %v2690
  %2756 = vmatprep.subr.mxu0 %v2687
  %2757 = vmatpush2.msra.mxu0 %v2686
  %2758 = vmatprep.subr.mxu0 %v2683
  %2759 = vmatpush2.msra.mxu0 %v2682
  %2760 = vmatprep.subr.mxu0 %v2679
  %2761 = vmatpush2.msra.mxu0 %v2678
  %2762 = vmatprep.subr.mxu0 %v2675
  %2763 = vmatpush2.msra.mxu0 %v2674
  %2764 = vmatprep.subr.mxu0 %v2671
  %2765 = vmatpush2.msra.mxu0 %v2670
  %2766 = vmatprep.subr.mxu0 %v2667
  %2767 = vmatpush2.msra.mxu0 %v2666
  %2768 = vmatprep.subr.mxu0 %v2663
  %2769 = vmatpush2.msra.mxu0 %v2662
  %2770 = vmatprep.subr.mxu0 %v2659
  %2771 = vmatpush2.msra.mxu0 %v2658
  %2772 = vmatprep.subr.mxu0 %v2655
  %2773 = vmatpush2.msra.mxu0 %v2654
  %2774 = vmatprep.subr.mxu0 %v2651
  %2775 = vmatpush2.msra.mxu0 %v2650
  %2776 = vmatprep.subr.mxu0 %v2647
  %2777 = vmatpush2.msra.mxu0 %v2646
  %2778 = vmatprep.subr.mxu0 %v2643
  %2779 = vmatpush2.msra.mxu0 %v2642
  %2780 = vmatprep.subr.mxu0 %v2639
  %2781 = vmatpush2.msra.mxu0 %v2638
  %2782 = vmatprep.subr.mxu0 %v2635
  %2783 = vmatpush2.msra.mxu0 %v2634
  %2784 = vmatprep.mubr.f32.mxu0 %v347
  %2785 = vmatmul.mubr.f32.gmra.mxu0 %v331
  %v2786 = vpop.f32.mrf.mxu0
  %v2787 = vadd.f32 %v2703, %v2786
  %v2788 = vpop.f32.mrf.mxu0
  %v2789 = vadd.f32 %v2707, %v2788
  %2790 = vmatprep.mubr.f32.mxu0 %v348
  %2791 = vmatmul.mubr.f32.gmra.mxu0 %v332
  %v2792 = vpop.f32.mrf.mxu0
  %v2793 = vadd.f32 %v2703, %v2792
  %v2794 = vpop.f32.mrf.mxu0
  %v2795 = vadd.f32 %v2707, %v2794
  %2796 = vmatprep.mubr.f32.mxu0 %v349
  %2797 = vmatmul.mubr.f32.gmra.mxu0 %v333
  %v2798 = vpop.f32.mrf.mxu0
  %v2799 = vadd.f32 %v2703, %v2798
  %v2800 = vpop.f32.mrf.mxu0
  %v2801 = vadd.f32 %v2707, %v2800
  %2802 = vmatprep.mubr.f32.mxu0 %v350
  %2803 = vmatmul.mubr.f32.gmra.mxu0 %v334
  %v2804 = vpop.f32.mrf.mxu0
  %v2805 = vadd.f32 %v2703, %v2804
  %v2806 = vpop.f32.mrf.mxu0
  %v2807 = vadd.f32 %v2707, %v2806
  %2808 = vmatprep.mubr.f32.mxu0 %v351
  %2809 = vmatmul.mubr.f32.gmra.mxu0 %v335
  %v2810 = vpop.f32.mrf.mxu0
  %v2811 = vadd.f32 %v2703, %v2810
  %v2812 = vpop.f32.mrf.mxu0
  %v2813 = vadd.f32 %v2707, %v2812
  %2814 = vmatprep.mubr.f32.mxu0 %v352
  %2815 = vmatmul.mubr.f32.gmra.mxu0 %v336
  %v2816 = vpop.f32.mrf.mxu0
  %v2817 = vadd.f32 %v2703, %v2816
  %v2818 = vpop.f32.mrf.mxu0
  %v2819 = vadd.f32 %v2707, %v2818
  %2820 = vmatprep.mubr.f32.mxu0 %v353
  %2821 = vmatmul.mubr.f32.gmra.mxu0 %v337
  %v2822 = vpop.f32.mrf.mxu0
  %v2823 = vadd.f32 %v2703, %v2822
  %v2824 = vpop.f32.mrf.mxu0
  %v2825 = vadd.f32 %v2707, %v2824
  %2826 = vmatprep.mubr.f32.mxu0 %v354
  %2827 = vmatmul.mubr.f32.gmra.mxu0 %v338
  %v2828 = vpop.f32.mrf.mxu0
  %v2829 = vadd.f32 %v2703, %v2828
  %v2830 = vpop.f32.mrf.mxu0
  %v2831 = vadd.f32 %v2707, %v2830
  %2832 = vmatprep.mubr.f32.mxu0 %v355
  %2833 = vmatmul.mubr.f32.gmra.mxu0 %v339
  %v2834 = vpop.f32.mrf.mxu0
  %v2835 = vadd.f32 %v2703, %v2834
  %v2836 = vpop.f32.mrf.mxu0
  %v2837 = vadd.f32 %v2707, %v2836
  %2838 = vmatprep.mubr.f32.mxu0 %v356
  %2839 = vmatmul.mubr.f32.gmra.mxu0 %v340
  %v2840 = vpop.f32.mrf.mxu0
  %v2841 = vadd.f32 %v2703, %v2840
  %v2842 = vpop.f32.mrf.mxu0
  %v2843 = vadd.f32 %v2707, %v2842
  %2844 = vmatprep.mubr.f32.mxu0 %v357
  %2845 = vmatmul.mubr.f32.gmra.mxu0 %v341
  %v2846 = vpop.f32.mrf.mxu0
  %v2847 = vadd.f32 %v2703, %v2846
  %v2848 = vpop.f32.mrf.mxu0
  %v2849 = vadd.f32 %v2707, %v2848
  %2850 = vmatprep.mubr.f32.mxu0 %v358
  %2851 = vmatmul.mubr.f32.gmra.mxu0 %v342
  %v2852 = vpop.f32.mrf.mxu0
  %v2853 = vadd.f32 %v2703, %v2852
  %v2854 = vpop.f32.mrf.mxu0
  %v2855 = vadd.f32 %v2707, %v2854
  %2856 = vmatprep.mubr.f32.mxu0 %v359
  %2857 = vmatmul.mubr.f32.gmra.mxu0 %v343
  %v2858 = vpop.f32.mrf.mxu0
  %v2859 = vadd.f32 %v2703, %v2858
  %v2860 = vpop.f32.mrf.mxu0
  %v2861 = vadd.f32 %v2707, %v2860
  %2862 = vmatprep.mubr.f32.mxu0 %v360
  %2863 = vmatmul.mubr.f32.gmra.mxu0 %v344
  %v2864 = vpop.f32.mrf.mxu0
  %v2865 = vadd.f32 %v2703, %v2864
  %v2866 = vpop.f32.mrf.mxu0
  %v2867 = vadd.f32 %v2707, %v2866
  %2868 = vmatprep.mubr.f32.mxu0 %v361
  %2869 = vmatmul.mubr.f32.gmra.mxu0 %v345
  %v2870 = vpop.f32.mrf.mxu0
  %v2871 = vadd.f32 %v2703, %v2870
  %v2872 = vpop.f32.mrf.mxu0
  %v2873 = vadd.f32 %v2707, %v2872
  %2874 = vmatprep.mubr.f32.mxu0 %v362
  %2875 = vmatmul.mubr.f32.gmra.mxu0 %v346
  %v2876 = vpop.f32.mrf.mxu0
  %v2877 = vadd.f32 %v2703, %v2876
  %v2878 = vpop.f32.mrf.mxu0
  %v2879 = vadd.f32 %v2707, %v2878
  %2880 = vdwg.mxu0
  %2881 = vmatprep.subr.mxu0 %v2633
  %2882 = vmatpush1.msra.mxu0 %v2632
  %2883 = vmatprep.subr.mxu0 %v2629
  %2884 = vmatpush1.msra.mxu0 %v2628
  %2885 = vmatprep.subr.mxu0 %v2625
  %2886 = vmatpush1.msra.mxu0 %v2624
  %2887 = vmatprep.subr.mxu0 %v2621
  %2888 = vmatpush1.msra.mxu0 %v2620
  %2889 = vmatprep.subr.mxu0 %v2617
  %2890 = vmatpush1.msra.mxu0 %v2616
  %2891 = vmatprep.subr.mxu0 %v2613
  %2892 = vmatpush1.msra.mxu0 %v2612
  %2893 = vmatprep.subr.mxu0 %v2609
  %2894 = vmatpush1.msra.mxu0 %v2608
  %2895 = vmatprep.subr.mxu0 %v2605
  %2896 = vmatpush1.msra.mxu0 %v2604
  %2897 = vmatprep.subr.mxu0 %v2601
  %2898 = vmatpush1.msra.mxu0 %v2600
  %2899 = vmatprep.subr.mxu0 %v2597
  %2900 = vmatpush1.msra.mxu0 %v2596
  %2901 = vmatprep.subr.mxu0 %v2593
  %2902 = vmatpush1.msra.mxu0 %v2592
  %2903 = vmatprep.subr.mxu0 %v2589
  %2904 = vmatpush1.msra.mxu0 %v2588
  %2905 = vmatprep.subr.mxu0 %v2585
  %2906 = vmatpush1.msra.mxu0 %v2584
  %2907 = vmatprep.subr.mxu0 %v2581
  %2908 = vmatpush1.msra.mxu0 %v2580
  %2909 = vmatprep.subr.mxu0 %v2577
  %2910 = vmatpush1.msra.mxu0 %v2576
  %2911 = vmatprep.subr.mxu0 %v2573
  %2912 = vmatpush1.msra.mxu0 %v2572
  %2913 = vmatprep.subr.mxu0 %v2697
  %2914 = vmatpush2.msra.mxu0 %v2696
  %2915 = vmatprep.subr.mxu0 %v2693
  %2916 = vmatpush2.msra.mxu0 %v2692
  %2917 = vmatprep.subr.mxu0 %v2689
  %2918 = vmatpush2.msra.mxu0 %v2688
  %2919 = vmatprep.subr.mxu0 %v2685
  %2920 = vmatpush2.msra.mxu0 %v2684
  %2921 = vmatprep.subr.mxu0 %v2681
  %2922 = vmatpush2.msra.mxu0 %v2680
  %2923 = vmatprep.subr.mxu0 %v2677
  %2924 = vmatpush2.msra.mxu0 %v2676
  %2925 = vmatprep.subr.mxu0 %v2673
  %2926 = vmatpush2.msra.mxu0 %v2672
  %2927 = vmatprep.subr.mxu0 %v2669
  %2928 = vmatpush2.msra.mxu0 %v2668
  %2929 = vmatprep.subr.mxu0 %v2665
  %2930 = vmatpush2.msra.mxu0 %v2664
  %2931 = vmatprep.subr.mxu0 %v2661
  %2932 = vmatpush2.msra.mxu0 %v2660
  %2933 = vmatprep.subr.mxu0 %v2657
  %2934 = vmatpush2.msra.mxu0 %v2656
  %2935 = vmatprep.subr.mxu0 %v2653
  %2936 = vmatpush2.msra.mxu0 %v2652
  %2937 = vmatprep.subr.mxu0 %v2649
  %2938 = vmatpush2.msra.mxu0 %v2648
  %2939 = vmatprep.subr.mxu0 %v2645
  %2940 = vmatpush2.msra.mxu0 %v2644
  %2941 = vmatprep.subr.mxu0 %v2641
  %2942 = vmatpush2.msra.mxu0 %v2640
  %2943 = vmatprep.subr.mxu0 %v2637
  %2944 = vmatpush2.msra.mxu0 %v2636
  %2945 = vmatprep.mubr.f32.mxu0 %v347
  %2946 = vmatmul.mubr.f32.gmra.mxu0 %v331
  %v2947 = vpop.f32.mrf.mxu0
  %v2948 = vadd.f32 %v2711, %v2947
  %v2949 = vpop.f32.mrf.mxu0
  %v2950 = vadd.f32 %v2715, %v2949
  %2951 = vmatprep.mubr.f32.mxu0 %v348
  %2952 = vmatmul.mubr.f32.gmra.mxu0 %v332
  %v2953 = vpop.f32.mrf.mxu0
  %v2954 = vadd.f32 %v2711, %v2953
  %v2955 = vpop.f32.mrf.mxu0
  %v2956 = vadd.f32 %v2715, %v2955
  %2957 = vmatprep.mubr.f32.mxu0 %v349
  %2958 = vmatmul.mubr.f32.gmra.mxu0 %v333
  %v2959 = vpop.f32.mrf.mxu0
  %v2960 = vadd.f32 %v2711, %v2959
  %v2961 = vpop.f32.mrf.mxu0
  %v2962 = vadd.f32 %v2715, %v2961
  %2963 = vmatprep.mubr.f32.mxu0 %v350
  %2964 = vmatmul.mubr.f32.gmra.mxu0 %v334
  %v2965 = vpop.f32.mrf.mxu0
  %v2966 = vadd.f32 %v2711, %v2965
  %v2967 = vpop.f32.mrf.mxu0
  %v2968 = vadd.f32 %v2715, %v2967
  %2969 = vmatprep.mubr.f32.mxu0 %v351
  %2970 = vmatmul.mubr.f32.gmra.mxu0 %v335
  %v2971 = vpop.f32.mrf.mxu0
  %v2972 = vadd.f32 %v2711, %v2971
  %v2973 = vpop.f32.mrf.mxu0
  %v2974 = vadd.f32 %v2715, %v2973
  %2975 = vmatprep.mubr.f32.mxu0 %v352
  %2976 = vmatmul.mubr.f32.gmra.mxu0 %v336
  %v2977 = vpop.f32.mrf.mxu0
  %v2978 = vadd.f32 %v2711, %v2977
  %v2979 = vpop.f32.mrf.mxu0
  %v2980 = vadd.f32 %v2715, %v2979
  %2981 = vmatprep.mubr.f32.mxu0 %v353
  %2982 = vmatmul.mubr.f32.gmra.mxu0 %v337
  %v2983 = vpop.f32.mrf.mxu0
  %v2984 = vadd.f32 %v2711, %v2983
  %v2985 = vpop.f32.mrf.mxu0
  %v2986 = vadd.f32 %v2715, %v2985
  %2987 = vmatprep.mubr.f32.mxu0 %v354
  %2988 = vmatmul.mubr.f32.gmra.mxu0 %v338
  %v2989 = vpop.f32.mrf.mxu0
  %v2990 = vadd.f32 %v2711, %v2989
  %v2991 = vpop.f32.mrf.mxu0
  %v2992 = vadd.f32 %v2715, %v2991
  %2993 = vmatprep.mubr.f32.mxu0 %v355
  %2994 = vmatmul.mubr.f32.gmra.mxu0 %v339
  %v2995 = vpop.f32.mrf.mxu0
  %v2996 = vadd.f32 %v2711, %v2995
  %v2997 = vpop.f32.mrf.mxu0
  %v2998 = vadd.f32 %v2715, %v2997
  %2999 = vmatprep.mubr.f32.mxu0 %v356
  %3000 = vmatmul.mubr.f32.gmra.mxu0 %v340
  %v3001 = vpop.f32.mrf.mxu0
  %v3002 = vadd.f32 %v2711, %v3001
  %v3003 = vpop.f32.mrf.mxu0
  %v3004 = vadd.f32 %v2715, %v3003
  %3005 = vmatprep.mubr.f32.mxu0 %v357
  %3006 = vmatmul.mubr.f32.gmra.mxu0 %v341
  %v3007 = vpop.f32.mrf.mxu0
  %v3008 = vadd.f32 %v2711, %v3007
  %v3009 = vpop.f32.mrf.mxu0
  %v3010 = vadd.f32 %v2715, %v3009
  %3011 = vmatprep.mubr.f32.mxu0 %v358
  %3012 = vmatmul.mubr.f32.gmra.mxu0 %v342
  %v3013 = vpop.f32.mrf.mxu0
  %v3014 = vadd.f32 %v2711, %v3013
  %v3015 = vpop.f32.mrf.mxu0
  %v3016 = vadd.f32 %v2715, %v3015
  %3017 = vmatprep.mubr.f32.mxu0 %v359
  %3018 = vmatmul.mubr.f32.gmra.mxu0 %v343
  %v3019 = vpop.f32.mrf.mxu0
  %v3020 = vadd.f32 %v2711, %v3019
  %v3021 = vpop.f32.mrf.mxu0
  %v3022 = vadd.f32 %v2715, %v3021
  %3023 = vmatprep.mubr.f32.mxu0 %v360
  %3024 = vmatmul.mubr.f32.gmra.mxu0 %v344
  %v3025 = vpop.f32.mrf.mxu0
  %v3026 = vadd.f32 %v2711, %v3025
  %v3027 = vpop.f32.mrf.mxu0
  %v3028 = vadd.f32 %v2715, %v3027
  %3029 = vmatprep.mubr.f32.mxu0 %v361
  %3030 = vmatmul.mubr.f32.gmra.mxu0 %v345
  %v3031 = vpop.f32.mrf.mxu0
  %v3032 = vadd.f32 %v2711, %v3031
  %v3033 = vpop.f32.mrf.mxu0
  %v3034 = vadd.f32 %v2715, %v3033
  %3035 = vmatprep.mubr.f32.mxu0 %v362
  %3036 = vmatmul.mubr.f32.gmra.mxu0 %v346
  %v3037 = vpop.f32.mrf.mxu0
  %v3038 = vadd.f32 %v2711, %v3037
  %v3039 = vpop.f32.mrf.mxu0
  %v3040 = vadd.f32 %v2715, %v3039
  %3041 = vdwg.mxu0
  %v3042 = vmax.f32 %v2787, 0.0
  %v3043 = vmax.f32 %v2789, 0.0
  %v3044 = vmax.f32 %v2948, 0.0
  %v3045 = vmax.f32 %v2950, 0.0
  %v3046 = vmax.f32 %v2793, 0.0
  %v3047 = vmax.f32 %v2795, 0.0
  %v3048 = vmax.f32 %v2954, 0.0
  %v3049 = vmax.f32 %v2956, 0.0
  %v3050 = vmax.f32 %v2799, 0.0
  %v3051 = vmax.f32 %v2801, 0.0
  %v3052 = vmax.f32 %v2960, 0.0
  %v3053 = vmax.f32 %v2962, 0.0
  %v3054 = vmax.f32 %v2805, 0.0
  %v3055 = vmax.f32 %v2807, 0.0
  %v3056 = vmax.f32 %v2966, 0.0
  %v3057 = vmax.f32 %v2968, 0.0
  %v3058 = vmax.f32 %v2811, 0.0
  %v3059 = vmax.f32 %v2813, 0.0
  %v3060 = vmax.f32 %v2972, 0.0
  %v3061 = vmax.f32 %v2974, 0.0
  %v3062 = vmax.f32 %v2817, 0.0
  %v3063 = vmax.f32 %v2819, 0.0
  %v3064 = vmax.f32 %v2978, 0.0
  %v3065 = vmax.f32 %v2980, 0.0
  %v3066 = vmax.f32 %v2823, 0.0
  %v3067 = vmax.f32 %v2825, 0.0
  %v3068 = vmax.f32 %v2984, 0.0
  %v3069 = vmax.f32 %v2986, 0.0
  %v3070 = vmax.f32 %v2829, 0.0
  %v3071 = vmax.f32 %v2831, 0.0
  %v3072 = vmax.f32 %v2990, 0.0
  %v3073 = vmax.f32 %v2992, 0.0
  %v3074 = vmax.f32 %v2835, 0.0
  %v3075 = vmax.f32 %v2837, 0.0
  %v3076 = vmax.f32 %v2996, 0.0
  %v3077 = vmax.f32 %v2998, 0.0
  %v3078 = vmax.f32 %v2841, 0.0
  %v3079 = vmax.f32 %v2843, 0.0
  %v3080 = vmax.f32 %v3002, 0.0
  %v3081 = vmax.f32 %v3004, 0.0
  %v3082 = vmax.f32 %v2847, 0.0
  %v3083 = vmax.f32 %v2849, 0.0
  %v3084 = vmax.f32 %v3008, 0.0
  %v3085 = vmax.f32 %v3010, 0.0
  %v3086 = vmax.f32 %v2853, 0.0
  %v3087 = vmax.f32 %v2855, 0.0
  %v3088 = vmax.f32 %v3014, 0.0
  %v3089 = vmax.f32 %v3016, 0.0
  %v3090 = vmax.f32 %v2859, 0.0
  %v3091 = vmax.f32 %v2861, 0.0
  %v3092 = vmax.f32 %v3020, 0.0
  %v3093 = vmax.f32 %v3022, 0.0
  %v3094 = vmax.f32 %v2865, 0.0
  %v3095 = vmax.f32 %v2867, 0.0
  %v3096 = vmax.f32 %v3026, 0.0
  %v3097 = vmax.f32 %v3028, 0.0
  %v3098 = vmax.f32 %v2871, 0.0
  %v3099 = vmax.f32 %v2873, 0.0
  %v3100 = vmax.f32 %v3032, 0.0
  %v3101 = vmax.f32 %v3034, 0.0
  %v3102 = vmax.f32 %v2877, 0.0
  %v3103 = vmax.f32 %v2879, 0.0
  %v3104 = vmax.f32 %v3038, 0.0
  %v3105 = vmax.f32 %v3040, 0.0
  %v3106 = vld [vmem:[%s15] sm:$0xff]
  %v3107 = vld [vmem:[%s15 + $0x8] sm:$0xff]
  %v3108 = vld [vmem:[%s15 + $0x10] sm:$0xff]
  %v3109 = vld [vmem:[%s15 + $0x18] sm:$0xff]
  %v3110 = vld [vmem:[%s15 + $0x20] sm:$0xff]
  %v3111 = vld [vmem:[%s15 + $0x28] sm:$0xff]
  %v3112 = vld [vmem:[%s15 + $0x30] sm:$0xff]
  %v3113 = vld [vmem:[%s15 + $0x38] sm:$0xff]
  %v3114 = vld [vmem:[%s15 + $0x40] sm:$0xff]
  %v3115 = vld [vmem:[%s15 + $0x48] sm:$0xff]
  %v3116 = vld [vmem:[%s15 + $0x50] sm:$0xff]
  %v3117 = vld [vmem:[%s15 + $0x58] sm:$0xff]
  %v3118 = vld [vmem:[%s15 + $0x60] sm:$0xff]
  %v3119 = vld [vmem:[%s15 + $0x68] sm:$0xff]
  %v3120 = vld [vmem:[%s15 + $0x70] sm:$0xff]
  %v3121 = vld [vmem:[%s15 + $0x78] sm:$0xff]
  %v3122 = vld [vmem:[%s15 + $0x80] sm:$0xff]
  %v3123 = vld [vmem:[%s15 + $0x88] sm:$0xff]
  %v3124 = vld [vmem:[%s15 + $0x90] sm:$0xff]
  %v3125 = vld [vmem:[%s15 + $0x98] sm:$0xff]
  %v3126 = vld [vmem:[%s15 + $0xa0] sm:$0xff]
  %v3127 = vld [vmem:[%s15 + $0xa8] sm:$0xff]
  %v3128 = vld [vmem:[%s15 + $0xb0] sm:$0xff]
  %v3129 = vld [vmem:[%s15 + $0xb8] sm:$0xff]
  %v3130 = vld [vmem:[%s15 + $0xc0] sm:$0xff]
  %v3131 = vld [vmem:[%s15 + $0xc8] sm:$0xff]
  %v3132 = vld [vmem:[%s15 + $0xd0] sm:$0xff]
  %v3133 = vld [vmem:[%s15 + $0xd8] sm:$0xff]
  %v3134 = vld [vmem:[%s15 + $0xe0] sm:$0xff]
  %v3135 = vld [vmem:[%s15 + $0xe8] sm:$0xff]
  %v3136 = vld [vmem:[%s15 + $0xf0] sm:$0xff]
  %v3137 = vld [vmem:[%s15 + $0xf8] sm:$0xff]
  %v3138 = vld [vmem:[%s15 + $0x100] sm:$0xff]
  %v3139 = vld [vmem:[%s15 + $0x108] sm:$0xff]
  %v3140 = vld [vmem:[%s15 + $0x110] sm:$0xff]
  %v3141 = vld [vmem:[%s15 + $0x118] sm:$0xff]
  %v3142 = vld [vmem:[%s15 + $0x120] sm:$0xff]
  %v3143 = vld [vmem:[%s15 + $0x128] sm:$0xff]
  %v3144 = vld [vmem:[%s15 + $0x130] sm:$0xff]
  %v3145 = vld [vmem:[%s15 + $0x138] sm:$0xff]
  %v3146 = vld [vmem:[%s15 + $0x140] sm:$0xff]
  %v3147 = vld [vmem:[%s15 + $0x148] sm:$0xff]
  %v3148 = vld [vmem:[%s15 + $0x150] sm:$0xff]
  %v3149 = vld [vmem:[%s15 + $0x158] sm:$0xff]
  %v3150 = vld [vmem:[%s15 + $0x160] sm:$0xff]
  %v3151 = vld [vmem:[%s15 + $0x168] sm:$0xff]
  %v3152 = vld [vmem:[%s15 + $0x170] sm:$0xff]
  %v3153 = vld [vmem:[%s15 + $0x178] sm:$0xff]
  %v3154 = vld [vmem:[%s15 + $0x180] sm:$0xff]
  %v3155 = vld [vmem:[%s15 + $0x188] sm:$0xff]
  %v3156 = vld [vmem:[%s15 + $0x190] sm:$0xff]
  %v3157 = vld [vmem:[%s15 + $0x198] sm:$0xff]
  %v3158 = vld [vmem:[%s15 + $0x1a0] sm:$0xff]
  %v3159 = vld [vmem:[%s15 + $0x1a8] sm:$0xff]
  %v3160 = vld [vmem:[%s15 + $0x1b0] sm:$0xff]
  %v3161 = vld [vmem:[%s15 + $0x1b8] sm:$0xff]
  %v3162 = vld [vmem:[%s15 + $0x1c0] sm:$0xff]
  %v3163 = vld [vmem:[%s15 + $0x1c8] sm:$0xff]
  %v3164 = vld [vmem:[%s15 + $0x1d0] sm:$0xff]
  %v3165 = vld [vmem:[%s15 + $0x1d8] sm:$0xff]
  %v3166 = vld [vmem:[%s15 + $0x1e0] sm:$0xff]
  %v3167 = vld [vmem:[%s15 + $0x1e8] sm:$0xff]
  %v3168 = vld [vmem:[%s15 + $0x1f0] sm:$0xff]
  %v3169 = vld [vmem:[%s15 + $0x1f8] sm:$0xff]
  %v3170 = vld [vmem:[%s16] sm:$0x1]
  %v3172 = vlaneseq
  %v3173 = vshrl.u32 %v3172, 7
  %v3174 = vsub.s32 0, %v3173
  %v3175 = vrot.slane %v3170, %v3174
  %3177 = vmatprep.subr.mxu0 0.0
  %3178 = vmatpush1.msra.mxu0 %v3121
  %3179 = vmatprep.subr.mxu0 0.0
  %3180 = vmatpush1.msra.mxu0 %v3120
  %3181 = vmatprep.subr.mxu0 0.0
  %3182 = vmatpush1.msra.mxu0 %v3119
  %3183 = vmatprep.subr.mxu0 0.0
  %3184 = vmatpush1.msra.mxu0 %v3118
  %3185 = vmatprep.subr.mxu0 0.0
  %3186 = vmatpush1.msra.mxu0 %v3117
  %3187 = vmatprep.subr.mxu0 0.0
  %3188 = vmatpush1.msra.mxu0 %v3116
  %3189 = vmatprep.subr.mxu0 0.0
  %3190 = vmatpush1.msra.mxu0 %v3115
  %3191 = vmatprep.subr.mxu0 0.0
  %3192 = vmatpush1.msra.mxu0 %v3114
  %3193 = vmatprep.subr.mxu0 0.0
  %3194 = vmatpush1.msra.mxu0 %v3113
  %3195 = vmatprep.subr.mxu0 0.0
  %3196 = vmatpush1.msra.mxu0 %v3112
  %3197 = vmatprep.subr.mxu0 0.0
  %3198 = vmatpush1.msra.mxu0 %v3111
  %3199 = vmatprep.subr.mxu0 0.0
  %3200 = vmatpush1.msra.mxu0 %v3110
  %3201 = vmatprep.subr.mxu0 0.0
  %3202 = vmatpush1.msra.mxu0 %v3109
  %3203 = vmatprep.subr.mxu0 0.0
  %3204 = vmatpush1.msra.mxu0 %v3108
  %3205 = vmatprep.subr.mxu0 0.0
  %3206 = vmatpush1.msra.mxu0 %v3107
  %3207 = vmatprep.subr.mxu0 0.0
  %3208 = vmatpush1.msra.mxu0 %v3106
  %3209 = vmatprep.subr.mxu0 0.0
  %3210 = vmatpush2.msra.mxu0 %v3137
  %3211 = vmatprep.subr.mxu0 0.0
  %3212 = vmatpush2.msra.mxu0 %v3136
  %3213 = vmatprep.subr.mxu0 0.0
  %3214 = vmatpush2.msra.mxu0 %v3135
  %3215 = vmatprep.subr.mxu0 0.0
  %3216 = vmatpush2.msra.mxu0 %v3134
  %3217 = vmatprep.subr.mxu0 0.0
  %3218 = vmatpush2.msra.mxu0 %v3133
  %3219 = vmatprep.subr.mxu0 0.0
  %3220 = vmatpush2.msra.mxu0 %v3132
  %3221 = vmatprep.subr.mxu0 0.0
  %3222 = vmatpush2.msra.mxu0 %v3131
  %3223 = vmatprep.subr.mxu0 0.0
  %3224 = vmatpush2.msra.mxu0 %v3130
  %3225 = vmatprep.subr.mxu0 0.0
  %3226 = vmatpush2.msra.mxu0 %v3129
  %3227 = vmatprep.subr.mxu0 0.0
  %3228 = vmatpush2.msra.mxu0 %v3128
  %3229 = vmatprep.subr.mxu0 0.0
  %3230 = vmatpush2.msra.mxu0 %v3127
  %3231 = vmatprep.subr.mxu0 0.0
  %3232 = vmatpush2.msra.mxu0 %v3126
  %3233 = vmatprep.subr.mxu0 0.0
  %3234 = vmatpush2.msra.mxu0 %v3125
  %3235 = vmatprep.subr.mxu0 0.0
  %3236 = vmatpush2.msra.mxu0 %v3124
  %3237 = vmatprep.subr.mxu0 0.0
  %3238 = vmatpush2.msra.mxu0 %v3123
  %3239 = vmatprep.subr.mxu0 0.0
  %3240 = vmatpush2.msra.mxu0 %v3122
  %3241 = vmatprep.mubr.f32.mxu0 %v3043
  %3242 = vmatmul.mubr.f32.gmra.mxu0 %v3042
  %v3243 = vpop.f32.mrf.mxu0
  %v3244 = vadd.f32 %v3175, %v3243
  %v3245 = vpop.f32.mrf.mxu0
  %3246 = vmatprep.mubr.f32.mxu0 %v3047
  %3247 = vmatmul.mubr.f32.gmra.mxu0 %v3046
  %v3248 = vpop.f32.mrf.mxu0
  %v3249 = vadd.f32 %v3175, %v3248
  %v3250 = vpop.f32.mrf.mxu0
  %3251 = vmatprep.mubr.f32.mxu0 %v3051
  %3252 = vmatmul.mubr.f32.gmra.mxu0 %v3050
  %v3253 = vpop.f32.mrf.mxu0
  %v3254 = vadd.f32 %v3175, %v3253
  %v3255 = vpop.f32.mrf.mxu0
  %3256 = vmatprep.mubr.f32.mxu0 %v3055
  %3257 = vmatmul.mubr.f32.gmra.mxu0 %v3054
  %v3258 = vpop.f32.mrf.mxu0
  %v3259 = vadd.f32 %v3175, %v3258
  %v3260 = vpop.f32.mrf.mxu0
  %3261 = vmatprep.mubr.f32.mxu0 %v3059
  %3262 = vmatmul.mubr.f32.gmra.mxu0 %v3058
  %v3263 = vpop.f32.mrf.mxu0
  %v3264 = vadd.f32 %v3175, %v3263
  %v3265 = vpop.f32.mrf.mxu0
  %3266 = vmatprep.mubr.f32.mxu0 %v3063
  %3267 = vmatmul.mubr.f32.gmra.mxu0 %v3062
  %v3268 = vpop.f32.mrf.mxu0
  %v3269 = vadd.f32 %v3175, %v3268
  %v3270 = vpop.f32.mrf.mxu0
  %3271 = vmatprep.mubr.f32.mxu0 %v3067
  %3272 = vmatmul.mubr.f32.gmra.mxu0 %v3066
  %v3273 = vpop.f32.mrf.mxu0
  %v3274 = vadd.f32 %v3175, %v3273
  %v3275 = vpop.f32.mrf.mxu0
  %3276 = vmatprep.mubr.f32.mxu0 %v3071
  %3277 = vmatmul.mubr.f32.gmra.mxu0 %v3070
  %v3278 = vpop.f32.mrf.mxu0
  %v3279 = vadd.f32 %v3175, %v3278
  %v3280 = vpop.f32.mrf.mxu0
  %3281 = vmatprep.mubr.f32.mxu0 %v3075
  %3282 = vmatmul.mubr.f32.gmra.mxu0 %v3074
  %v3283 = vpop.f32.mrf.mxu0
  %v3284 = vadd.f32 %v3175, %v3283
  %v3285 = vpop.f32.mrf.mxu0
  %3286 = vmatprep.mubr.f32.mxu0 %v3079
  %3287 = vmatmul.mubr.f32.gmra.mxu0 %v3078
  %v3288 = vpop.f32.mrf.mxu0
  %v3289 = vadd.f32 %v3175, %v3288
  %v3290 = vpop.f32.mrf.mxu0
  %3291 = vmatprep.mubr.f32.mxu0 %v3083
  %3292 = vmatmul.mubr.f32.gmra.mxu0 %v3082
  %v3293 = vpop.f32.mrf.mxu0
  %v3294 = vadd.f32 %v3175, %v3293
  %v3295 = vpop.f32.mrf.mxu0
  %3296 = vmatprep.mubr.f32.mxu0 %v3087
  %3297 = vmatmul.mubr.f32.gmra.mxu0 %v3086
  %v3298 = vpop.f32.mrf.mxu0
  %v3299 = vadd.f32 %v3175, %v3298
  %v3300 = vpop.f32.mrf.mxu0
  %3301 = vmatprep.mubr.f32.mxu0 %v3091
  %3302 = vmatmul.mubr.f32.gmra.mxu0 %v3090
  %v3303 = vpop.f32.mrf.mxu0
  %v3304 = vadd.f32 %v3175, %v3303
  %v3305 = vpop.f32.mrf.mxu0
  %3306 = vmatprep.mubr.f32.mxu0 %v3095
  %3307 = vmatmul.mubr.f32.gmra.mxu0 %v3094
  %v3308 = vpop.f32.mrf.mxu0
  %v3309 = vadd.f32 %v3175, %v3308
  %v3310 = vpop.f32.mrf.mxu0
  %3311 = vmatprep.mubr.f32.mxu0 %v3099
  %3312 = vmatmul.mubr.f32.gmra.mxu0 %v3098
  %v3313 = vpop.f32.mrf.mxu0
  %v3314 = vadd.f32 %v3175, %v3313
  %v3315 = vpop.f32.mrf.mxu0
  %3316 = vmatprep.mubr.f32.mxu0 %v3103
  %3317 = vmatmul.mubr.f32.gmra.mxu0 %v3102
  %v3318 = vpop.f32.mrf.mxu0
  %v3319 = vadd.f32 %v3175, %v3318
  %v3320 = vpop.f32.mrf.mxu0
  %3321 = vdwg.mxu0
  %3322 = vmatprep.subr.mxu0 0.0
  %3323 = vmatpush1.msra.mxu0 %v3153
  %3324 = vmatprep.subr.mxu0 0.0
  %3325 = vmatpush1.msra.mxu0 %v3152
  %3326 = vmatprep.subr.mxu0 0.0
  %3327 = vmatpush1.msra.mxu0 %v3151
  %3328 = vmatprep.subr.mxu0 0.0
  %3329 = vmatpush1.msra.mxu0 %v3150
  %3330 = vmatprep.subr.mxu0 0.0
  %3331 = vmatpush1.msra.mxu0 %v3149
  %3332 = vmatprep.subr.mxu0 0.0
  %3333 = vmatpush1.msra.mxu0 %v3148
  %3334 = vmatprep.subr.mxu0 0.0
  %3335 = vmatpush1.msra.mxu0 %v3147
  %3336 = vmatprep.subr.mxu0 0.0
  %3337 = vmatpush1.msra.mxu0 %v3146
  %3338 = vmatprep.subr.mxu0 0.0
  %3339 = vmatpush1.msra.mxu0 %v3145
  %3340 = vmatprep.subr.mxu0 0.0
  %3341 = vmatpush1.msra.mxu0 %v3144
  %3342 = vmatprep.subr.mxu0 0.0
  %3343 = vmatpush1.msra.mxu0 %v3143
  %3344 = vmatprep.subr.mxu0 0.0
  %3345 = vmatpush1.msra.mxu0 %v3142
  %3346 = vmatprep.subr.mxu0 0.0
  %3347 = vmatpush1.msra.mxu0 %v3141
  %3348 = vmatprep.subr.mxu0 0.0
  %3349 = vmatpush1.msra.mxu0 %v3140
  %3350 = vmatprep.subr.mxu0 0.0
  %3351 = vmatpush1.msra.mxu0 %v3139
  %3352 = vmatprep.subr.mxu0 0.0
  %3353 = vmatpush1.msra.mxu0 %v3138
  %3354 = vmatprep.subr.mxu0 0.0
  %3355 = vmatpush2.msra.mxu0 %v3169
  %3356 = vmatprep.subr.mxu0 0.0
  %3357 = vmatpush2.msra.mxu0 %v3168
  %3358 = vmatprep.subr.mxu0 0.0
  %3359 = vmatpush2.msra.mxu0 %v3167
  %3360 = vmatprep.subr.mxu0 0.0
  %3361 = vmatpush2.msra.mxu0 %v3166
  %3362 = vmatprep.subr.mxu0 0.0
  %3363 = vmatpush2.msra.mxu0 %v3165
  %3364 = vmatprep.subr.mxu0 0.0
  %3365 = vmatpush2.msra.mxu0 %v3164
  %3366 = vmatprep.subr.mxu0 0.0
  %3367 = vmatpush2.msra.mxu0 %v3163
  %3368 = vmatprep.subr.mxu0 0.0
  %3369 = vmatpush2.msra.mxu0 %v3162
  %3370 = vmatprep.subr.mxu0 0.0
  %3371 = vmatpush2.msra.mxu0 %v3161
  %3372 = vmatprep.subr.mxu0 0.0
  %3373 = vmatpush2.msra.mxu0 %v3160
  %3374 = vmatprep.subr.mxu0 0.0
  %3375 = vmatpush2.msra.mxu0 %v3159
  %3376 = vmatprep.subr.mxu0 0.0
  %3377 = vmatpush2.msra.mxu0 %v3158
  %3378 = vmatprep.subr.mxu0 0.0
  %3379 = vmatpush2.msra.mxu0 %v3157
  %3380 = vmatprep.subr.mxu0 0.0
  %3381 = vmatpush2.msra.mxu0 %v3156
  %3382 = vmatprep.subr.mxu0 0.0
  %3383 = vmatpush2.msra.mxu0 %v3155
  %3384 = vmatprep.subr.mxu0 0.0
  %3385 = vmatpush2.msra.mxu0 %v3154
  %3386 = vmatprep.mubr.f32.mxu0 %v3045
  %3387 = vmatmul.mubr.f32.gmra.mxu0 %v3044
  %v3388 = vpop.f32.mrf.mxu0
  %v3389 = vadd.f32 %v3244, %v3388
  %v3390 = vpop.f32.mrf.mxu0
  %3391 = vmatprep.mubr.f32.mxu0 %v3049
  %3392 = vmatmul.mubr.f32.gmra.mxu0 %v3048
  %v3393 = vpop.f32.mrf.mxu0
  %v3394 = vadd.f32 %v3249, %v3393
  %v3395 = vpop.f32.mrf.mxu0
  %3396 = vmatprep.mubr.f32.mxu0 %v3053
  %3397 = vmatmul.mubr.f32.gmra.mxu0 %v3052
  %v3398 = vpop.f32.mrf.mxu0
  %v3399 = vadd.f32 %v3254, %v3398
  %v3400 = vpop.f32.mrf.mxu0
  %3401 = vmatprep.mubr.f32.mxu0 %v3057
  %3402 = vmatmul.mubr.f32.gmra.mxu0 %v3056
  %v3403 = vpop.f32.mrf.mxu0
  %v3404 = vadd.f32 %v3259, %v3403
  %v3405 = vpop.f32.mrf.mxu0
  %3406 = vmatprep.mubr.f32.mxu0 %v3061
  %3407 = vmatmul.mubr.f32.gmra.mxu0 %v3060
  %v3408 = vpop.f32.mrf.mxu0
  %v3409 = vadd.f32 %v3264, %v3408
  %v3410 = vpop.f32.mrf.mxu0
  %3411 = vmatprep.mubr.f32.mxu0 %v3065
  %3412 = vmatmul.mubr.f32.gmra.mxu0 %v3064
  %v3413 = vpop.f32.mrf.mxu0
  %v3414 = vadd.f32 %v3269, %v3413
  %v3415 = vpop.f32.mrf.mxu0
  %3416 = vmatprep.mubr.f32.mxu0 %v3069
  %3417 = vmatmul.mubr.f32.gmra.mxu0 %v3068
  %v3418 = vpop.f32.mrf.mxu0
  %v3419 = vadd.f32 %v3274, %v3418
  %v3420 = vpop.f32.mrf.mxu0
  %3421 = vmatprep.mubr.f32.mxu0 %v3073
  %3422 = vmatmul.mubr.f32.gmra.mxu0 %v3072
  %v3423 = vpop.f32.mrf.mxu0
  %v3424 = vadd.f32 %v3279, %v3423
  %v3425 = vpop.f32.mrf.mxu0
  %3426 = vmatprep.mubr.f32.mxu0 %v3077
  %3427 = vmatmul.mubr.f32.gmra.mxu0 %v3076
  %v3428 = vpop.f32.mrf.mxu0
  %v3429 = vadd.f32 %v3284, %v3428
  %v3430 = vpop.f32.mrf.mxu0
  %3431 = vmatprep.mubr.f32.mxu0 %v3081
  %3432 = vmatmul.mubr.f32.gmra.mxu0 %v3080
  %v3433 = vpop.f32.mrf.mxu0
  %v3434 = vadd.f32 %v3289, %v3433
  %v3435 = vpop.f32.mrf.mxu0
  %3436 = vmatprep.mubr.f32.mxu0 %v3085
  %3437 = vmatmul.mubr.f32.gmra.mxu0 %v3084
  %v3438 = vpop.f32.mrf.mxu0
  %v3439 = vadd.f32 %v3294, %v3438
  %v3440 = vpop.f32.mrf.mxu0
  %3441 = vmatprep.mubr.f32.mxu0 %v3089
  %3442 = vmatmul.mubr.f32.gmra.mxu0 %v3088
  %v3443 = vpop.f32.mrf.mxu0
  %v3444 = vadd.f32 %v3299, %v3443
  %v3445 = vpop.f32.mrf.mxu0
  %3446 = vmatprep.mubr.f32.mxu0 %v3093
  %3447 = vmatmul.mubr.f32.gmra.mxu0 %v3092
  %v3448 = vpop.f32.mrf.mxu0
  %v3449 = vadd.f32 %v3304, %v3448
  %v3450 = vpop.f32.mrf.mxu0
  %3451 = vmatprep.mubr.f32.mxu0 %v3097
  %3452 = vmatmul.mubr.f32.gmra.mxu0 %v3096
  %v3453 = vpop.f32.mrf.mxu0
  %v3454 = vadd.f32 %v3309, %v3453
  %v3455 = vpop.f32.mrf.mxu0
  %3456 = vmatprep.mubr.f32.mxu0 %v3101
  %3457 = vmatmul.mubr.f32.gmra.mxu0 %v3100
  %v3458 = vpop.f32.mrf.mxu0
  %v3459 = vadd.f32 %v3314, %v3458
  %v3460 = vpop.f32.mrf.mxu0
  %3461 = vmatprep.mubr.f32.mxu0 %v3105
  %3462 = vmatmul.mubr.f32.gmra.mxu0 %v3104
  %v3463 = vpop.f32.mrf.mxu0
  %v3464 = vadd.f32 %v3319, %v3463
  %v3465 = vpop.f32.mrf.mxu0
  %3466 = vdwg.mxu0
  %3467 = vst [vmem:[%s17] sm:$0xff] %v3389
  %3468 = vst [vmem:[%s17 + $0x8] sm:$0xff] %v3394
  %3469 = vst [vmem:[%s17 + $0x10] sm:$0xff] %v3399
  %3470 = vst [vmem:[%s17 + $0x18] sm:$0xff] %v3404
  %3471 = vst [vmem:[%s17 + $0x20] sm:$0xff] %v3409
  %3472 = vst [vmem:[%s17 + $0x28] sm:$0xff] %v3414
  %3473 = vst [vmem:[%s17 + $0x30] sm:$0xff] %v3419
  %3474 = vst [vmem:[%s17 + $0x38] sm:$0xff] %v3424
  %3475 = vst [vmem:[%s17 + $0x40] sm:$0xff] %v3429
  %3476 = vst [vmem:[%s17 + $0x48] sm:$0xff] %v3434
  %3477 = vst [vmem:[%s17 + $0x50] sm:$0xff] %v3439
  %3478 = vst [vmem:[%s17 + $0x58] sm:$0xff] %v3444
  %3479 = vst [vmem:[%s17 + $0x60] sm:$0xff] %v3449
  %3480 = vst [vmem:[%s17 + $0x68] sm:$0xff] %v3454
  %3481 = vst [vmem:[%s17 + $0x70] sm:$0xff] %v3459
  %3482 = vst [vmem:[%s17 + $0x78] sm:$0xff] %v3464
  // Predicated region
  $region77: #{rl_gnn1_forward.1} parent=0 // pred_check
    _
  $region78: #{rl_gnn1_forward.1} parent=0 // pred_check_branch
    %3484 = sbr.rel (0) target = $region80
  $region79: #{rl_gnn1_forward.1} parent=0 // pred_region
    _
  $region80: #{rl_gnn1_forward.1} parent=0 // pred_fallthru
    _
  // Predicated region
  $region81: #{rl_gnn1_forward.1} parent=0 // pred_check
    _
  $region82: #{rl_gnn1_forward.1} parent=0 // pred_check_branch
    %3486 = sbr.rel (0) target = $region84
  $region83: #{rl_gnn1_forward.1} parent=0 // pred_region
    _
  $region84: #{rl_gnn1_forward.1} parent=0 // pred_fallthru
    _

</llo_original>
